<compile_context>
chip_gen: v7x
topology: tpu7x:2x2x1
jax: 0.10.0
libtpu: 0.0.40
codegen_flags: <defaults>
</compile_context>

<pallas_src>
import functools

import numpy as np
import jax
import jax.numpy as jnp
from jax import lax
from jax.experimental import pallas as pl
from jax.experimental.pallas import tpu as pltpu


# ----------------------------------------------------------------------------
# Static geometry (signal length 1000 is implied by Linear(5568, 100))
# ----------------------------------------------------------------------------
SIG_LEN = 1000
C_IN = 12
L1 = (SIG_LEN - 17) // 2 + 1     # 492  conv1 out
L2 = (L1 - 10) // 2 + 1          # 242  conv2 out
L3 = (L2 - 10) // 2 + 1          # 117  conv3 out
L4 = (L3 - 3) // 2 + 1           # 58   pool out
assert 96 * L4 == 5568

# Packed-row counts (time steps folded into lanes: pack 16 -> 8 -> 4 -> 2)
N_Y3P = L4 + 1                   # 59   conv3 output, pack-2
N_Y2P = N_Y3P + 3 - 1            # 61   conv2 output, pack-4 (conv3 uses 3 packed taps)
N_Y1P = N_Y2P + 2 - 1            # 62   conv1 output, pack-8 (conv2 uses 2 packed taps)
N_XP = N_Y1P + 2 - 1             # 63   input,        pack-16 (conv1 uses 2 packed taps)
L_PAD = N_XP * 16                # 1008 (zero-padded input length)
PC = 192                         # packed channel width of every conv stage (in & out)


# ----------------------------------------------------------------------------
# Pallas kernels
# ----------------------------------------------------------------------------
def _conv_tower_kernel(xp_ref, w1_ref, s1_ref, t1_ref, w2_ref, s2_ref, t2_ref,
                       w3_ref, s3_ref, t3_ref, o_ref):
    """conv1+BN+ReLU -> conv2+BN+ReLU -> conv3+BN+MaxPool(3,2)+ReLU, one batch elem.

    Every stage is a lane-packed stride-2 conv: 2-3 matmuls of contiguous row
    windows against block-structured (192, 192) weight slabs (taps merged along K).
    All intermediates stay in VMEM/vregs.
    """
    def stage(x_bf, w_ref, s_ref, t_ref, n_out, d_taps):
        acc = jnp.dot(x_bf[0:n_out, :], w_ref[0:PC, :],
                      preferred_element_type=jnp.float32)
        for d in range(1, d_taps):
            acc += jnp.dot(x_bf[d:d + n_out, :], w_ref[d * PC:(d + 1) * PC, :],
                           preferred_element_type=jnp.float32)
        return acc * s_ref[...] + t_ref[...]          # folded BN affine, f32

    x = xp_ref[...]                                                   # (63, 192) bf16
    y1 = jnp.maximum(stage(x, w1_ref, s1_ref, t1_ref, N_Y1P, 2), 0.0).astype(jnp.bfloat16)
    y2 = jnp.maximum(stage(y1, w2_ref, s2_ref, t2_ref, N_Y2P, 2), 0.0).astype(jnp.bfloat16)
    y3 = stage(y2, w3_ref, s3_ref, t3_ref, N_Y3P, 3)                  # (59, 192) f32

    # y3 is pack-2: [y3[2m] (96ch) | y3[2m+1] (96ch)] per row.
    # MaxPool1d(3, stride=2): pooled[m] = max(y3[2m], y3[2m+1], y3[2m+2]); then ReLU.
    pooled = jnp.maximum(jnp.maximum(y3[0:L4, 0:96], y3[0:L4, 96:192]),
                         y3[1:L4 + 1, 0:96])
    o_ref[...] = jnp.maximum(pooled, 0.0).astype(o_ref.dtype)


def _head_kernel(flat_ref, meta_ref, w1_ref, b1_ref, w2_ref, b2_ref,
                 wm1_ref, bm1_ref, wm2_ref, bm2_ref, wfs_ref, wfm_ref, bf_ref, o_ref):
    """Fused head: fc1+ReLU, fc2+ReLU, meta MLP, concat (via split final weight),
    final Linear + Sigmoid.  Whole batch at once; everything stays in VMEM."""
    def dense(x, w_ref, b_ref):
        return jnp.dot(x.astype(jnp.bfloat16), w_ref[...],
                       preferred_element_type=jnp.float32) + b_ref[...]

    h = jnp.maximum(dense(flat_ref[...], w1_ref, b1_ref), 0.0)        # (B, 100)
    sig = jnp.maximum(dense(h, w2_ref, b2_ref), 0.0)                  # (B, 25)
    m = jnp.maximum(dense(meta_ref[...], wm1_ref, bm1_ref), 0.0)      # (B, 24)
    m = jnp.maximum(dense(m, wm2_ref, bm2_ref), 0.0)                  # (B, 10)
    logits = (jnp.dot(sig.astype(jnp.bfloat16), wfs_ref[...],
                      preferred_element_type=jnp.float32)
              + jnp.dot(m.astype(jnp.bfloat16), wfm_ref[...],
                        preferred_element_type=jnp.float32)
              + bf_ref[...])
    # Stable sigmoid via EUP tanh: sigmoid(x) = 0.5 * tanh(x/2) + 0.5
    o_ref[...] = (0.5 * jnp.tanh(0.5 * logits) + 0.5).astype(o_ref.dtype)


# ----------------------------------------------------------------------------
# Pallas wrappers
# ----------------------------------------------------------------------------
def conv_tower(xp, p):
    B = xp.shape[0]

    def wspec(a):
        return pl.BlockSpec(a.shape, lambda b: (0, 0))   # resident across grid steps

    return pl.pallas_call(
        _conv_tower_kernel,
        grid=(B,),
        in_specs=[pl.BlockSpec((None, N_XP, PC), lambda b: (b, 0, 0)),
                  wspec(p["c1_w"]), wspec(p["c1_s"]), wspec(p["c1_t"]),
                  wspec(p["c2_w"]), wspec(p["c2_s"]), wspec(p["c2_t"]),
                  wspec(p["c3_w"]), wspec(p["c3_s"]), wspec(p["c3_t"])],
        out_specs=pl.BlockSpec((None, L4, 96), lambda b: (b, 0, 0)),
        out_shape=jax.ShapeDtypeStruct((B, L4, 96), jnp.bfloat16),
        compiler_params=pltpu.CompilerParams(dimension_semantics=("parallel",)),
    )(xp, p["c1_w"], p["c1_s"], p["c1_t"], p["c2_w"], p["c2_s"], p["c2_t"],
      p["c3_w"], p["c3_s"], p["c3_t"])


def head(flat, meta, p):
    B = flat.shape[0]
    args = (flat, meta,
            p["fc1_w"], p["fc1_b"], p["fc2_w"], p["fc2_b"],
            p["m1_w"], p["m1_b"], p["m2_w"], p["m2_b"],
            p["fin_w_sig"], p["fin_w_meta"], p["fin_b"])
    in_specs = [pl.BlockSpec(a.shape, lambda i: (0, 0)) for a in args]
    return pl.pallas_call(
        _head_kernel,
        grid=(1,),
        in_specs=in_specs,
        out_specs=pl.BlockSpec((B, 5), lambda i: (0, 0)),
        out_shape=jax.ShapeDtypeStruct((B, 5), jnp.float32),
    )(*args)


# ----------------------------------------------------------------------------
# Parameter preparation: lane-packed conv weights, BN folding, fc1 permutation
# ----------------------------------------------------------------------------
def _pack_conv_weight(w_oik, p_in):
    """PyTorch Conv1d weight (Cout, Cin, K), stride 2, input packed by p_in time
    steps along lanes -> matmul weight (D * p_in*Cin, (p_in//2) * Cout) such that
      Y_p[M] = sum_d X_p[M+d] @ W[d]   gives   Y_p[M, q*Cout+co] = y[(p_in//2)*M+q, co].
    """
    w = np.asarray(w_oik, np.float32)
    cout, cin, k = w.shape
    p_out = p_in // 2
    d_taps = (2 * (p_out - 1) + (k - 1)) // p_in + 1
    W = np.zeros((d_taps, p_in * cin, p_out * cout), np.float32)
    for q in range(p_out):
        for kk in range(k):
            off = 2 * q + kk
            d, e = divmod(off, p_in)
            W[d, e * cin:(e + 1) * cin, q * cout:(q + 1) * cout] = w[:, :, kk].T
    return W.reshape(d_taps * p_in * cin, p_out * cout)


def _fold_bn(bias, gamma, beta, mean, var, eps=1e-5):
    scale = gamma / jnp.sqrt(var + eps)
    shift = beta - mean * scale + bias * scale
    return scale, shift


def init_raw_params(key):
    """Random parameters in the original PyTorch layouts (the spec's source of truth)."""
    ks = iter(jax.random.split(key, 32))

    def nrm(shape, s=0.05):
        return jax.random.normal(next(ks), shape, jnp.float32) * s

    raw = {}
    for name, (co, ci, k) in [("c1", (24, 12, 17)), ("c2", (48, 24, 10)),
                              ("c3", (96, 48, 10))]:
        raw[f"{name}_w"] = nrm((co, ci, k))
        raw[f"{name}_b"] = nrm((co,))
        raw[f"{name}_g"] = 1.0 + nrm((co,))
        raw[f"{name}_be"] = nrm((co,))
        raw[f"{name}_m"] = nrm((co,))
        raw[f"{name}_v"] = 1.0 + jnp.abs(nrm((co,)))
    raw["fc1_w"] = nrm((100, 96 * L4)); raw["fc1_b"] = nrm((100,))
    raw["fc2_w"] = nrm((25, 100));      raw["fc2_b"] = nrm((25,))
    raw["m1_w"] = nrm((24, 48));        raw["m1_b"] = nrm((24,))
    raw["m2_w"] = nrm((10, 24));        raw["m2_b"] = nrm((10,))
    raw["fin_w"] = nrm((5, 35));        raw["fin_b"] = nrm((5,))
    return raw


def prepare_params(raw):
    p = {}
    for name, p_in in [("c1", 16), ("c2", 8), ("c3", 4)]:
        wmat = _pack_conv_weight(raw[f"{name}_w"], p_in)
        scale, shift = _fold_bn(raw[f"{name}_b"], raw[f"{name}_g"], raw[f"{name}_be"],
                                raw[f"{name}_m"], raw[f"{name}_v"])
        p_out = p_in // 2
        p[f"{name}_w"] = jnp.asarray(wmat, jnp.bfloat16)
        p[f"{name}_s"] = jnp.tile(scale, p_out).reshape(1, -1).astype(jnp.float32)
        p[f"{name}_t"] = jnp.tile(shift, p_out).reshape(1, -1).astype(jnp.float32)

    # fc1: PyTorch flattens (C=96, L4=58) channel-major (row = ch*L4 + m); our pooled
    # (L4, 96) flattens length-major (row = m*96 + ch).  Permute fc1 rows once at init.
    m = np.arange(L4)
    ch = np.arange(96)
    perm = (ch[None, :] * L4 + m[:, None]).reshape(-1)
    p["fc1_w"] = raw["fc1_w"].T[perm, :].astype(jnp.bfloat16)
    p["fc1_b"] = raw["fc1_b"].reshape(1, -1)
    p["fc2_w"] = raw["fc2_w"].T.astype(jnp.bfloat16)
    p["fc2_b"] = raw["fc2_b"].reshape(1, -1)
    p["m1_w"] = raw["m1_w"].T.astype(jnp.bfloat16)
    p["m1_b"] = raw["m1_b"].reshape(1, -1)
    p["m2_w"] = raw["m2_w"].T.astype(jnp.bfloat16)
    p["m2_b"] = raw["m2_b"].reshape(1, -1)
    wf_t = raw["fin_w"].T                     # (35, 5), rows in torch.cat order
    p["fin_w_sig"] = wf_t[:25].astype(jnp.bfloat16)
    p["fin_w_meta"] = wf_t[25:].astype(jnp.bfloat16)
    p["fin_b"] = raw["fin_b"].reshape(1, -1)
    return p


# ----------------------------------------------------------------------------
# Forward pass
# ----------------------------------------------------------------------------
def forward(params, X, Meta):
    # X: (B, 12, 1000) PyTorch NCL; Meta: (B, 48)
    B = X.shape[0]
    assert X.shape[1:] == (C_IN, SIG_LEN)
    x = jnp.transpose(X, (0, 2, 1)).astype(jnp.bfloat16)          # NLC, bf16 (halves DMA)
    x = jnp.pad(x, ((0, 0), (0, L_PAD - SIG_LEN), (0, 0)))        # zero-pad tail (never read by valid outputs)
    xp = x.reshape(B, N_XP, 16 * C_IN)                            # pack-16 -> (B, 63, 192); bitcast
    pooled = conv_tower(xp, params)                               # (B, 58, 96) bf16, one fused kernel
    flat = pooled.reshape(B, L4 * 96)                             # bitcast reshape (length-major)
    return head(flat, Meta.astype(jnp.float32), params)           # (B, 5) f32


# ----------------------------------------------------------------------------
# Pure-JAX reference (mirrors the PyTorch module, eval mode) for validation
# ----------------------------------------------------------------------------
def reference_forward(raw, X, Meta, eps=1e-5):
    def bf(w):  # apply the same bf16 weight rounding as the kernel (activations stay f32)
        return w.astype(jnp.bfloat16).astype(jnp.float32)

    def conv1d(x, w, b, stride):
        y = lax.conv_general_dilated(x, bf(w), (stride,), "VALID",
                                     dimension_numbers=("NCH", "OIH", "NCH"))
        return y + b[None, :, None]

    def bn(x, g, be, m, v):
        return ((x - m[None, :, None]) / jnp.sqrt(v[None, :, None] + eps)
                * g[None, :, None] + be[None, :, None])

    x = X.astype(jnp.float32)
    y = jax.nn.relu(bn(conv1d(x, raw["c1_w"], raw["c1_b"], 2),
                       raw["c1_g"], raw["c1_be"], raw["c1_m"], raw["c1_v"]))
    y = jax.nn.relu(bn(conv1d(y, raw["c2_w"], raw["c2_b"], 2),
                       raw["c2_g"], raw["c2_be"], raw["c2_m"], raw["c2_v"]))
    y = bn(conv1d(y, raw["c3_w"], raw["c3_b"], 2),
           raw["c3_g"], raw["c3_be"], raw["c3_m"], raw["c3_v"])        # (B, 96, 117)
    pooled = jnp.maximum(jnp.maximum(y[:, :, 0:2 * L4:2], y[:, :, 1:2 * L4:2]),
                         y[:, :, 2:2 * L4 + 1:2])
    pooled = jax.nn.relu(pooled)                                       # (B, 96, 58)
    flat = pooled.reshape(X.shape[0], -1)                              # channel-major flatten
    h = jax.nn.relu(flat @ bf(raw["fc1_w"]).T + raw["fc1_b"])
    sig = jax.nn.relu(h @ bf(raw["fc2_w"]).T + raw["fc2_b"])
    m = jax.nn.relu(Meta.astype(jnp.float32) @ bf(raw["m1_w"]).T + raw["m1_b"])
    m = jax.nn.relu(m @ bf(raw["m2_w"]).T + raw["m2_b"])
    feats = jnp.concatenate([sig, m], axis=1)
    return jax.nn.sigmoid(feats @ bf(raw["fin_w"]).T + raw["fin_b"])


if __name__ == "__main__":
    key = jax.random.PRNGKey(0)
    kp, kx, km = jax.random.split(key, 3)

    raw = init_raw_params(kp)
    params = prepare_params(raw)

    B = 2
    X = jax.random.normal(kx, (B, C_IN, SIG_LEN), jnp.float32)
    Meta = jax.random.normal(km, (B, 48), jnp.float32)

    out = jax.block_until_ready(jax.jit(forward)(params, X, Meta))
    assert out.shape == (B, 5)
    assert bool(jnp.all(jnp.isfinite(out)))
    assert bool(jnp.all((out >= 0.0) & (out <= 1.0)))                 # sigmoid range

    ref = reference_forward(raw, X, Meta)
    max_err = float(jnp.max(jnp.abs(out - ref)))
    assert max_err < 3e-2, f"mismatch vs reference: {max_err}"

    print("KERNEL_OK")
</pallas_src>

<mosaic_0001>
module attributes {stable_mosaic.version = 11 : i64} {
  func.func @_conv_tower_kernel(%arg0: i32, %arg1: memref<1x63x192xbf16, #tpu.memory_space<vmem>>, %arg2: memref<384x192xbf16, #tpu.memory_space<vmem>>, %arg3: memref<1x192xf32, #tpu.memory_space<vmem>>, %arg4: memref<1x192xf32, #tpu.memory_space<vmem>>, %arg5: memref<384x192xbf16, #tpu.memory_space<vmem>>, %arg6: memref<1x192xf32, #tpu.memory_space<vmem>>, %arg7: memref<1x192xf32, #tpu.memory_space<vmem>>, %arg8: memref<576x192xbf16, #tpu.memory_space<vmem>>, %arg9: memref<1x192xf32, #tpu.memory_space<vmem>>, %arg10: memref<1x192xf32, #tpu.memory_space<vmem>>, %arg11: memref<1x58x96xbf16, #tpu.memory_space<vmem>>) attributes {dimension_semantics = [#tpu.dimension_semantics<parallel>], iteration_bounds = array<i64: 2>, scalar_prefetch = 0 : i64, scratch_operands = 0 : i64, tpu.core_type = #tpu.core_type<tc>, window_params = [{transform_indices = @transform_0, window_bounds = array<i64: 1, 63, 192>}, {pipeline_mode = #tpu.pipeline_mode<synchronous>, transform_indices = @transform_1, window_bounds = array<i64: 384, 192>}, {pipeline_mode = #tpu.pipeline_mode<synchronous>, transform_indices = @transform_2, window_bounds = array<i64: 1, 192>}, {pipeline_mode = #tpu.pipeline_mode<synchronous>, transform_indices = @transform_3, window_bounds = array<i64: 1, 192>}, {pipeline_mode = #tpu.pipeline_mode<synchronous>, transform_indices = @transform_4, window_bounds = array<i64: 384, 192>}, {pipeline_mode = #tpu.pipeline_mode<synchronous>, transform_indices = @transform_5, window_bounds = array<i64: 1, 192>}, {pipeline_mode = #tpu.pipeline_mode<synchronous>, transform_indices = @transform_6, window_bounds = array<i64: 1, 192>}, {pipeline_mode = #tpu.pipeline_mode<synchronous>, transform_indices = @transform_7, window_bounds = array<i64: 576, 192>}, {pipeline_mode = #tpu.pipeline_mode<synchronous>, transform_indices = @transform_8, window_bounds = array<i64: 1, 192>}, {pipeline_mode = #tpu.pipeline_mode<synchronous>, transform_indices = @transform_9, window_bounds = array<i64: 1, 192>}, {transform_indices = @transform_10, window_bounds = array<i64: 1, 58, 96>}]} {
    %c0 = arith.constant 0 : index
    %c0_0 = arith.constant 0 : index
    %c0_1 = arith.constant 0 : index
    %0 = vector.load %arg1[%c0, %c0_0, %c0_1] : memref<1x63x192xbf16, #tpu.memory_space<vmem>>, vector<1x63x192xbf16>
    %1 = vector.shape_cast %0 : vector<1x63x192xbf16> to vector<63x192xbf16>
    %2 = vector.extract_strided_slice %1 {offsets = [0, 0], sizes = [62, 192], strides = [1, 1]} : vector<63x192xbf16> to vector<62x192xbf16>
    %c0_2 = arith.constant 0 : index
    %c0_3 = arith.constant 0 : index
    %3 = vector.load %arg2[%c0_2, %c0_3] : memref<384x192xbf16, #tpu.memory_space<vmem>>, vector<192x192xbf16>
    %cst = arith.constant dense<0.000000e+00> : vector<62x192xf32>
    %4 = tpu.matmul %2, %3, %cst {dimension_numbers = #tpu.dot_dimension_numbers<[1], [0], [0], [1], [0, 0, 1, 1], [], []>} : vector<62x192xbf16>, vector<192x192xbf16>, vector<62x192xf32> -> vector<62x192xf32>
    %5 = vector.extract_strided_slice %1 {offsets = [1, 0], sizes = [62, 192], strides = [1, 1]} : vector<63x192xbf16> to vector<62x192xbf16>
    %c192 = arith.constant 192 : index
    %c0_4 = arith.constant 0 : index
    %6 = vector.load %arg2[%c192, %c0_4] : memref<384x192xbf16, #tpu.memory_space<vmem>>, vector<192x192xbf16>
    %cst_5 = arith.constant dense<0.000000e+00> : vector<62x192xf32>
    %7 = tpu.matmul %5, %6, %cst_5 {dimension_numbers = #tpu.dot_dimension_numbers<[1], [0], [0], [1], [0, 0, 1, 1], [], []>} : vector<62x192xbf16>, vector<192x192xbf16>, vector<62x192xf32> -> vector<62x192xf32>
    %8 = arith.addf %4, %7 : vector<62x192xf32>
    %c0_6 = arith.constant 0 : index
    %c0_7 = arith.constant 0 : index
    %9 = vector.load %arg3[%c0_6, %c0_7] : memref<1x192xf32, #tpu.memory_space<vmem>>, vector<1x192xf32>
    %10 = vector.broadcast %9 : vector<1x192xf32> to vector<62x192xf32>
    %11 = arith.mulf %8, %10 : vector<62x192xf32>
    %c0_8 = arith.constant 0 : index
    %c0_9 = arith.constant 0 : index
    %12 = vector.load %arg4[%c0_8, %c0_9] : memref<1x192xf32, #tpu.memory_space<vmem>>, vector<1x192xf32>
    %13 = vector.broadcast %12 : vector<1x192xf32> to vector<62x192xf32>
    %14 = arith.addf %11, %13 : vector<62x192xf32>
    %cst_10 = arith.constant 0.000000e+00 : f32
    %15 = vector.broadcast %cst_10 : f32 to vector<62x192xf32>
    %16 = arith.maximumf %14, %15 : vector<62x192xf32>
    %17 = arith.truncf %16 : vector<62x192xf32> to vector<62x192xbf16>
    %18 = vector.extract_strided_slice %17 {offsets = [0, 0], sizes = [61, 192], strides = [1, 1]} : vector<62x192xbf16> to vector<61x192xbf16>
    %c0_11 = arith.constant 0 : index
    %c0_12 = arith.constant 0 : index
    %19 = vector.load %arg5[%c0_11, %c0_12] : memref<384x192xbf16, #tpu.memory_space<vmem>>, vector<192x192xbf16>
    %cst_13 = arith.constant dense<0.000000e+00> : vector<61x192xf32>
    %20 = tpu.matmul %18, %19, %cst_13 {dimension_numbers = #tpu.dot_dimension_numbers<[1], [0], [0], [1], [0, 0, 1, 1], [], []>} : vector<61x192xbf16>, vector<192x192xbf16>, vector<61x192xf32> -> vector<61x192xf32>
    %21 = vector.extract_strided_slice %17 {offsets = [1, 0], sizes = [61, 192], strides = [1, 1]} : vector<62x192xbf16> to vector<61x192xbf16>
    %c192_14 = arith.constant 192 : index
    %c0_15 = arith.constant 0 : index
    %22 = vector.load %arg5[%c192_14, %c0_15] : memref<384x192xbf16, #tpu.memory_space<vmem>>, vector<192x192xbf16>
    %cst_16 = arith.constant dense<0.000000e+00> : vector<61x192xf32>
    %23 = tpu.matmul %21, %22, %cst_16 {dimension_numbers = #tpu.dot_dimension_numbers<[1], [0], [0], [1], [0, 0, 1, 1], [], []>} : vector<61x192xbf16>, vector<192x192xbf16>, vector<61x192xf32> -> vector<61x192xf32>
    %24 = arith.addf %20, %23 : vector<61x192xf32>
    %c0_17 = arith.constant 0 : index
    %c0_18 = arith.constant 0 : index
    %25 = vector.load %arg6[%c0_17, %c0_18] : memref<1x192xf32, #tpu.memory_space<vmem>>, vector<1x192xf32>
    %26 = vector.broadcast %25 : vector<1x192xf32> to vector<61x192xf32>
    %27 = arith.mulf %24, %26 : vector<61x192xf32>
    %c0_19 = arith.constant 0 : index
    %c0_20 = arith.constant 0 : index
    %28 = vector.load %arg7[%c0_19, %c0_20] : memref<1x192xf32, #tpu.memory_space<vmem>>, vector<1x192xf32>
    %29 = vector.broadcast %28 : vector<1x192xf32> to vector<61x192xf32>
    %30 = arith.addf %27, %29 : vector<61x192xf32>
    %cst_21 = arith.constant 0.000000e+00 : f32
    %31 = vector.broadcast %cst_21 : f32 to vector<61x192xf32>
    %32 = arith.maximumf %30, %31 : vector<61x192xf32>
    %33 = arith.truncf %32 : vector<61x192xf32> to vector<61x192xbf16>
    %34 = vector.extract_strided_slice %33 {offsets = [0, 0], sizes = [59, 192], strides = [1, 1]} : vector<61x192xbf16> to vector<59x192xbf16>
    %c0_22 = arith.constant 0 : index
    %c0_23 = arith.constant 0 : index
    %35 = vector.load %arg8[%c0_22, %c0_23] : memref<576x192xbf16, #tpu.memory_space<vmem>>, vector<192x192xbf16>
    %cst_24 = arith.constant dense<0.000000e+00> : vector<59x192xf32>
    %36 = tpu.matmul %34, %35, %cst_24 {dimension_numbers = #tpu.dot_dimension_numbers<[1], [0], [0], [1], [0, 0, 1, 1], [], []>} : vector<59x192xbf16>, vector<192x192xbf16>, vector<59x192xf32> -> vector<59x192xf32>
    %37 = vector.extract_strided_slice %33 {offsets = [1, 0], sizes = [59, 192], strides = [1, 1]} : vector<61x192xbf16> to vector<59x192xbf16>
    %c192_25 = arith.constant 192 : index
    %c0_26 = arith.constant 0 : index
    %38 = vector.load %arg8[%c192_25, %c0_26] : memref<576x192xbf16, #tpu.memory_space<vmem>>, vector<192x192xbf16>
    %cst_27 = arith.constant dense<0.000000e+00> : vector<59x192xf32>
    %39 = tpu.matmul %37, %38, %cst_27 {dimension_numbers = #tpu.dot_dimension_numbers<[1], [0], [0], [1], [0, 0, 1, 1], [], []>} : vector<59x192xbf16>, vector<192x192xbf16>, vector<59x192xf32> -> vector<59x192xf32>
    %40 = arith.addf %36, %39 : vector<59x192xf32>
    %41 = vector.extract_strided_slice %33 {offsets = [2, 0], sizes = [59, 192], strides = [1, 1]} : vector<61x192xbf16> to vector<59x192xbf16>
    %c384 = arith.constant 384 : index
    %c0_28 = arith.constant 0 : index
    %42 = vector.load %arg8[%c384, %c0_28] : memref<576x192xbf16, #tpu.memory_space<vmem>>, vector<192x192xbf16>
    %cst_29 = arith.constant dense<0.000000e+00> : vector<59x192xf32>
    %43 = tpu.matmul %41, %42, %cst_29 {dimension_numbers = #tpu.dot_dimension_numbers<[1], [0], [0], [1], [0, 0, 1, 1], [], []>} : vector<59x192xbf16>, vector<192x192xbf16>, vector<59x192xf32> -> vector<59x192xf32>
    %44 = arith.addf %40, %43 : vector<59x192xf32>
    %c0_30 = arith.constant 0 : index
    %c0_31 = arith.constant 0 : index
    %45 = vector.load %arg9[%c0_30, %c0_31] : memref<1x192xf32, #tpu.memory_space<vmem>>, vector<1x192xf32>
    %46 = vector.broadcast %45 : vector<1x192xf32> to vector<59x192xf32>
    %47 = arith.mulf %44, %46 : vector<59x192xf32>
    %c0_32 = arith.constant 0 : index
    %c0_33 = arith.constant 0 : index
    %48 = vector.load %arg10[%c0_32, %c0_33] : memref<1x192xf32, #tpu.memory_space<vmem>>, vector<1x192xf32>
    %49 = vector.broadcast %48 : vector<1x192xf32> to vector<59x192xf32>
    %50 = arith.addf %47, %49 : vector<59x192xf32>
    %51 = vector.extract_strided_slice %50 {offsets = [0, 0], sizes = [58, 96], strides = [1, 1]} : vector<59x192xf32> to vector<58x96xf32>
    %52 = vector.extract_strided_slice %50 {offsets = [0, 96], sizes = [58, 96], strides = [1, 1]} : vector<59x192xf32> to vector<58x96xf32>
    %53 = arith.maximumf %51, %52 : vector<58x96xf32>
    %54 = vector.extract_strided_slice %50 {offsets = [1, 0], sizes = [58, 96], strides = [1, 1]} : vector<59x192xf32> to vector<58x96xf32>
    %55 = arith.maximumf %53, %54 : vector<58x96xf32>
    %cst_34 = arith.constant 0.000000e+00 : f32
    %56 = vector.broadcast %cst_34 : f32 to vector<58x96xf32>
    %57 = arith.maximumf %55, %56 : vector<58x96xf32>
    %58 = arith.truncf %57 : vector<58x96xf32> to vector<58x96xbf16>
    %c0_35 = arith.constant 0 : index
    %c0_36 = arith.constant 0 : index
    %c0_37 = arith.constant 0 : index
    %59 = vector.load %arg11[%c0_35, %c0_36, %c0_37] : memref<1x58x96xbf16, #tpu.memory_space<vmem>>, vector<1x58x96xbf16>
    %60 = vector.shape_cast %59 : vector<1x58x96xbf16> to vector<58x96xbf16>
    %61 = vector.shape_cast %58 : vector<58x96xbf16> to vector<1x58x96xbf16>
    tpu.vector_store %arg11[%c0_35, %c0_36, %c0_37], %61 {strides = array<i32>} : memref<1x58x96xbf16, #tpu.memory_space<vmem>>, vector<1x58x96xbf16>,
    return
  }
  func.func @transform_0(%arg0: i32) -> (i32, i32, i32) {
    %c0_i32 = arith.constant 0 : i32
    %c0_i32_0 = arith.constant 0 : i32
    %c0_i32_1 = arith.constant 0 : i32
    return %arg0, %c0_i32, %c0_i32_0 : i32, i32, i32
  }
  func.func @transform_1(%arg0: i32) -> (i32, i32) {
    %c0_i32 = arith.constant 0 : i32
    %c0_i32_0 = arith.constant 0 : i32
    %c0_i32_1 = arith.constant 0 : i32
    return %c0_i32, %c0_i32_0 : i32, i32
  }
  func.func @transform_2(%arg0: i32) -> (i32, i32) {
    %c0_i32 = arith.constant 0 : i32
    %c0_i32_0 = arith.constant 0 : i32
    %c0_i32_1 = arith.constant 0 : i32
    return %c0_i32, %c0_i32_0 : i32, i32
  }
  func.func @transform_3(%arg0: i32) -> (i32, i32) {
    %c0_i32 = arith.constant 0 : i32
    %c0_i32_0 = arith.constant 0 : i32
    %c0_i32_1 = arith.constant 0 : i32
    return %c0_i32, %c0_i32_0 : i32, i32
  }
  func.func @transform_4(%arg0: i32) -> (i32, i32) {
    %c0_i32 = arith.constant 0 : i32
    %c0_i32_0 = arith.constant 0 : i32
    %c0_i32_1 = arith.constant 0 : i32
    return %c0_i32, %c0_i32_0 : i32, i32
  }
  func.func @transform_5(%arg0: i32) -> (i32, i32) {
    %c0_i32 = arith.constant 0 : i32
    %c0_i32_0 = arith.constant 0 : i32
    %c0_i32_1 = arith.constant 0 : i32
    return %c0_i32, %c0_i32_0 : i32, i32
  }
  func.func @transform_6(%arg0: i32) -> (i32, i32) {
    %c0_i32 = arith.constant 0 : i32
    %c0_i32_0 = arith.constant 0 : i32
    %c0_i32_1 = arith.constant 0 : i32
    return %c0_i32, %c0_i32_0 : i32, i32
  }
  func.func @transform_7(%arg0: i32) -> (i32, i32) {
    %c0_i32 = arith.constant 0 : i32
    %c0_i32_0 = arith.constant 0 : i32
    %c0_i32_1 = arith.constant 0 : i32
    return %c0_i32, %c0_i32_0 : i32, i32
  }
  func.func @transform_8(%arg0: i32) -> (i32, i32) {
    %c0_i32 = arith.constant 0 : i32
    %c0_i32_0 = arith.constant 0 : i32
    %c0_i32_1 = arith.constant 0 : i32
    return %c0_i32, %c0_i32_0 : i32, i32
  }
  func.func @transform_9(%arg0: i32) -> (i32, i32) {
    %c0_i32 = arith.constant 0 : i32
    %c0_i32_0 = arith.constant 0 : i32
    %c0_i32_1 = arith.constant 0 : i32
    return %c0_i32, %c0_i32_0 : i32, i32
  }
  func.func @transform_10(%arg0: i32) -> (i32, i32, i32) {
    %c0_i32 = arith.constant 0 : i32
    %c0_i32_0 = arith.constant 0 : i32
    %c0_i32_1 = arith.constant 0 : i32
    return %arg0, %c0_i32, %c0_i32_0 : i32, i32, i32
  }
}

module attributes {stable_mosaic.version = 11 : i64} {
  func.func @_head_kernel(%arg0: i32, %arg1: memref<2x5568xbf16, #tpu.memory_space<vmem>>, %arg2: memref<2x48xf32, #tpu.memory_space<vmem>>, %arg3: memref<5568x100xbf16, #tpu.memory_space<vmem>>, %arg4: memref<1x100xf32, #tpu.memory_space<vmem>>, %arg5: memref<100x25xbf16, #tpu.memory_space<vmem>>, %arg6: memref<1x25xf32, #tpu.memory_space<vmem>>, %arg7: memref<48x24xbf16, #tpu.memory_space<vmem>>, %arg8: memref<1x24xf32, #tpu.memory_space<vmem>>, %arg9: memref<24x10xbf16, #tpu.memory_space<vmem>>, %arg10: memref<1x10xf32, #tpu.memory_space<vmem>>, %arg11: memref<25x5xbf16, #tpu.memory_space<vmem>>, %arg12: memref<10x5xbf16, #tpu.memory_space<vmem>>, %arg13: memref<1x5xf32, #tpu.memory_space<vmem>>, %arg14: memref<2x5xf32, #tpu.memory_space<vmem>>) attributes {dimension_semantics = [#tpu.dimension_semantics<arbitrary>], iteration_bounds = array<i64: 1>, scalar_prefetch = 0 : i64, scratch_operands = 0 : i64, tpu.core_type = #tpu.core_type<tc>, window_params = [{pipeline_mode = #tpu.pipeline_mode<synchronous>, transform_indices = @transform_0, window_bounds = array<i64: 2, 5568>}, {pipeline_mode = #tpu.pipeline_mode<synchronous>, transform_indices = @transform_1, window_bounds = array<i64: 2, 48>}, {pipeline_mode = #tpu.pipeline_mode<synchronous>, transform_indices = @transform_2, window_bounds = array<i64: 5568, 100>}, {pipeline_mode = #tpu.pipeline_mode<synchronous>, transform_indices = @transform_3, window_bounds = array<i64: 1, 100>}, {pipeline_mode = #tpu.pipeline_mode<synchronous>, transform_indices = @transform_4, window_bounds = array<i64: 100, 25>}, {pipeline_mode = #tpu.pipeline_mode<synchronous>, transform_indices = @transform_5, window_bounds = array<i64: 1, 25>}, {pipeline_mode = #tpu.pipeline_mode<synchronous>, transform_indices = @transform_6, window_bounds = array<i64: 48, 24>}, {pipeline_mode = #tpu.pipeline_mode<synchronous>, transform_indices = @transform_7, window_bounds = array<i64: 1, 24>}, {pipeline_mode = #tpu.pipeline_mode<synchronous>, transform_indices = @transform_8, window_bounds = array<i64: 24, 10>}, {pipeline_mode = #tpu.pipeline_mode<synchronous>, transform_indices = @transform_9, window_bounds = array<i64: 1, 10>}, {pipeline_mode = #tpu.pipeline_mode<synchronous>, transform_indices = @transform_10, window_bounds = array<i64: 25, 5>}, {pipeline_mode = #tpu.pipeline_mode<synchronous>, transform_indices = @transform_11, window_bounds = array<i64: 10, 5>}, {pipeline_mode = #tpu.pipeline_mode<synchronous>, transform_indices = @transform_12, window_bounds = array<i64: 1, 5>}, {pipeline_mode = #tpu.pipeline_mode<synchronous>, transform_indices = @transform_13, window_bounds = array<i64: 2, 5>}]} {
    %c0 = arith.constant 0 : index
    %c0_0 = arith.constant 0 : index
    %0 = vector.load %arg1[%c0, %c0_0] : memref<2x5568xbf16, #tpu.memory_space<vmem>>, vector<2x5568xbf16>
    %c0_1 = arith.constant 0 : index
    %c0_2 = arith.constant 0 : index
    %1 = vector.load %arg3[%c0_1, %c0_2] : memref<5568x100xbf16, #tpu.memory_space<vmem>>, vector<5568x100xbf16>
    %cst = arith.constant dense<0.000000e+00> : vector<2x100xf32>
    %2 = tpu.matmul %0, %1, %cst {dimension_numbers = #tpu.dot_dimension_numbers<[1], [0], [0], [1], [0, 0, 1, 1], [], []>} : vector<2x5568xbf16>, vector<5568x100xbf16>, vector<2x100xf32> -> vector<2x100xf32>
    %c0_3 = arith.constant 0 : index
    %c0_4 = arith.constant 0 : index
    %3 = vector.load %arg4[%c0_3, %c0_4] : memref<1x100xf32, #tpu.memory_space<vmem>>, vector<1x100xf32>
    %4 = vector.broadcast %3 : vector<1x100xf32> to vector<2x100xf32>
    %5 = arith.addf %2, %4 : vector<2x100xf32>
    %cst_5 = arith.constant 0.000000e+00 : f32
    %6 = vector.broadcast %cst_5 : f32 to vector<2x100xf32>
    %7 = arith.maximumf %5, %6 : vector<2x100xf32>
    %8 = arith.truncf %7 : vector<2x100xf32> to vector<2x100xbf16>
    %c0_6 = arith.constant 0 : index
    %c0_7 = arith.constant 0 : index
    %9 = vector.load %arg5[%c0_6, %c0_7] : memref<100x25xbf16, #tpu.memory_space<vmem>>, vector<100x25xbf16>
    %cst_8 = arith.constant dense<0.000000e+00> : vector<2x25xf32>
    %10 = tpu.matmul %8, %9, %cst_8 {dimension_numbers = #tpu.dot_dimension_numbers<[1], [0], [0], [1], [0, 0, 1, 1], [], []>} : vector<2x100xbf16>, vector<100x25xbf16>, vector<2x25xf32> -> vector<2x25xf32>
    %c0_9 = arith.constant 0 : index
    %c0_10 = arith.constant 0 : index
    %11 = vector.load %arg6[%c0_9, %c0_10] : memref<1x25xf32, #tpu.memory_space<vmem>>, vector<1x25xf32>
    %12 = vector.broadcast %11 : vector<1x25xf32> to vector<2x25xf32>
    %13 = arith.addf %10, %12 : vector<2x25xf32>
    %cst_11 = arith.constant 0.000000e+00 : f32
    %14 = vector.broadcast %cst_11 : f32 to vector<2x25xf32>
    %15 = arith.maximumf %13, %14 : vector<2x25xf32>
    %c0_12 = arith.constant 0 : index
    %c0_13 = arith.constant 0 : index
    %16 = vector.load %arg2[%c0_12, %c0_13] : memref<2x48xf32, #tpu.memory_space<vmem>>, vector<2x48xf32>
    %17 = arith.truncf %16 : vector<2x48xf32> to vector<2x48xbf16>
    %c0_14 = arith.constant 0 : index
    %c0_15 = arith.constant 0 : index
    %18 = vector.load %arg7[%c0_14, %c0_15] : memref<48x24xbf16, #tpu.memory_space<vmem>>, vector<48x24xbf16>
    %cst_16 = arith.constant dense<0.000000e+00> : vector<2x24xf32>
    %19 = tpu.matmul %17, %18, %cst_16 {dimension_numbers = #tpu.dot_dimension_numbers<[1], [0], [0], [1], [0, 0, 1, 1], [], []>} : vector<2x48xbf16>, vector<48x24xbf16>, vector<2x24xf32> -> vector<2x24xf32>
    %c0_17 = arith.constant 0 : index
    %c0_18 = arith.constant 0 : index
    %20 = vector.load %arg8[%c0_17, %c0_18] : memref<1x24xf32, #tpu.memory_space<vmem>>, vector<1x24xf32>
    %21 = vector.broadcast %20 : vector<1x24xf32> to vector<2x24xf32>
    %22 = arith.addf %19, %21 : vector<2x24xf32>
    %cst_19 = arith.constant 0.000000e+00 : f32
    %23 = vector.broadcast %cst_19 : f32 to vector<2x24xf32>
    %24 = arith.maximumf %22, %23 : vector<2x24xf32>
    %25 = arith.truncf %24 : vector<2x24xf32> to vector<2x24xbf16>
    %c0_20 = arith.constant 0 : index
    %c0_21 = arith.constant 0 : index
    %26 = vector.load %arg9[%c0_20, %c0_21] : memref<24x10xbf16, #tpu.memory_space<vmem>>, vector<24x10xbf16>
    %cst_22 = arith.constant dense<0.000000e+00> : vector<2x10xf32>
    %27 = tpu.matmul %25, %26, %cst_22 {dimension_numbers = #tpu.dot_dimension_numbers<[1], [0], [0], [1], [0, 0, 1, 1], [], []>} : vector<2x24xbf16>, vector<24x10xbf16>, vector<2x10xf32> -> vector<2x10xf32>
    %c0_23 = arith.constant 0 : index
    %c0_24 = arith.constant 0 : index
    %28 = vector.load %arg10[%c0_23, %c0_24] : memref<1x10xf32, #tpu.memory_space<vmem>>, vector<1x10xf32>
    %29 = vector.broadcast %28 : vector<1x10xf32> to vector<2x10xf32>
    %30 = arith.addf %27, %29 : vector<2x10xf32>
    %cst_25 = arith.constant 0.000000e+00 : f32
    %31 = vector.broadcast %cst_25 : f32 to vector<2x10xf32>
    %32 = arith.maximumf %30, %31 : vector<2x10xf32>
    %33 = arith.truncf %15 : vector<2x25xf32> to vector<2x25xbf16>
    %c0_26 = arith.constant 0 : index
    %c0_27 = arith.constant 0 : index
    %34 = vector.load %arg11[%c0_26, %c0_27] : memref<25x5xbf16, #tpu.memory_space<vmem>>, vector<25x5xbf16>
    %cst_28 = arith.constant dense<0.000000e+00> : vector<2x5xf32>
    %35 = tpu.matmul %33, %34, %cst_28 {dimension_numbers = #tpu.dot_dimension_numbers<[1], [0], [0], [1], [0, 0, 1, 1], [], []>} : vector<2x25xbf16>, vector<25x5xbf16>, vector<2x5xf32> -> vector<2x5xf32>
    %36 = arith.truncf %32 : vector<2x10xf32> to vector<2x10xbf16>
    %c0_29 = arith.constant 0 : index
    %c0_30 = arith.constant 0 : index
    %37 = vector.load %arg12[%c0_29, %c0_30] : memref<10x5xbf16, #tpu.memory_space<vmem>>, vector<10x5xbf16>
    %cst_31 = arith.constant dense<0.000000e+00> : vector<2x5xf32>
    %38 = tpu.matmul %36, %37, %cst_31 {dimension_numbers = #tpu.dot_dimension_numbers<[1], [0], [0], [1], [0, 0, 1, 1], [], []>} : vector<2x10xbf16>, vector<10x5xbf16>, vector<2x5xf32> -> vector<2x5xf32>
    %39 = arith.addf %35, %38 : vector<2x5xf32>
    %c0_32 = arith.constant 0 : index
    %c0_33 = arith.constant 0 : index
    %40 = vector.load %arg13[%c0_32, %c0_33] : memref<1x5xf32, #tpu.memory_space<vmem>>, vector<1x5xf32>
    %41 = vector.broadcast %40 : vector<1x5xf32> to vector<2x5xf32>
    %42 = arith.addf %39, %41 : vector<2x5xf32>
    %cst_34 = arith.constant 5.000000e-01 : f32
    %43 = vector.broadcast %cst_34 : f32 to vector<2x5xf32>
    %44 = arith.mulf %43, %42 : vector<2x5xf32>
    %45 = math.tanh %44 : vector<2x5xf32>
    %cst_35 = arith.constant 5.000000e-01 : f32
    %46 = vector.broadcast %cst_35 : f32 to vector<2x5xf32>
    %47 = arith.mulf %46, %45 : vector<2x5xf32>
    %cst_36 = arith.constant 5.000000e-01 : f32
    %48 = vector.broadcast %cst_36 : f32 to vector<2x5xf32>
    %49 = arith.addf %47, %48 : vector<2x5xf32>
    %c0_37 = arith.constant 0 : index
    %c0_38 = arith.constant 0 : index
    %50 = vector.load %arg14[%c0_37, %c0_38] : memref<2x5xf32, #tpu.memory_space<vmem>>, vector<2x5xf32>
    tpu.vector_store %arg14[%c0_37, %c0_38], %49 {strides = array<i32>} : memref<2x5xf32, #tpu.memory_space<vmem>>, vector<2x5xf32>,
    return
  }
  func.func @transform_0(%arg0: i32) -> (i32, i32) {
    %c0_i32 = arith.constant 0 : i32
    %c0_i32_0 = arith.constant 0 : i32
    %c0_i32_1 = arith.constant 0 : i32
    return %c0_i32, %c0_i32_0 : i32, i32
  }
  func.func @transform_1(%arg0: i32) -> (i32, i32) {
    %c0_i32 = arith.constant 0 : i32
    %c0_i32_0 = arith.constant 0 : i32
    %c0_i32_1 = arith.constant 0 : i32
    return %c0_i32, %c0_i32_0 : i32, i32
  }
  func.func @transform_2(%arg0: i32) -> (i32, i32) {
    %c0_i32 = arith.constant 0 : i32
    %c0_i32_0 = arith.constant 0 : i32
    %c0_i32_1 = arith.constant 0 : i32
    return %c0_i32, %c0_i32_0 : i32, i32
  }
  func.func @transform_3(%arg0: i32) -> (i32, i32) {
    %c0_i32 = arith.constant 0 : i32
    %c0_i32_0 = arith.constant 0 : i32
    %c0_i32_1 = arith.constant 0 : i32
    return %c0_i32, %c0_i32_0 : i32, i32
  }
  func.func @transform_4(%arg0: i32) -> (i32, i32) {
    %c0_i32 = arith.constant 0 : i32
    %c0_i32_0 = arith.constant 0 : i32
    %c0_i32_1 = arith.constant 0 : i32
    return %c0_i32, %c0_i32_0 : i32, i32
  }
  func.func @transform_5(%arg0: i32) -> (i32, i32) {
    %c0_i32 = arith.constant 0 : i32
    %c0_i32_0 = arith.constant 0 : i32
    %c0_i32_1 = arith.constant 0 : i32
    return %c0_i32, %c0_i32_0 : i32, i32
  }
  func.func @transform_6(%arg0: i32) -> (i32, i32) {
    %c0_i32 = arith.constant 0 : i32
    %c0_i32_0 = arith.constant 0 : i32
    %c0_i32_1 = arith.constant 0 : i32
    return %c0_i32, %c0_i32_0 : i32, i32
  }
  func.func @transform_7(%arg0: i32) -> (i32, i32) {
    %c0_i32 = arith.constant 0 : i32
    %c0_i32_0 = arith.constant 0 : i32
    %c0_i32_1 = arith.constant 0 : i32
    return %c0_i32, %c0_i32_0 : i32, i32
  }
  func.func @transform_8(%arg0: i32) -> (i32, i32) {
    %c0_i32 = arith.constant 0 : i32
    %c0_i32_0 = arith.constant 0 : i32
    %c0_i32_1 = arith.constant 0 : i32
    return %c0_i32, %c0_i32_0 : i32, i32
  }
  func.func @transform_9(%arg0: i32) -> (i32, i32) {
    %c0_i32 = arith.constant 0 : i32
    %c0_i32_0 = arith.constant 0 : i32
    %c0_i32_1 = arith.constant 0 : i32
    return %c0_i32, %c0_i32_0 : i32, i32
  }
  func.func @transform_10(%arg0: i32) -> (i32, i32) {
    %c0_i32 = arith.constant 0 : i32
    %c0_i32_0 = arith.constant 0 : i32
    %c0_i32_1 = arith.constant 0 : i32
    return %c0_i32, %c0_i32_0 : i32, i32
  }
  func.func @transform_11(%arg0: i32) -> (i32, i32) {
    %c0_i32 = arith.constant 0 : i32
    %c0_i32_0 = arith.constant 0 : i32
    %c0_i32_1 = arith.constant 0 : i32
    return %c0_i32, %c0_i32_0 : i32, i32
  }
  func.func @transform_12(%arg0: i32) -> (i32, i32) {
    %c0_i32 = arith.constant 0 : i32
    %c0_i32_0 = arith.constant 0 : i32
    %c0_i32_1 = arith.constant 0 : i32
    return %c0_i32, %c0_i32_0 : i32, i32
  }
  func.func @transform_13(%arg0: i32) -> (i32, i32) {
    %c0_i32 = arith.constant 0 : i32
    %c0_i32_0 = arith.constant 0 : i32
    %c0_i32_1 = arith.constant 0 : i32
    return %c0_i32, %c0_i32_0 : i32, i32
  }
}

</mosaic_0001>

<llo_original>
// kernel: forward.2
$region0: #{forward.2}
  #allocation0 [shape = 'u32[]', space=smem, size = 0x4, offset = 0x4, fixed_abs, tag = 'smem constant byte address 0x4 - core index']
  #allocation1 [shape = 'u32[144,128]{1,0:T(1,128)}', space=vmem, size = 0x12000, scoped, tag = 'internal scratch']
  %s0 = inlined_call_operand.vmem [shape: bf16[2,63,192], index: 0, kind: input, shape index: {}]
  %s1 = inlined_call_operand.vmem [shape: bf16[384,192], index: 1, kind: input, shape index: {}]
  %s2 = inlined_call_operand.vmem [shape: f32[1,192], index: 2, kind: input, shape index: {}]
  %s3 = inlined_call_operand.vmem [shape: f32[1,192], index: 3, kind: input, shape index: {}]
  %s4 = inlined_call_operand.vmem [shape: bf16[384,192], index: 4, kind: input, shape index: {}]
  %s5 = inlined_call_operand.vmem [shape: f32[1,192], index: 5, kind: input, shape index: {}]
  %s6 = inlined_call_operand.vmem [shape: f32[1,192], index: 6, kind: input, shape index: {}]
  %s7 = inlined_call_operand.vmem [shape: bf16[576,192], index: 7, kind: input, shape index: {}]
  %s8 = inlined_call_operand.vmem [shape: f32[1,192], index: 8, kind: input, shape index: {}]
  %s9 = inlined_call_operand.vmem [shape: f32[1,192], index: 9, kind: input, shape index: {}]
  %s10 = inlined_call_operand.vmem [shape: bf16[2,58,96], index: 10, kind: output, shape index: {}]
  %s11 = sld [smem:[#allocation0]]
  $region73: #{forward.2} parent=0
    _
  %s13 = ssub.s32 1, %s11
  %s14 = scalar_select 0, %s13, %s11
  loop: start=0, step=1, limit=4
  $region2: #{forward.2} parent=0 // loop_pre_header
    _
  $region3: #{forward.2} parent=0 // loop_header
    %s16 = sphi 0, %s20
    %p17 = scmp.ge.s32.totalorder %s16, 4
    %s26 = sphi 0, %s28
    %s29 = sphi 0, %s26
    %s30 = sphi 0, %s29
    %s46 = sphi 0, %s30
    %s50 = sphi 0, %s50
    %s52 = sphi 0, %s50
    %s53 = sphi 0, %s52
    %s67 = sphi 0, %s53
    %s71 = sphi 0, %s71
    %s73 = sphi 0, %s71
    %s74 = sphi 0, %s73
    %s88 = sphi 0, %s74
    %s92 = sphi 0, %s92
    %s94 = sphi 0, %s92
    %s95 = sphi 0, %s94
    %s109 = sphi 0, %s95
    %s113 = sphi 0, %s113
    %s115 = sphi 0, %s113
    %s116 = sphi 0, %s115
    %s130 = sphi 0, %s116
    %s134 = sphi 0, %s134
    %s136 = sphi 0, %s134
    %s137 = sphi 0, %s136
    %s151 = sphi 0, %s137
    %s155 = sphi 0, %s155
    %s157 = sphi 0, %s155
    %s158 = sphi 0, %s157
    %s172 = sphi 0, %s158
    %s176 = sphi 0, %s176
    %s178 = sphi 0, %s176
    %s179 = sphi 0, %s178
    %s193 = sphi 0, %s179
    %s197 = sphi 0, %s197
    %s199 = sphi 0, %s197
    %s200 = sphi 0, %s199
    %s214 = sphi 0, %s200
    %s218 = sphi 0, %s218
    %s220 = sphi 0, %s218
    %s221 = sphi 0, %s220
    %s235 = sphi 0, %s221
    %s241 = sphi 0, %s243
    %s244 = sphi 0, %s241
    %s245 = sphi 0, %s244
    %s261 = sphi 0, %s245
  $region4: #{forward.2} parent=0 // loop_header_branch
    %19 = sbr.rel (%p17) target = $region8
  $region5: #{forward.2} parent=0 // loop_body
    %s21 = ssub.s32 %s16, 1
    %s22 = ssub.s32 %s16, 2
    %s23 = sadd.s32 %s16, 1
    %s24 = ssub.s32 %s16, %s23
    %p25 = scmp.eq.s32.totalorder %s24, 0
    %s27 = sadd.s32 %s26, 1
    %s28 = scalar_select %p25, %s26, %s27
    %p31 = pneg %p25
    %p32 = scmp.eq.s32.totalorder %s16, 1
    %p33 = por %p31, %p32
    %p34 = scmp.ne.s32.totalorder %s26, %s29
    %p35 = scmp.eq.s32.totalorder %s16, 0
    %p36 = por %p34, %p35
    %p37 = scmp.ne.s32.totalorder %s26, %s29
    %p38 = scmp.eq.s32.totalorder %s21, 1
    %p39 = por %p37, %p38
    %p40 = scmp.ne.s32.totalorder %s29, %s30
    %p41 = scmp.eq.s32.totalorder %s21, 0
    %p42 = por %p40, %p41
    %p43 = scmp.ne.s32.totalorder %s29, %s30
    %p44 = scmp.eq.s32.totalorder %s22, 1
    %p45 = por %p43, %p44
    %p47 = scmp.ne.s32.totalorder %s30, %s46
    %p48 = scmp.eq.s32.totalorder %s22, 0
    %p49 = por %p47, %p48
    %s51 = sadd.s32 %s50, 1
    %p54 = scmp.eq.s32.totalorder %s16, 1
    %p55 = scmp.ne.s32.totalorder %s50, %s52
    %p56 = scmp.eq.s32.totalorder %s16, 0
    %p57 = por %p55, %p56
    %p58 = scmp.ne.s32.totalorder %s50, %s52
    %p59 = scmp.eq.s32.totalorder %s21, 1
    %p60 = por %p58, %p59
    %p61 = scmp.ne.s32.totalorder %s52, %s53
    %p62 = scmp.eq.s32.totalorder %s21, 0
    %p63 = por %p61, %p62
    %p64 = scmp.ne.s32.totalorder %s52, %s53
    %p65 = scmp.eq.s32.totalorder %s22, 1
    %p66 = por %p64, %p65
    %p68 = scmp.ne.s32.totalorder %s53, %s67
    %p69 = scmp.eq.s32.totalorder %s22, 0
    %p70 = por %p68, %p69
    %s72 = sadd.s32 %s71, 1
    %p75 = scmp.eq.s32.totalorder %s16, 1
    %p76 = scmp.ne.s32.totalorder %s71, %s73
    %p77 = scmp.eq.s32.totalorder %s16, 0
    %p78 = por %p76, %p77
    %p79 = scmp.ne.s32.totalorder %s71, %s73
    %p80 = scmp.eq.s32.totalorder %s21, 1
    %p81 = por %p79, %p80
    %p82 = scmp.ne.s32.totalorder %s73, %s74
    %p83 = scmp.eq.s32.totalorder %s21, 0
    %p84 = por %p82, %p83
    %p85 = scmp.ne.s32.totalorder %s73, %s74
    %p86 = scmp.eq.s32.totalorder %s22, 1
    %p87 = por %p85, %p86
    %p89 = scmp.ne.s32.totalorder %s74, %s88
    %p90 = scmp.eq.s32.totalorder %s22, 0
    %p91 = por %p89, %p90
    %s93 = sadd.s32 %s92, 1
    %p96 = scmp.eq.s32.totalorder %s16, 1
    %p97 = scmp.ne.s32.totalorder %s92, %s94
    %p98 = scmp.eq.s32.totalorder %s16, 0
    %p99 = por %p97, %p98
    %p100 = scmp.ne.s32.totalorder %s92, %s94
    %p101 = scmp.eq.s32.totalorder %s21, 1
    %p102 = por %p100, %p101
    %p103 = scmp.ne.s32.totalorder %s94, %s95
    %p104 = scmp.eq.s32.totalorder %s21, 0
    %p105 = por %p103, %p104
    %p106 = scmp.ne.s32.totalorder %s94, %s95
    %p107 = scmp.eq.s32.totalorder %s22, 1
    %p108 = por %p106, %p107
    %p110 = scmp.ne.s32.totalorder %s95, %s109
    %p111 = scmp.eq.s32.totalorder %s22, 0
    %p112 = por %p110, %p111
    %s114 = sadd.s32 %s113, 1
    %p117 = scmp.eq.s32.totalorder %s16, 1
    %p118 = scmp.ne.s32.totalorder %s113, %s115
    %p119 = scmp.eq.s32.totalorder %s16, 0
    %p120 = por %p118, %p119
    %p121 = scmp.ne.s32.totalorder %s113, %s115
    %p122 = scmp.eq.s32.totalorder %s21, 1
    %p123 = por %p121, %p122
    %p124 = scmp.ne.s32.totalorder %s115, %s116
    %p125 = scmp.eq.s32.totalorder %s21, 0
    %p126 = por %p124, %p125
    %p127 = scmp.ne.s32.totalorder %s115, %s116
    %p128 = scmp.eq.s32.totalorder %s22, 1
    %p129 = por %p127, %p128
    %p131 = scmp.ne.s32.totalorder %s116, %s130
    %p132 = scmp.eq.s32.totalorder %s22, 0
    %p133 = por %p131, %p132
    %s135 = sadd.s32 %s134, 1
    %p138 = scmp.eq.s32.totalorder %s16, 1
    %p139 = scmp.ne.s32.totalorder %s134, %s136
    %p140 = scmp.eq.s32.totalorder %s16, 0
    %p141 = por %p139, %p140
    %p142 = scmp.ne.s32.totalorder %s134, %s136
    %p143 = scmp.eq.s32.totalorder %s21, 1
    %p144 = por %p142, %p143
    %p145 = scmp.ne.s32.totalorder %s136, %s137
    %p146 = scmp.eq.s32.totalorder %s21, 0
    %p147 = por %p145, %p146
    %p148 = scmp.ne.s32.totalorder %s136, %s137
    %p149 = scmp.eq.s32.totalorder %s22, 1
    %p150 = por %p148, %p149
    %p152 = scmp.ne.s32.totalorder %s137, %s151
    %p153 = scmp.eq.s32.totalorder %s22, 0
    %p154 = por %p152, %p153
    %s156 = sadd.s32 %s155, 1
    %p159 = scmp.eq.s32.totalorder %s16, 1
    %p160 = scmp.ne.s32.totalorder %s155, %s157
    %p161 = scmp.eq.s32.totalorder %s16, 0
    %p162 = por %p160, %p161
    %p163 = scmp.ne.s32.totalorder %s155, %s157
    %p164 = scmp.eq.s32.totalorder %s21, 1
    %p165 = por %p163, %p164
    %p166 = scmp.ne.s32.totalorder %s157, %s158
    %p167 = scmp.eq.s32.totalorder %s21, 0
    %p168 = por %p166, %p167
    %p169 = scmp.ne.s32.totalorder %s157, %s158
    %p170 = scmp.eq.s32.totalorder %s22, 1
    %p171 = por %p169, %p170
    %p173 = scmp.ne.s32.totalorder %s158, %s172
    %p174 = scmp.eq.s32.totalorder %s22, 0
    %p175 = por %p173, %p174
    %s177 = sadd.s32 %s176, 1
    %p180 = scmp.eq.s32.totalorder %s16, 1
    %p181 = scmp.ne.s32.totalorder %s176, %s178
    %p182 = scmp.eq.s32.totalorder %s16, 0
    %p183 = por %p181, %p182
    %p184 = scmp.ne.s32.totalorder %s176, %s178
    %p185 = scmp.eq.s32.totalorder %s21, 1
    %p186 = por %p184, %p185
    %p187 = scmp.ne.s32.totalorder %s178, %s179
    %p188 = scmp.eq.s32.totalorder %s21, 0
    %p189 = por %p187, %p188
    %p190 = scmp.ne.s32.totalorder %s178, %s179
    %p191 = scmp.eq.s32.totalorder %s22, 1
    %p192 = por %p190, %p191
    %p194 = scmp.ne.s32.totalorder %s179, %s193
    %p195 = scmp.eq.s32.totalorder %s22, 0
    %p196 = por %p194, %p195
    %s198 = sadd.s32 %s197, 1
    %p201 = scmp.eq.s32.totalorder %s16, 1
    %p202 = scmp.ne.s32.totalorder %s197, %s199
    %p203 = scmp.eq.s32.totalorder %s16, 0
    %p204 = por %p202, %p203
    %p205 = scmp.ne.s32.totalorder %s197, %s199
    %p206 = scmp.eq.s32.totalorder %s21, 1
    %p207 = por %p205, %p206
    %p208 = scmp.ne.s32.totalorder %s199, %s200
    %p209 = scmp.eq.s32.totalorder %s21, 0
    %p210 = por %p208, %p209
    %p211 = scmp.ne.s32.totalorder %s199, %s200
    %p212 = scmp.eq.s32.totalorder %s22, 1
    %p213 = por %p211, %p212
    %p215 = scmp.ne.s32.totalorder %s200, %s214
    %p216 = scmp.eq.s32.totalorder %s22, 0
    %p217 = por %p215, %p216
    %s219 = sadd.s32 %s218, 1
    %p222 = scmp.eq.s32.totalorder %s16, 1
    %p223 = scmp.ne.s32.totalorder %s218, %s220
    %p224 = scmp.eq.s32.totalorder %s16, 0
    %p225 = por %p223, %p224
    %p226 = scmp.ne.s32.totalorder %s218, %s220
    %p227 = scmp.eq.s32.totalorder %s21, 1
    %p228 = por %p226, %p227
    %p229 = scmp.ne.s32.totalorder %s220, %s221
    %p230 = scmp.eq.s32.totalorder %s21, 0
    %p231 = por %p229, %p230
    %p232 = scmp.ne.s32.totalorder %s220, %s221
    %p233 = scmp.eq.s32.totalorder %s22, 1
    %p234 = por %p232, %p233
    %p236 = scmp.ne.s32.totalorder %s221, %s235
    %p237 = scmp.eq.s32.totalorder %s22, 0
    %p238 = por %p236, %p237
    %s239 = ssub.s32 %s16, %s23
    %p240 = scmp.eq.s32.totalorder %s239, 0
    %s242 = sadd.s32 %s241, 1
    %s243 = scalar_select %p240, %s241, %s242
    %p246 = pneg %p240
    %p247 = scmp.eq.s32.totalorder %s16, 1
    %p248 = por %p246, %p247
    %p249 = scmp.ne.s32.totalorder %s241, %s244
    %p250 = scmp.eq.s32.totalorder %s16, 0
    %p251 = por %p249, %p250
    %p252 = scmp.ne.s32.totalorder %s241, %s244
    %p253 = scmp.eq.s32.totalorder %s21, 1
    %p254 = por %p252, %p253
    %p255 = scmp.ne.s32.totalorder %s244, %s245
    %p256 = scmp.eq.s32.totalorder %s21, 0
    %p257 = por %p255, %p256
    %p258 = scmp.ne.s32.totalorder %s244, %s245
    %p259 = scmp.eq.s32.totalorder %s22, 1
    %p260 = por %p258, %p259
    %p262 = scmp.ne.s32.totalorder %s245, %s261
    %p263 = scmp.eq.s32.totalorder %s22, 0
    %p264 = por %p262, %p263
    %p265 = scmp.le.s32.totalorder 1, %s16
    %p266 = scmp.lt.s32.totalorder %s16, 3
    %p267 = pnand %p265, %p266
    %p268 = pneg %p267
    // Predicated region
    $region9: #{forward.2} parent=5 // pred_check
      _
    $region10: #{forward.2} parent=5 // pred_check_branch
      %270 = sbr.rel (%p267) target = $region12
    $region11: #{forward.2} parent=5 // pred_region
      %s271 = ssub.s32 %s16, 1
      // Predicated region
      $region13: #{forward.2} parent=11 // pred_check
        %p272 = pneg %p63
      $region14: #{forward.2} parent=11 // pred_check_branch
        %274 = sbr.rel (%p272) target = $region16
      $region15: #{forward.2} parent=11 // pred_region
        _
      $region16: #{forward.2} parent=11 // pred_fallthru
        _
      // Predicated region
      $region17: #{forward.2} parent=11 // pred_check
        %p275 = pneg %p84
      $region18: #{forward.2} parent=11 // pred_check_branch
        %277 = sbr.rel (%p275) target = $region20
      $region19: #{forward.2} parent=11 // pred_region
        _
      $region20: #{forward.2} parent=11 // pred_fallthru
        _
      // Predicated region
      $region21: #{forward.2} parent=11 // pred_check
        %p278 = pneg %p105
      $region22: #{forward.2} parent=11 // pred_check_branch
        %280 = sbr.rel (%p278) target = $region24
      $region23: #{forward.2} parent=11 // pred_region
        _
      $region24: #{forward.2} parent=11 // pred_fallthru
        _
      // Predicated region
      $region25: #{forward.2} parent=11 // pred_check
        %p281 = pneg %p126
      $region26: #{forward.2} parent=11 // pred_check_branch
        %283 = sbr.rel (%p281) target = $region28
      $region27: #{forward.2} parent=11 // pred_region
        _
      $region28: #{forward.2} parent=11 // pred_fallthru
        _
      // Predicated region
      $region29: #{forward.2} parent=11 // pred_check
        %p284 = pneg %p147
      $region30: #{forward.2} parent=11 // pred_check_branch
        %286 = sbr.rel (%p284) target = $region32
      $region31: #{forward.2} parent=11 // pred_region
        _
      $region32: #{forward.2} parent=11 // pred_fallthru
        _
      // Predicated region
      $region33: #{forward.2} parent=11 // pred_check
        %p287 = pneg %p168
      $region34: #{forward.2} parent=11 // pred_check_branch
        %289 = sbr.rel (%p287) target = $region36
      $region35: #{forward.2} parent=11 // pred_region
        _
      $region36: #{forward.2} parent=11 // pred_fallthru
        _
      // Predicated region
      $region37: #{forward.2} parent=11 // pred_check
        %p290 = pneg %p189
      $region38: #{forward.2} parent=11 // pred_check_branch
        %292 = sbr.rel (%p290) target = $region40
      $region39: #{forward.2} parent=11 // pred_region
        _
      $region40: #{forward.2} parent=11 // pred_fallthru
        _
      // Predicated region
      $region41: #{forward.2} parent=11 // pred_check
        %p293 = pneg %p210
      $region42: #{forward.2} parent=11 // pred_check_branch
        %295 = sbr.rel (%p293) target = $region44
      $region43: #{forward.2} parent=11 // pred_region
        _
      $region44: #{forward.2} parent=11 // pred_fallthru
        _
      // Predicated region
      $region45: #{forward.2} parent=11 // pred_check
        %p296 = pneg %p231
      $region46: #{forward.2} parent=11 // pred_check_branch
        %298 = sbr.rel (%p296) target = $region48
      $region47: #{forward.2} parent=11 // pred_region
        _
      $region48: #{forward.2} parent=11 // pred_fallthru
        _
    $region12: #{forward.2} parent=5 // pred_fallthru
      _
    %p299 = scmp.lt.s32.totalorder %s16, 2
    // Predicated region
    $region49: #{forward.2} parent=5 // pred_check
      %p300 = pneg %p299
    $region50: #{forward.2} parent=5 // pred_check_branch
      %302 = sbr.rel (%p300) target = $region52
    $region51: #{forward.2} parent=5 // pred_region
      // Predicated region
      $region53: #{forward.2} parent=51 // pred_check
        %p303 = pneg %p36
      $region54: #{forward.2} parent=51 // pred_check_branch
        %305 = sbr.rel (%p303) target = $region56
      $region55: #{forward.2} parent=51 // pred_region
        %p306 = scmp.lt.s32.totalorder %s16, 1
        %s307 = scalar_select %p306, %s16, 1
        %s308 = smul.addr %s307, 16
        %s309 = smul.addr %s308, 4
        %s310 = scalar_lea.vmem %s0, %s309
      $region56: #{forward.2} parent=51 // pred_fallthru
        _
    $region52: #{forward.2} parent=5 // pred_fallthru
      _
    %p311 = scmp.le.s32.totalorder 1, %s16
    %p312 = scmp.lt.s32.totalorder %s16, 3
    %p313 = pnand %p311, %p312
    %p314 = pneg %p313
    // Predicated region
    $region57: #{forward.2} parent=5 // pred_check
      _
    $region58: #{forward.2} parent=5 // pred_check_branch
      %316 = sbr.rel (%p313) target = $region60
    $region59: #{forward.2} parent=5 // pred_region
      %s317 = ssub.s32 %s16, 1
      %p318 = scmp.lt.s32.totalorder %s21, 1
      %s319 = scalar_select %p318, %s21, 1
      %s320 = smul.addr %s319, 16
      %s321 = smul.addr %s320, 4
      %s322 = scalar_lea.vmem %s0, %s321
      %p323 = pneg %p42
      %p324 = pneg %p39
      %p325 = pneg %p63
      %p326 = pneg %p60
      %p327 = pneg %p84
      %p328 = pneg %p81
      %p329 = pneg %p105
      %p330 = pneg %p102
      %p331 = pneg %p126
      %p332 = pneg %p123
      %p333 = pneg %p147
      %p334 = pneg %p144
      %p335 = pneg %p168
      %p336 = pneg %p165
      %p337 = pneg %p189
      %p338 = pneg %p186
      %p339 = pneg %p210
      %p340 = pneg %p207
      %p341 = pneg %p231
      %p342 = pneg %p228
      %p343 = pneg %p257
      %p344 = pneg %p254
      %p345 = scmp.lt.s32.totalorder %s21, 1
      %s346 = scalar_select %p345, %s21, 1
      %s347 = smul.addr %s346, 8
      %s348 = smul.addr %s347, 4
      %s349 = scalar_lea.vmem %s10, %s348
      %p350 = scmp.lt.s32.totalorder %s21, 1
      %s351 = scalar_select %p350, %s21, 1
      %s352 = smul.addr %s351, 16
      %s353 = smul.addr %s352, 4
      %s354 = scalar_lea.vmem %s0, %s353
      %p355 = scmp.lt.s32.totalorder %s21, 1
      %s356 = scalar_select %p355, %s21, 1
      %s357 = smul.addr %s356, 8
      %s358 = smul.addr %s357, 4
      %s359 = scalar_lea.vmem %s10, %s358
      %v361 = vld [vmem:[%s354] sm:$0xff]
      %v362 = vld [vmem:[%s354 + $0x8] sm:$0xff]
      %v363 = vld [vmem:[%s354 + $0x10] sm:$0xff]
      %v364 = vld [vmem:[%s354 + $0x18] sm:$0xff]
      %v365 = vld [vmem:[%s354 + $0x20] sm:$0xff]
      %v366 = vld [vmem:[%s354 + $0x28] sm:$0xff]
      %v367 = vld [vmem:[%s354 + $0x30] sm:$0xff]
      %v368 = vld [vmem:[%s354 + $0x38] sm:$0xff]
      %v369 = vld [vmem:[%s1] sm:$0xff]
      %v370 = vld [vmem:[%s1 + $0x8] sm:$0xff]
      %v371 = vld [vmem:[%s1 + $0x10] sm:$0xff]
      %v372 = vld [vmem:[%s1 + $0x18] sm:$0xff]
      %v373 = vld [vmem:[%s1 + $0x20] sm:$0xff]
      %v374 = vld [vmem:[%s1 + $0x28] sm:$0xff]
      %v375 = vld [vmem:[%s1 + $0x30] sm:$0xff]
      %v376 = vld [vmem:[%s1 + $0x38] sm:$0xff]
      %v377 = vld [vmem:[%s1 + $0x40] sm:$0xff]
      %v378 = vld [vmem:[%s1 + $0x48] sm:$0xff]
      %v379 = vld [vmem:[%s1 + $0x50] sm:$0xff]
      %v380 = vld [vmem:[%s1 + $0x58] sm:$0xff]
      %v381 = vld [vmem:[%s1 + $0x60] sm:$0xff]
      %v382 = vld [vmem:[%s1 + $0x68] sm:$0xff]
      %v383 = vld [vmem:[%s1 + $0x70] sm:$0xff]
      %v384 = vld [vmem:[%s1 + $0x78] sm:$0xff]
      %v385 = vld [vmem:[%s1 + $0x80] sm:$0xff]
      %v386 = vld [vmem:[%s1 + $0x88] sm:$0xff]
      %v387 = vld [vmem:[%s1 + $0x90] sm:$0xff]
      %v388 = vld [vmem:[%s1 + $0x98] sm:$0xff]
      %v389 = vld [vmem:[%s1 + $0xa0] sm:$0xff]
      %v390 = vld [vmem:[%s1 + $0xa8] sm:$0xff]
      %v391 = vld [vmem:[%s1 + $0xb0] sm:$0xff]
      %v392 = vld [vmem:[%s1 + $0xb8] sm:$0xff]
      %v393 = vld [vmem:[%s1 + $0xc0] sm:$0xff]
      %v394 = vld [vmem:[%s1 + $0xc8] sm:$0xff]
      %v395 = vld [vmem:[%s1 + $0xd0] sm:$0xff]
      %v396 = vld [vmem:[%s1 + $0xd8] sm:$0xff]
      %v397 = vld [vmem:[%s1 + $0xe0] sm:$0xff]
      %v398 = vld [vmem:[%s1 + $0xe8] sm:$0xff]
      %v399 = vld [vmem:[%s1 + $0xf0] sm:$0xff]
      %v400 = vld [vmem:[%s1 + $0xf8] sm:$0xff]
      %v401 = vld [vmem:[%s1 + $0x100] sm:$0xff]
      %v402 = vld [vmem:[%s1 + $0x108] sm:$0xff]
      %v403 = vld [vmem:[%s1 + $0x110] sm:$0xff]
      %v404 = vld [vmem:[%s1 + $0x118] sm:$0xff]
      %v405 = vld [vmem:[%s1 + $0x120] sm:$0xff]
      %v406 = vld [vmem:[%s1 + $0x128] sm:$0xff]
      %v407 = vld [vmem:[%s1 + $0x130] sm:$0xff]
      %v408 = vld [vmem:[%s1 + $0x138] sm:$0xff]
      %v409 = vld [vmem:[%s1 + $0x140] sm:$0xff]
      %v410 = vld [vmem:[%s1 + $0x148] sm:$0xff]
      %v411 = vld [vmem:[%s1 + $0x150] sm:$0xff]
      %v412 = vld [vmem:[%s1 + $0x158] sm:$0xff]
      %v413 = vld [vmem:[%s1 + $0x160] sm:$0xff]
      %v414 = vld [vmem:[%s1 + $0x168] sm:$0xff]
      %v415 = vld [vmem:[%s1 + $0x170] sm:$0xff]
      %v416 = vld [vmem:[%s1 + $0x178] sm:$0xff]
      %v425 = vunpack.c.l.b16 %v361
      %v426 = vunpack.c.h.b16 %v361
      %v427 = vunpack.c.l.b16 %v362
      %v428 = vunpack.c.h.b16 %v362
      %v429 = vunpack.c.l.b16 %v363
      %v430 = vunpack.c.h.b16 %v363
      %v431 = vunpack.c.l.b16 %v364
      %v432 = vunpack.c.h.b16 %v364
      %v433 = vunpack.c.l.b16 %v365
      %v434 = vunpack.c.h.b16 %v365
      %v435 = vunpack.c.l.b16 %v366
      %v436 = vunpack.c.h.b16 %v366
      %v437 = vunpack.c.l.b16 %v367
      %v438 = vunpack.c.h.b16 %v367
      %v439 = vunpack.c.l.b16 %v368
      %v440 = vunpack.c.h.b16 %v368
      %v441 = vpack.c.b16 %v427, %v425
      %v442 = vpack.c.b16 %v428, %v426
      %v443 = vpack.c.b16 %v431, %v429
      %v444 = vpack.c.b16 %v432, %v430
      %v445 = vpack.c.b16 %v435, %v433
      %v446 = vpack.c.b16 %v436, %v434
      %v447 = vpack.c.b16 %v439, %v437
      %v448 = vpack.c.b16 %v440, %v438
      %vm449 = vsmask.f32 7424
      %v451 = vshrl.u32 %v441, 16
      %v453 = vshll.u32 %v441, 16
      %v455 = vrot.slane %v453, 1
      %v456 = vor.u32 %v451, %v455
      %v458 = vshll.u32 %v443, 16
      %v460 = vrot.slane %v458, 1
      %v461 = vsel %vm449, %v456, %v460
      %v463 = vshrl.u32 %v442, 16
      %v465 = vshll.u32 %v442, 16
      %v467 = vrot.slane %v465, 1
      %v468 = vor.u32 %v463, %v467
      %v470 = vshll.u32 %v444, 16
      %v472 = vrot.slane %v470, 1
      %v473 = vsel %vm449, %v468, %v472
      %v474 = vshrl.u32 %v443, 16
      %v476 = vor.u32 %v474, %v460
      %v478 = vshll.u32 %v445, 16
      %v480 = vrot.slane %v478, 1
      %v481 = vsel %vm449, %v476, %v480
      %v482 = vshrl.u32 %v444, 16
      %v484 = vor.u32 %v482, %v472
      %v486 = vshll.u32 %v446, 16
      %v488 = vrot.slane %v486, 1
      %v489 = vsel %vm449, %v484, %v488
      %v490 = vshrl.u32 %v445, 16
      %v492 = vor.u32 %v490, %v480
      %v494 = vshll.u32 %v447, 16
      %v496 = vrot.slane %v494, 1
      %v497 = vsel %vm449, %v492, %v496
      %v498 = vshrl.u32 %v446, 16
      %v500 = vor.u32 %v498, %v488
      %v502 = vshll.u32 %v448, 16
      %v504 = vrot.slane %v502, 1
      %v505 = vsel %vm449, %v500, %v504
      %v506 = vshrl.u32 %v447, 16
      %v508 = vor.u32 %v506, %v496
      %v509 = vshrl.u32 %v448, 16
      %v511 = vor.u32 %v509, %v504
      %v540 = vunpack.c.l.b16 %v393
      %v541 = vunpack.c.h.b16 %v393
      %v542 = vunpack.c.l.b16 %v394
      %v543 = vunpack.c.h.b16 %v394
      %v544 = vunpack.c.l.b16 %v395
      %v545 = vunpack.c.h.b16 %v395
      %v546 = vunpack.c.l.b16 %v396
      %v547 = vunpack.c.h.b16 %v396
      %v548 = vunpack.c.l.b16 %v397
      %v549 = vunpack.c.h.b16 %v397
      %v550 = vunpack.c.l.b16 %v398
      %v551 = vunpack.c.h.b16 %v398
      %v552 = vunpack.c.l.b16 %v399
      %v553 = vunpack.c.h.b16 %v399
      %v554 = vunpack.c.l.b16 %v400
      %v555 = vunpack.c.h.b16 %v400
      %v556 = vunpack.c.l.b16 %v401
      %v557 = vunpack.c.h.b16 %v401
      %v558 = vunpack.c.l.b16 %v402
      %v559 = vunpack.c.h.b16 %v402
      %v560 = vunpack.c.l.b16 %v403
      %v561 = vunpack.c.h.b16 %v403
      %v562 = vunpack.c.l.b16 %v404
      %v563 = vunpack.c.h.b16 %v404
      %v564 = vunpack.c.l.b16 %v405
      %v565 = vunpack.c.h.b16 %v405
      %v566 = vunpack.c.l.b16 %v406
      %v567 = vunpack.c.h.b16 %v406
      %v568 = vunpack.c.l.b16 %v407
      %v569 = vunpack.c.h.b16 %v407
      %v570 = vunpack.c.l.b16 %v408
      %v571 = vunpack.c.h.b16 %v408
      %v572 = vunpack.c.l.b16 %v409
      %v573 = vunpack.c.h.b16 %v409
      %v574 = vunpack.c.l.b16 %v410
      %v575 = vunpack.c.h.b16 %v410
      %v576 = vunpack.c.l.b16 %v411
      %v577 = vunpack.c.h.b16 %v411
      %v578 = vunpack.c.l.b16 %v412
      %v579 = vunpack.c.h.b16 %v412
      %v580 = vunpack.c.l.b16 %v413
      %v581 = vunpack.c.h.b16 %v413
      %v582 = vunpack.c.l.b16 %v414
      %v583 = vunpack.c.h.b16 %v414
      %v584 = vunpack.c.l.b16 %v415
      %v585 = vunpack.c.h.b16 %v415
      %v586 = vunpack.c.l.b16 %v416
      %v587 = vunpack.c.h.b16 %v416
      %v588 = vpack.c.b16 %v542, %v540
      %v589 = vpack.c.b16 %v543, %v541
      %v590 = vpack.c.b16 %v546, %v544
      %v591 = vpack.c.b16 %v547, %v545
      %v592 = vpack.c.b16 %v550, %v548
      %v593 = vpack.c.b16 %v551, %v549
      %v594 = vpack.c.b16 %v554, %v552
      %v595 = vpack.c.b16 %v555, %v553
      %v596 = vpack.c.b16 %v558, %v556
      %v597 = vpack.c.b16 %v559, %v557
      %v598 = vpack.c.b16 %v562, %v560
      %v599 = vpack.c.b16 %v563, %v561
      %v600 = vpack.c.b16 %v566, %v564
      %v601 = vpack.c.b16 %v567, %v565
      %v602 = vpack.c.b16 %v570, %v568
      %v603 = vpack.c.b16 %v571, %v569
      %v604 = vpack.c.b16 %v574, %v572
      %v605 = vpack.c.b16 %v575, %v573
      %v606 = vpack.c.b16 %v578, %v576
      %v607 = vpack.c.b16 %v579, %v577
      %v608 = vpack.c.b16 %v582, %v580
      %v609 = vpack.c.b16 %v583, %v581
      %v610 = vpack.c.b16 %v586, %v584
      %v611 = vpack.c.b16 %v587, %v585
      %vm636 = vcmask 523264
      %v638 = vsel %vm636, %v473, 0
      %v641 = vsel %vm636, %v489, 0
      %v644 = vsel %vm636, %v505, 0
      %v647 = vsel %vm636, %v511, 0
      %649 = vmatprep.subr.bf16.mxu0 %v589
      %650 = vmatpush1.bf16.msra.mxu0 %v588
      %651 = vmatprep.subr.bf16.mxu0 %v591
      %652 = vmatpush1.bf16.msra.mxu0 %v590
      %653 = vmatprep.subr.bf16.mxu0 %v593
      %654 = vmatpush1.bf16.msra.mxu0 %v592
      %655 = vmatprep.subr.bf16.mxu0 %v595
      %656 = vmatpush1.bf16.msra.mxu0 %v594
      %657 = vmatprep.subr.bf16.mxu0 %v597
      %658 = vmatpush1.bf16.msra.mxu0 %v596
      %659 = vmatprep.subr.bf16.mxu0 %v599
      %660 = vmatpush1.bf16.msra.mxu0 %v598
      %661 = vmatprep.subr.bf16.mxu0 %v601
      %662 = vmatpush1.bf16.msra.mxu0 %v600
      %663 = vmatprep.subr.bf16.mxu0 %v603
      %664 = vmatpush1.bf16.msra.mxu0 %v602
      %665 = vmatprep.subr.bf16.mxu0 %v605
      %666 = vmatpush1.bf16.msra.mxu0 %v604
      %667 = vmatprep.subr.bf16.mxu0 %v607
      %668 = vmatpush1.bf16.msra.mxu0 %v606
      %669 = vmatprep.subr.bf16.mxu0 %v609
      %670 = vmatpush1.bf16.msra.mxu0 %v608
      %671 = vmatprep.subr.bf16.mxu0 %v611
      %672 = vmatpush1.bf16.msra.mxu0 %v610
      %673 = vmatprep.subr.bf16.mxu0 0
      %674 = vmatpush1.bf16.msra.mxu0 0
      %675 = vmatprep.subr.bf16.mxu0 0
      %676 = vmatpush1.bf16.msra.mxu0 0
      %677 = vmatprep.subr.bf16.mxu0 0
      %678 = vmatpush1.bf16.msra.mxu0 0
      %679 = vmatprep.subr.bf16.mxu0 0
      %680 = vmatpush1.bf16.msra.mxu0 0
      %681 = vmatprep.mubr.bf16.mxu0 %v638
      %682 = vmatmul.mubr.bf16.gmra.mrb[0].mxu0 %v461
      %v683 = vpop.f32.mrb[0].mxu0
      %v684 = vadd.f32 0.0, %v683
      %v685 = vpop.f32.mrb[0].mxu0
      %v686 = vadd.f32 0.0, %v685
      %v687 = vpop.f32.mrb[0].mxu0
      %v688 = vadd.f32 0.0, %v687
      %v689 = vpop.f32.mrb[0].mxu0
      %v690 = vadd.f32 0.0, %v689
      %691 = vmatprep.mubr.bf16.mxu0 %v641
      %692 = vmatmul.mubr.bf16.gmra.mrb[0].mxu0 %v481
      %v693 = vpop.f32.mrb[0].mxu0
      %v694 = vadd.f32 0.0, %v693
      %v695 = vpop.f32.mrb[0].mxu0
      %v696 = vadd.f32 0.0, %v695
      %v697 = vpop.f32.mrb[0].mxu0
      %v698 = vadd.f32 0.0, %v697
      %v699 = vpop.f32.mrb[0].mxu0
      %v700 = vadd.f32 0.0, %v699
      %701 = vmatprep.mubr.bf16.mxu0 %v644
      %702 = vmatmul.mubr.bf16.gmra.mrb[0].mxu0 %v497
      %v703 = vpop.f32.mrb[0].mxu0
      %v704 = vadd.f32 0.0, %v703
      %v705 = vpop.f32.mrb[0].mxu0
      %v706 = vadd.f32 0.0, %v705
      %v707 = vpop.f32.mrb[0].mxu0
      %v708 = vadd.f32 0.0, %v707
      %v709 = vpop.f32.mrb[0].mxu0
      %v710 = vadd.f32 0.0, %v709
      %711 = vmatprep.mubr.bf16.mxu0 %v647
      %712 = vmatmul.mubr.bf16.gmra.mrb[0].mxu0 %v508
      %v713 = vpop.f32.mrb[0].mxu0
      %v714 = vadd.f32 0.0, %v713
      %v715 = vpop.f32.mrb[0].mxu0
      %v716 = vadd.f32 0.0, %v715
      %v717 = vpop.f32.mrb[0].mxu0
      %v718 = vadd.f32 0.0, %v717
      %v719 = vpop.f32.mrb[0].mxu0
      %v720 = vadd.f32 0.0, %v719
      %721 = vdwg.mxu0
      %v750 = vunpack.c.l.b16 %v369
      %v751 = vunpack.c.h.b16 %v369
      %v752 = vunpack.c.l.b16 %v370
      %v753 = vunpack.c.h.b16 %v370
      %v754 = vunpack.c.l.b16 %v371
      %v755 = vunpack.c.h.b16 %v371
      %v756 = vunpack.c.l.b16 %v372
      %v757 = vunpack.c.h.b16 %v372
      %v758 = vunpack.c.l.b16 %v373
      %v759 = vunpack.c.h.b16 %v373
      %v760 = vunpack.c.l.b16 %v374
      %v761 = vunpack.c.h.b16 %v374
      %v762 = vunpack.c.l.b16 %v375
      %v763 = vunpack.c.h.b16 %v375
      %v764 = vunpack.c.l.b16 %v376
      %v765 = vunpack.c.h.b16 %v376
      %v766 = vunpack.c.l.b16 %v377
      %v767 = vunpack.c.h.b16 %v377
      %v768 = vunpack.c.l.b16 %v378
      %v769 = vunpack.c.h.b16 %v378
      %v770 = vunpack.c.l.b16 %v379
      %v771 = vunpack.c.h.b16 %v379
      %v772 = vunpack.c.l.b16 %v380
      %v773 = vunpack.c.h.b16 %v380
      %v774 = vunpack.c.l.b16 %v381
      %v775 = vunpack.c.h.b16 %v381
      %v776 = vunpack.c.l.b16 %v382
      %v777 = vunpack.c.h.b16 %v382
      %v778 = vunpack.c.l.b16 %v383
      %v779 = vunpack.c.h.b16 %v383
      %v780 = vunpack.c.l.b16 %v384
      %v781 = vunpack.c.h.b16 %v384
      %v782 = vunpack.c.l.b16 %v385
      %v783 = vunpack.c.h.b16 %v385
      %v784 = vunpack.c.l.b16 %v386
      %v785 = vunpack.c.h.b16 %v386
      %v786 = vunpack.c.l.b16 %v387
      %v787 = vunpack.c.h.b16 %v387
      %v788 = vunpack.c.l.b16 %v388
      %v789 = vunpack.c.h.b16 %v388
      %v790 = vunpack.c.l.b16 %v389
      %v791 = vunpack.c.h.b16 %v389
      %v792 = vunpack.c.l.b16 %v390
      %v793 = vunpack.c.h.b16 %v390
      %v794 = vunpack.c.l.b16 %v391
      %v795 = vunpack.c.h.b16 %v391
      %v796 = vunpack.c.l.b16 %v392
      %v797 = vunpack.c.h.b16 %v392
      %v798 = vpack.c.b16 %v752, %v750
      %v799 = vpack.c.b16 %v753, %v751
      %v800 = vpack.c.b16 %v756, %v754
      %v801 = vpack.c.b16 %v757, %v755
      %v802 = vpack.c.b16 %v760, %v758
      %v803 = vpack.c.b16 %v761, %v759
      %v804 = vpack.c.b16 %v764, %v762
      %v805 = vpack.c.b16 %v765, %v763
      %v806 = vpack.c.b16 %v768, %v766
      %v807 = vpack.c.b16 %v769, %v767
      %v808 = vpack.c.b16 %v772, %v770
      %v809 = vpack.c.b16 %v773, %v771
      %v810 = vpack.c.b16 %v776, %v774
      %v811 = vpack.c.b16 %v777, %v775
      %v812 = vpack.c.b16 %v780, %v778
      %v813 = vpack.c.b16 %v781, %v779
      %v814 = vpack.c.b16 %v784, %v782
      %v815 = vpack.c.b16 %v785, %v783
      %v816 = vpack.c.b16 %v788, %v786
      %v817 = vpack.c.b16 %v789, %v787
      %v818 = vpack.c.b16 %v792, %v790
      %v819 = vpack.c.b16 %v793, %v791
      %v820 = vpack.c.b16 %v796, %v794
      %v821 = vpack.c.b16 %v797, %v795
      %v846 = vsel %vm636, %v442, 0
      %v848 = vsel %vm636, %v444, 0
      %v850 = vsel %vm636, %v446, 0
      %v852 = vsel %vm636, %v448, 0
      %854 = vmatprep.subr.bf16.mxu0 %v799
      %855 = vmatpush1.bf16.msra.mxu0 %v798
      %856 = vmatprep.subr.bf16.mxu0 %v801
      %857 = vmatpush1.bf16.msra.mxu0 %v800
      %858 = vmatprep.subr.bf16.mxu0 %v803
      %859 = vmatpush1.bf16.msra.mxu0 %v802
      %860 = vmatprep.subr.bf16.mxu0 %v805
      %861 = vmatpush1.bf16.msra.mxu0 %v804
      %862 = vmatprep.subr.bf16.mxu0 %v807
      %863 = vmatpush1.bf16.msra.mxu0 %v806
      %864 = vmatprep.subr.bf16.mxu0 %v809
      %865 = vmatpush1.bf16.msra.mxu0 %v808
      %866 = vmatprep.subr.bf16.mxu0 %v811
      %867 = vmatpush1.bf16.msra.mxu0 %v810
      %868 = vmatprep.subr.bf16.mxu0 %v813
      %869 = vmatpush1.bf16.msra.mxu0 %v812
      %870 = vmatprep.subr.bf16.mxu0 %v815
      %871 = vmatpush1.bf16.msra.mxu0 %v814
      %872 = vmatprep.subr.bf16.mxu0 %v817
      %873 = vmatpush1.bf16.msra.mxu0 %v816
      %874 = vmatprep.subr.bf16.mxu0 %v819
      %875 = vmatpush1.bf16.msra.mxu0 %v818
      %876 = vmatprep.subr.bf16.mxu0 %v821
      %877 = vmatpush1.bf16.msra.mxu0 %v820
      %878 = vmatprep.subr.bf16.mxu0 0
      %879 = vmatpush1.bf16.msra.mxu0 0
      %880 = vmatprep.subr.bf16.mxu0 0
      %881 = vmatpush1.bf16.msra.mxu0 0
      %882 = vmatprep.subr.bf16.mxu0 0
      %883 = vmatpush1.bf16.msra.mxu0 0
      %884 = vmatprep.subr.bf16.mxu0 0
      %885 = vmatpush1.bf16.msra.mxu0 0
      %886 = vmatprep.mubr.bf16.mxu0 %v846
      %887 = vmatmul.mubr.bf16.gmra.mrb[0].mxu0 %v441
      %v888 = vpop.f32.mrb[0].mxu0
      %v889 = vadd.f32 %v684, %v888
      %v890 = vpop.f32.mrb[0].mxu0
      %v891 = vadd.f32 %v686, %v890
      %v892 = vpop.f32.mrb[0].mxu0
      %v893 = vadd.f32 %v688, %v892
      %v894 = vpop.f32.mrb[0].mxu0
      %v895 = vadd.f32 %v690, %v894
      %896 = vmatprep.mubr.bf16.mxu0 %v848
      %897 = vmatmul.mubr.bf16.gmra.mrb[0].mxu0 %v443
      %v898 = vpop.f32.mrb[0].mxu0
      %v899 = vadd.f32 %v694, %v898
      %v900 = vpop.f32.mrb[0].mxu0
      %v901 = vadd.f32 %v696, %v900
      %v902 = vpop.f32.mrb[0].mxu0
      %v903 = vadd.f32 %v698, %v902
      %v904 = vpop.f32.mrb[0].mxu0
      %v905 = vadd.f32 %v700, %v904
      %906 = vmatprep.mubr.bf16.mxu0 %v850
      %907 = vmatmul.mubr.bf16.gmra.mrb[0].mxu0 %v445
      %v908 = vpop.f32.mrb[0].mxu0
      %v909 = vadd.f32 %v704, %v908
      %v910 = vpop.f32.mrb[0].mxu0
      %v911 = vadd.f32 %v706, %v910
      %v912 = vpop.f32.mrb[0].mxu0
      %v913 = vadd.f32 %v708, %v912
      %v914 = vpop.f32.mrb[0].mxu0
      %v915 = vadd.f32 %v710, %v914
      %916 = vmatprep.mubr.bf16.mxu0 %v852
      %917 = vmatmul.mubr.bf16.gmra.mrb[0].mxu0 %v447
      %v918 = vpop.f32.mrb[0].mxu0
      %v919 = vadd.f32 %v714, %v918
      %v920 = vpop.f32.mrb[0].mxu0
      %v921 = vadd.f32 %v716, %v920
      %v922 = vpop.f32.mrb[0].mxu0
      %v923 = vadd.f32 %v718, %v922
      %v924 = vpop.f32.mrb[0].mxu0
      %v925 = vadd.f32 %v720, %v924
      %926 = vdwg.mxu0
      %v927 = vld [vmem:[%s2] sm:$0x3]
      %v929 = vlaneseq
      %v930 = vshrl.u32 %v929, 7
      %v931 = vsub.s32 0, %v930
      %v932 = vrot.slane %v927, %v931
      %v933 = vlaneseq
      %v934 = vshrl.u32 %v933, 7
      %v935 = vsub.s32 1, %v934
      %v936 = vrot.slane %v927, %v935
      %v939 = vmul.f32 %v889, %v932
      %v940 = vmul.f32 %v891, %v936
      %v941 = vmul.f32 %v893, %v932
      %v942 = vmul.f32 %v895, %v936
      %v943 = vmul.f32 %v899, %v932
      %v944 = vmul.f32 %v901, %v936
      %v945 = vmul.f32 %v903, %v932
      %v946 = vmul.f32 %v905, %v936
      %v947 = vmul.f32 %v909, %v932
      %v948 = vmul.f32 %v911, %v936
      %v949 = vmul.f32 %v913, %v932
      %v950 = vmul.f32 %v915, %v936
      %v951 = vmul.f32 %v919, %v932
      %v952 = vmul.f32 %v921, %v936
      %v953 = vmul.f32 %v923, %v932
      %v954 = vmul.f32 %v925, %v936
      %v955 = vld [vmem:[%s3] sm:$0x3]
      %v957 = vlaneseq
      %v958 = vshrl.u32 %v957, 7
      %v959 = vsub.s32 0, %v958
      %v960 = vrot.slane %v955, %v959
      %v961 = vlaneseq
      %v962 = vshrl.u32 %v961, 7
      %v963 = vsub.s32 1, %v962
      %v964 = vrot.slane %v955, %v963
      %v967 = vadd.f32 %v939, %v960
      %v968 = vadd.f32 %v940, %v964
      %v969 = vadd.f32 %v941, %v960
      %v970 = vadd.f32 %v942, %v964
      %v971 = vadd.f32 %v943, %v960
      %v972 = vadd.f32 %v944, %v964
      %v973 = vadd.f32 %v945, %v960
      %v974 = vadd.f32 %v946, %v964
      %v975 = vadd.f32 %v947, %v960
      %v976 = vadd.f32 %v948, %v964
      %v977 = vadd.f32 %v949, %v960
      %v978 = vadd.f32 %v950, %v964
      %v979 = vadd.f32 %v951, %v960
      %v980 = vadd.f32 %v952, %v964
      %v981 = vadd.f32 %v953, %v960
      %v982 = vadd.f32 %v954, %v964
      %v983 = vmax.f32 %v967, 0.0
      %v984 = vmax.f32 %v968, 0.0
      %v985 = vmax.f32 %v969, 0.0
      %v986 = vmax.f32 %v970, 0.0
      %v987 = vmax.f32 %v971, 0.0
      %v988 = vmax.f32 %v972, 0.0
      %v989 = vmax.f32 %v973, 0.0
      %v990 = vmax.f32 %v974, 0.0
      %v991 = vmax.f32 %v975, 0.0
      %v992 = vmax.f32 %v976, 0.0
      %v993 = vmax.f32 %v977, 0.0
      %v994 = vmax.f32 %v978, 0.0
      %v995 = vmax.f32 %v979, 0.0
      %v996 = vmax.f32 %v980, 0.0
      %v997 = vmax.f32 %v981, 0.0
      %v998 = vmax.f32 %v982, 0.0
      %v999 = vpack.c.bf16 %v985, %v983
      %v1000 = vpack.c.bf16 %v986, %v984
      %v1001 = vpack.c.bf16 %v989, %v987
      %v1002 = vpack.c.bf16 %v990, %v988
      %v1003 = vpack.c.bf16 %v993, %v991
      %v1004 = vpack.c.bf16 %v994, %v992
      %v1005 = vpack.c.bf16 %v997, %v995
      %v1006 = vpack.c.bf16 %v998, %v996
      %v1007 = vld [vmem:[%s4] sm:$0xff]
      %v1008 = vld [vmem:[%s4 + $0x8] sm:$0xff]
      %v1009 = vld [vmem:[%s4 + $0x10] sm:$0xff]
      %v1010 = vld [vmem:[%s4 + $0x18] sm:$0xff]
      %v1011 = vld [vmem:[%s4 + $0x20] sm:$0xff]
      %v1012 = vld [vmem:[%s4 + $0x28] sm:$0xff]
      %v1013 = vld [vmem:[%s4 + $0x30] sm:$0xff]
      %v1014 = vld [vmem:[%s4 + $0x38] sm:$0xff]
      %v1015 = vld [vmem:[%s4 + $0x40] sm:$0xff]
      %v1016 = vld [vmem:[%s4 + $0x48] sm:$0xff]
      %v1017 = vld [vmem:[%s4 + $0x50] sm:$0xff]
      %v1018 = vld [vmem:[%s4 + $0x58] sm:$0xff]
      %v1019 = vld [vmem:[%s4 + $0x60] sm:$0xff]
      %v1020 = vld [vmem:[%s4 + $0x68] sm:$0xff]
      %v1021 = vld [vmem:[%s4 + $0x70] sm:$0xff]
      %v1022 = vld [vmem:[%s4 + $0x78] sm:$0xff]
      %v1023 = vld [vmem:[%s4 + $0x80] sm:$0xff]
      %v1024 = vld [vmem:[%s4 + $0x88] sm:$0xff]
      %v1025 = vld [vmem:[%s4 + $0x90] sm:$0xff]
      %v1026 = vld [vmem:[%s4 + $0x98] sm:$0xff]
      %v1027 = vld [vmem:[%s4 + $0xa0] sm:$0xff]
      %v1028 = vld [vmem:[%s4 + $0xa8] sm:$0xff]
      %v1029 = vld [vmem:[%s4 + $0xb0] sm:$0xff]
      %v1030 = vld [vmem:[%s4 + $0xb8] sm:$0xff]
      %v1031 = vld [vmem:[%s4 + $0xc0] sm:$0xff]
      %v1032 = vld [vmem:[%s4 + $0xc8] sm:$0xff]
      %v1033 = vld [vmem:[%s4 + $0xd0] sm:$0xff]
      %v1034 = vld [vmem:[%s4 + $0xd8] sm:$0xff]
      %v1035 = vld [vmem:[%s4 + $0xe0] sm:$0xff]
      %v1036 = vld [vmem:[%s4 + $0xe8] sm:$0xff]
      %v1037 = vld [vmem:[%s4 + $0xf0] sm:$0xff]
      %v1038 = vld [vmem:[%s4 + $0xf8] sm:$0xff]
      %v1039 = vld [vmem:[%s4 + $0x100] sm:$0xff]
      %v1040 = vld [vmem:[%s4 + $0x108] sm:$0xff]
      %v1041 = vld [vmem:[%s4 + $0x110] sm:$0xff]
      %v1042 = vld [vmem:[%s4 + $0x118] sm:$0xff]
      %v1043 = vld [vmem:[%s4 + $0x120] sm:$0xff]
      %v1044 = vld [vmem:[%s4 + $0x128] sm:$0xff]
      %v1045 = vld [vmem:[%s4 + $0x130] sm:$0xff]
      %v1046 = vld [vmem:[%s4 + $0x138] sm:$0xff]
      %v1047 = vld [vmem:[%s4 + $0x140] sm:$0xff]
      %v1048 = vld [vmem:[%s4 + $0x148] sm:$0xff]
      %v1049 = vld [vmem:[%s4 + $0x150] sm:$0xff]
      %v1050 = vld [vmem:[%s4 + $0x158] sm:$0xff]
      %v1051 = vld [vmem:[%s4 + $0x160] sm:$0xff]
      %v1052 = vld [vmem:[%s4 + $0x168] sm:$0xff]
      %v1053 = vld [vmem:[%s4 + $0x170] sm:$0xff]
      %v1054 = vld [vmem:[%s4 + $0x178] sm:$0xff]
      %v1056 = vshrl.u32 %v999, 16
      %v1058 = vshll.u32 %v999, 16
      %v1060 = vrot.slane %v1058, 1
      %v1061 = vor.u32 %v1056, %v1060
      %v1063 = vshll.u32 %v1001, 16
      %v1065 = vrot.slane %v1063, 1
      %v1066 = vsel %vm449, %v1061, %v1065
      %v1068 = vshrl.u32 %v1000, 16
      %v1070 = vshll.u32 %v1000, 16
      %v1072 = vrot.slane %v1070, 1
      %v1073 = vor.u32 %v1068, %v1072
      %v1075 = vshll.u32 %v1002, 16
      %v1077 = vrot.slane %v1075, 1
      %v1078 = vsel %vm449, %v1073, %v1077
      %v1079 = vshrl.u32 %v1001, 16
      %v1081 = vor.u32 %v1079, %v1065
      %v1083 = vshll.u32 %v1003, 16
      %v1085 = vrot.slane %v1083, 1
      %v1086 = vsel %vm449, %v1081, %v1085
      %v1087 = vshrl.u32 %v1002, 16
      %v1089 = vor.u32 %v1087, %v1077
      %v1091 = vshll.u32 %v1004, 16
      %v1093 = vrot.slane %v1091, 1
      %v1094 = vsel %vm449, %v1089, %v1093
      %v1095 = vshrl.u32 %v1003, 16
      %v1097 = vor.u32 %v1095, %v1085
      %v1099 = vshll.u32 %v1005, 16
      %v1101 = vrot.slane %v1099, 1
      %v1102 = vsel %vm449, %v1097, %v1101
      %v1103 = vshrl.u32 %v1004, 16
      %v1105 = vor.u32 %v1103, %v1093
      %v1107 = vshll.u32 %v1006, 16
      %v1109 = vrot.slane %v1107, 1
      %v1110 = vsel %vm449, %v1105, %v1109
      %v1111 = vshrl.u32 %v1005, 16
      %v1113 = vor.u32 %v1111, %v1101
      %v1114 = vshrl.u32 %v1006, 16
      %v1116 = vor.u32 %v1114, %v1109
      %v1145 = vunpack.c.l.b16 %v1031
      %v1146 = vunpack.c.h.b16 %v1031
      %v1147 = vunpack.c.l.b16 %v1032
      %v1148 = vunpack.c.h.b16 %v1032
      %v1149 = vunpack.c.l.b16 %v1033
      %v1150 = vunpack.c.h.b16 %v1033
      %v1151 = vunpack.c.l.b16 %v1034
      %v1152 = vunpack.c.h.b16 %v1034
      %v1153 = vunpack.c.l.b16 %v1035
      %v1154 = vunpack.c.h.b16 %v1035
      %v1155 = vunpack.c.l.b16 %v1036
      %v1156 = vunpack.c.h.b16 %v1036
      %v1157 = vunpack.c.l.b16 %v1037
      %v1158 = vunpack.c.h.b16 %v1037
      %v1159 = vunpack.c.l.b16 %v1038
      %v1160 = vunpack.c.h.b16 %v1038
      %v1161 = vunpack.c.l.b16 %v1039
      %v1162 = vunpack.c.h.b16 %v1039
      %v1163 = vunpack.c.l.b16 %v1040
      %v1164 = vunpack.c.h.b16 %v1040
      %v1165 = vunpack.c.l.b16 %v1041
      %v1166 = vunpack.c.h.b16 %v1041
      %v1167 = vunpack.c.l.b16 %v1042
      %v1168 = vunpack.c.h.b16 %v1042
      %v1169 = vunpack.c.l.b16 %v1043
      %v1170 = vunpack.c.h.b16 %v1043
      %v1171 = vunpack.c.l.b16 %v1044
      %v1172 = vunpack.c.h.b16 %v1044
      %v1173 = vunpack.c.l.b16 %v1045
      %v1174 = vunpack.c.h.b16 %v1045
      %v1175 = vunpack.c.l.b16 %v1046
      %v1176 = vunpack.c.h.b16 %v1046
      %v1177 = vunpack.c.l.b16 %v1047
      %v1178 = vunpack.c.h.b16 %v1047
      %v1179 = vunpack.c.l.b16 %v1048
      %v1180 = vunpack.c.h.b16 %v1048
      %v1181 = vunpack.c.l.b16 %v1049
      %v1182 = vunpack.c.h.b16 %v1049
      %v1183 = vunpack.c.l.b16 %v1050
      %v1184 = vunpack.c.h.b16 %v1050
      %v1185 = vunpack.c.l.b16 %v1051
      %v1186 = vunpack.c.h.b16 %v1051
      %v1187 = vunpack.c.l.b16 %v1052
      %v1188 = vunpack.c.h.b16 %v1052
      %v1189 = vunpack.c.l.b16 %v1053
      %v1190 = vunpack.c.h.b16 %v1053
      %v1191 = vunpack.c.l.b16 %v1054
      %v1192 = vunpack.c.h.b16 %v1054
      %v1193 = vpack.c.b16 %v1147, %v1145
      %v1194 = vpack.c.b16 %v1148, %v1146
      %v1195 = vpack.c.b16 %v1151, %v1149
      %v1196 = vpack.c.b16 %v1152, %v1150
      %v1197 = vpack.c.b16 %v1155, %v1153
      %v1198 = vpack.c.b16 %v1156, %v1154
      %v1199 = vpack.c.b16 %v1159, %v1157
      %v1200 = vpack.c.b16 %v1160, %v1158
      %v1201 = vpack.c.b16 %v1163, %v1161
      %v1202 = vpack.c.b16 %v1164, %v1162
      %v1203 = vpack.c.b16 %v1167, %v1165
      %v1204 = vpack.c.b16 %v1168, %v1166
      %v1205 = vpack.c.b16 %v1171, %v1169
      %v1206 = vpack.c.b16 %v1172, %v1170
      %v1207 = vpack.c.b16 %v1175, %v1173
      %v1208 = vpack.c.b16 %v1176, %v1174
      %v1209 = vpack.c.b16 %v1179, %v1177
      %v1210 = vpack.c.b16 %v1180, %v1178
      %v1211 = vpack.c.b16 %v1183, %v1181
      %v1212 = vpack.c.b16 %v1184, %v1182
      %v1213 = vpack.c.b16 %v1187, %v1185
      %v1214 = vpack.c.b16 %v1188, %v1186
      %v1215 = vpack.c.b16 %v1191, %v1189
      %v1216 = vpack.c.b16 %v1192, %v1190
      %v1242 = vsel %vm636, %v1078, 0
      %v1245 = vsel %vm636, %v1094, 0
      %v1248 = vsel %vm636, %v1110, 0
      %v1251 = vsel %vm636, %v1116, 0
      %1253 = vmatprep.subr.bf16.mxu0 %v1194
      %1254 = vmatpush1.bf16.msra.mxu0 %v1193
      %1255 = vmatprep.subr.bf16.mxu0 %v1196
      %1256 = vmatpush1.bf16.msra.mxu0 %v1195
      %1257 = vmatprep.subr.bf16.mxu0 %v1198
      %1258 = vmatpush1.bf16.msra.mxu0 %v1197
      %1259 = vmatprep.subr.bf16.mxu0 %v1200
      %1260 = vmatpush1.bf16.msra.mxu0 %v1199
      %1261 = vmatprep.subr.bf16.mxu0 %v1202
      %1262 = vmatpush1.bf16.msra.mxu0 %v1201
      %1263 = vmatprep.subr.bf16.mxu0 %v1204
      %1264 = vmatpush1.bf16.msra.mxu0 %v1203
      %1265 = vmatprep.subr.bf16.mxu0 %v1206
      %1266 = vmatpush1.bf16.msra.mxu0 %v1205
      %1267 = vmatprep.subr.bf16.mxu0 %v1208
      %1268 = vmatpush1.bf16.msra.mxu0 %v1207
      %1269 = vmatprep.subr.bf16.mxu0 %v1210
      %1270 = vmatpush1.bf16.msra.mxu0 %v1209
      %1271 = vmatprep.subr.bf16.mxu0 %v1212
      %1272 = vmatpush1.bf16.msra.mxu0 %v1211
      %1273 = vmatprep.subr.bf16.mxu0 %v1214
      %1274 = vmatpush1.bf16.msra.mxu0 %v1213
      %1275 = vmatprep.subr.bf16.mxu0 %v1216
      %1276 = vmatpush1.bf16.msra.mxu0 %v1215
      %1277 = vmatprep.subr.bf16.mxu0 0
      %1278 = vmatpush1.bf16.msra.mxu0 0
      %1279 = vmatprep.subr.bf16.mxu0 0
      %1280 = vmatpush1.bf16.msra.mxu0 0
      %1281 = vmatprep.subr.bf16.mxu0 0
      %1282 = vmatpush1.bf16.msra.mxu0 0
      %1283 = vmatprep.subr.bf16.mxu0 0
      %1284 = vmatpush1.bf16.msra.mxu0 0
      %1285 = vmatprep.mubr.bf16.mxu0 %v1242
      %1286 = vmatmul.mubr.bf16.gmra.mrb[0].mxu0 %v1066
      %v1287 = vpop.f32.mrb[0].mxu0
      %v1288 = vadd.f32 0.0, %v1287
      %v1289 = vpop.f32.mrb[0].mxu0
      %v1290 = vadd.f32 0.0, %v1289
      %v1291 = vpop.f32.mrb[0].mxu0
      %v1292 = vadd.f32 0.0, %v1291
      %v1293 = vpop.f32.mrb[0].mxu0
      %v1294 = vadd.f32 0.0, %v1293
      %1295 = vmatprep.mubr.bf16.mxu0 %v1245
      %1296 = vmatmul.mubr.bf16.gmra.mrb[0].mxu0 %v1086
      %v1297 = vpop.f32.mrb[0].mxu0
      %v1298 = vadd.f32 0.0, %v1297
      %v1299 = vpop.f32.mrb[0].mxu0
      %v1300 = vadd.f32 0.0, %v1299
      %v1301 = vpop.f32.mrb[0].mxu0
      %v1302 = vadd.f32 0.0, %v1301
      %v1303 = vpop.f32.mrb[0].mxu0
      %v1304 = vadd.f32 0.0, %v1303
      %1305 = vmatprep.mubr.bf16.mxu0 %v1248
      %1306 = vmatmul.mubr.bf16.gmra.mrb[0].mxu0 %v1102
      %v1307 = vpop.f32.mrb[0].mxu0
      %v1308 = vadd.f32 0.0, %v1307
      %v1309 = vpop.f32.mrb[0].mxu0
      %v1310 = vadd.f32 0.0, %v1309
      %v1311 = vpop.f32.mrb[0].mxu0
      %v1312 = vadd.f32 0.0, %v1311
      %v1313 = vpop.f32.mrb[0].mxu0
      %v1314 = vadd.f32 0.0, %v1313
      %1315 = vmatprep.mubr.bf16.mxu0 %v1251
      %1316 = vmatmul.mubr.bf16.gmra.mrb[0].mxu0 %v1113
      %v1317 = vpop.f32.mrb[0].mxu0
      %v1318 = vadd.f32 0.0, %v1317
      %v1319 = vpop.f32.mrb[0].mxu0
      %v1320 = vadd.f32 0.0, %v1319
      %v1321 = vpop.f32.mrb[0].mxu0
      %v1322 = vadd.f32 0.0, %v1321
      %v1323 = vpop.f32.mrb[0].mxu0
      %v1324 = vadd.f32 0.0, %v1323
      %1325 = vdwg.mxu0
      %v1350 = vunpack.c.l.b16 %v1007
      %v1351 = vunpack.c.h.b16 %v1007
      %v1352 = vunpack.c.l.b16 %v1008
      %v1353 = vunpack.c.h.b16 %v1008
      %v1354 = vunpack.c.l.b16 %v1009
      %v1355 = vunpack.c.h.b16 %v1009
      %v1356 = vunpack.c.l.b16 %v1010
      %v1357 = vunpack.c.h.b16 %v1010
      %v1358 = vunpack.c.l.b16 %v1011
      %v1359 = vunpack.c.h.b16 %v1011
      %v1360 = vunpack.c.l.b16 %v1012
      %v1361 = vunpack.c.h.b16 %v1012
      %v1362 = vunpack.c.l.b16 %v1013
      %v1363 = vunpack.c.h.b16 %v1013
      %v1364 = vunpack.c.l.b16 %v1014
      %v1365 = vunpack.c.h.b16 %v1014
      %v1366 = vunpack.c.l.b16 %v1015
      %v1367 = vunpack.c.h.b16 %v1015
      %v1368 = vunpack.c.l.b16 %v1016
      %v1369 = vunpack.c.h.b16 %v1016
      %v1370 = vunpack.c.l.b16 %v1017
      %v1371 = vunpack.c.h.b16 %v1017
      %v1372 = vunpack.c.l.b16 %v1018
      %v1373 = vunpack.c.h.b16 %v1018
      %v1374 = vunpack.c.l.b16 %v1019
      %v1375 = vunpack.c.h.b16 %v1019
      %v1376 = vunpack.c.l.b16 %v1020
      %v1377 = vunpack.c.h.b16 %v1020
      %v1378 = vunpack.c.l.b16 %v1021
      %v1379 = vunpack.c.h.b16 %v1021
      %v1380 = vunpack.c.l.b16 %v1022
      %v1381 = vunpack.c.h.b16 %v1022
      %v1382 = vunpack.c.l.b16 %v1023
      %v1383 = vunpack.c.h.b16 %v1023
      %v1384 = vunpack.c.l.b16 %v1024
      %v1385 = vunpack.c.h.b16 %v1024
      %v1386 = vunpack.c.l.b16 %v1025
      %v1387 = vunpack.c.h.b16 %v1025
      %v1388 = vunpack.c.l.b16 %v1026
      %v1389 = vunpack.c.h.b16 %v1026
      %v1390 = vunpack.c.l.b16 %v1027
      %v1391 = vunpack.c.h.b16 %v1027
      %v1392 = vunpack.c.l.b16 %v1028
      %v1393 = vunpack.c.h.b16 %v1028
      %v1394 = vunpack.c.l.b16 %v1029
      %v1395 = vunpack.c.h.b16 %v1029
      %v1396 = vunpack.c.l.b16 %v1030
      %v1397 = vunpack.c.h.b16 %v1030
      %v1398 = vpack.c.b16 %v1352, %v1350
      %v1399 = vpack.c.b16 %v1353, %v1351
      %v1400 = vpack.c.b16 %v1356, %v1354
      %v1401 = vpack.c.b16 %v1357, %v1355
      %v1402 = vpack.c.b16 %v1360, %v1358
      %v1403 = vpack.c.b16 %v1361, %v1359
      %v1404 = vpack.c.b16 %v1364, %v1362
      %v1405 = vpack.c.b16 %v1365, %v1363
      %v1406 = vpack.c.b16 %v1368, %v1366
      %v1407 = vpack.c.b16 %v1369, %v1367
      %v1408 = vpack.c.b16 %v1372, %v1370
      %v1409 = vpack.c.b16 %v1373, %v1371
      %v1410 = vpack.c.b16 %v1376, %v1374
      %v1411 = vpack.c.b16 %v1377, %v1375
      %v1412 = vpack.c.b16 %v1380, %v1378
      %v1413 = vpack.c.b16 %v1381, %v1379
      %v1414 = vpack.c.b16 %v1384, %v1382
      %v1415 = vpack.c.b16 %v1385, %v1383
      %v1416 = vpack.c.b16 %v1388, %v1386
      %v1417 = vpack.c.b16 %v1389, %v1387
      %v1418 = vpack.c.b16 %v1392, %v1390
      %v1419 = vpack.c.b16 %v1393, %v1391
      %v1420 = vpack.c.b16 %v1396, %v1394
      %v1421 = vpack.c.b16 %v1397, %v1395
      %v1446 = vsel %vm636, %v1000, 0
      %v1448 = vsel %vm636, %v1002, 0
      %v1450 = vsel %vm636, %v1004, 0
      %v1452 = vsel %vm636, %v1006, 0
      %1454 = vmatprep.subr.bf16.mxu0 %v1399
      %1455 = vmatpush1.bf16.msra.mxu0 %v1398
      %1456 = vmatprep.subr.bf16.mxu0 %v1401
      %1457 = vmatpush1.bf16.msra.mxu0 %v1400
      %1458 = vmatprep.subr.bf16.mxu0 %v1403
      %1459 = vmatpush1.bf16.msra.mxu0 %v1402
      %1460 = vmatprep.subr.bf16.mxu0 %v1405
      %1461 = vmatpush1.bf16.msra.mxu0 %v1404
      %1462 = vmatprep.subr.bf16.mxu0 %v1407
      %1463 = vmatpush1.bf16.msra.mxu0 %v1406
      %1464 = vmatprep.subr.bf16.mxu0 %v1409
      %1465 = vmatpush1.bf16.msra.mxu0 %v1408
      %1466 = vmatprep.subr.bf16.mxu0 %v1411
      %1467 = vmatpush1.bf16.msra.mxu0 %v1410
      %1468 = vmatprep.subr.bf16.mxu0 %v1413
      %1469 = vmatpush1.bf16.msra.mxu0 %v1412
      %1470 = vmatprep.subr.bf16.mxu0 %v1415
      %1471 = vmatpush1.bf16.msra.mxu0 %v1414
      %1472 = vmatprep.subr.bf16.mxu0 %v1417
      %1473 = vmatpush1.bf16.msra.mxu0 %v1416
      %1474 = vmatprep.subr.bf16.mxu0 %v1419
      %1475 = vmatpush1.bf16.msra.mxu0 %v1418
      %1476 = vmatprep.subr.bf16.mxu0 %v1421
      %1477 = vmatpush1.bf16.msra.mxu0 %v1420
      %1478 = vmatprep.subr.bf16.mxu0 0
      %1479 = vmatpush1.bf16.msra.mxu0 0
      %1480 = vmatprep.subr.bf16.mxu0 0
      %1481 = vmatpush1.bf16.msra.mxu0 0
      %1482 = vmatprep.subr.bf16.mxu0 0
      %1483 = vmatpush1.bf16.msra.mxu0 0
      %1484 = vmatprep.subr.bf16.mxu0 0
      %1485 = vmatpush1.bf16.msra.mxu0 0
      %1486 = vmatprep.mubr.bf16.mxu0 %v1446
      %1487 = vmatmul.mubr.bf16.gmra.mrb[0].mxu0 %v999
      %v1488 = vpop.f32.mrb[0].mxu0
      %v1489 = vadd.f32 %v1288, %v1488
      %v1490 = vpop.f32.mrb[0].mxu0
      %v1491 = vadd.f32 %v1290, %v1490
      %v1492 = vpop.f32.mrb[0].mxu0
      %v1493 = vadd.f32 %v1292, %v1492
      %v1494 = vpop.f32.mrb[0].mxu0
      %v1495 = vadd.f32 %v1294, %v1494
      %1496 = vmatprep.mubr.bf16.mxu0 %v1448
      %1497 = vmatmul.mubr.bf16.gmra.mrb[0].mxu0 %v1001
      %v1498 = vpop.f32.mrb[0].mxu0
      %v1499 = vadd.f32 %v1298, %v1498
      %v1500 = vpop.f32.mrb[0].mxu0
      %v1501 = vadd.f32 %v1300, %v1500
      %v1502 = vpop.f32.mrb[0].mxu0
      %v1503 = vadd.f32 %v1302, %v1502
      %v1504 = vpop.f32.mrb[0].mxu0
      %v1505 = vadd.f32 %v1304, %v1504
      %1506 = vmatprep.mubr.bf16.mxu0 %v1450
      %1507 = vmatmul.mubr.bf16.gmra.mrb[0].mxu0 %v1003
      %v1508 = vpop.f32.mrb[0].mxu0
      %v1509 = vadd.f32 %v1308, %v1508
      %v1510 = vpop.f32.mrb[0].mxu0
      %v1511 = vadd.f32 %v1310, %v1510
      %v1512 = vpop.f32.mrb[0].mxu0
      %v1513 = vadd.f32 %v1312, %v1512
      %v1514 = vpop.f32.mrb[0].mxu0
      %v1515 = vadd.f32 %v1314, %v1514
      %1516 = vmatprep.mubr.bf16.mxu0 %v1452
      %1517 = vmatmul.mubr.bf16.gmra.mrb[0].mxu0 %v1005
      %v1518 = vpop.f32.mrb[0].mxu0
      %v1519 = vadd.f32 %v1318, %v1518
      %v1520 = vpop.f32.mrb[0].mxu0
      %v1521 = vadd.f32 %v1320, %v1520
      %v1522 = vpop.f32.mrb[0].mxu0
      %v1523 = vadd.f32 %v1322, %v1522
      %v1524 = vpop.f32.mrb[0].mxu0
      %v1525 = vadd.f32 %v1324, %v1524
      %1526 = vdwg.mxu0
      %v1527 = vld [vmem:[%s5] sm:$0x3]
      %v1529 = vlaneseq
      %v1530 = vshrl.u32 %v1529, 7
      %v1531 = vsub.s32 0, %v1530
      %v1532 = vrot.slane %v1527, %v1531
      %v1533 = vlaneseq
      %v1534 = vshrl.u32 %v1533, 7
      %v1535 = vsub.s32 1, %v1534
      %v1536 = vrot.slane %v1527, %v1535
      %v1539 = vmul.f32 %v1489, %v1532
      %v1540 = vmul.f32 %v1491, %v1536
      %v1541 = vmul.f32 %v1493, %v1532
      %v1542 = vmul.f32 %v1495, %v1536
      %v1543 = vmul.f32 %v1499, %v1532
      %v1544 = vmul.f32 %v1501, %v1536
      %v1545 = vmul.f32 %v1503, %v1532
      %v1546 = vmul.f32 %v1505, %v1536
      %v1547 = vmul.f32 %v1509, %v1532
      %v1548 = vmul.f32 %v1511, %v1536
      %v1549 = vmul.f32 %v1513, %v1532
      %v1550 = vmul.f32 %v1515, %v1536
      %v1551 = vmul.f32 %v1519, %v1532
      %v1552 = vmul.f32 %v1521, %v1536
      %v1553 = vmul.f32 %v1523, %v1532
      %v1554 = vmul.f32 %v1525, %v1536
      %v1555 = vld [vmem:[%s6] sm:$0x3]
      %v1557 = vlaneseq
      %v1558 = vshrl.u32 %v1557, 7
      %v1559 = vsub.s32 0, %v1558
      %v1560 = vrot.slane %v1555, %v1559
      %v1561 = vlaneseq
      %v1562 = vshrl.u32 %v1561, 7
      %v1563 = vsub.s32 1, %v1562
      %v1564 = vrot.slane %v1555, %v1563
      %v1567 = vadd.f32 %v1539, %v1560
      %v1568 = vadd.f32 %v1540, %v1564
      %v1569 = vadd.f32 %v1541, %v1560
      %v1570 = vadd.f32 %v1542, %v1564
      %v1571 = vadd.f32 %v1543, %v1560
      %v1572 = vadd.f32 %v1544, %v1564
      %v1573 = vadd.f32 %v1545, %v1560
      %v1574 = vadd.f32 %v1546, %v1564
      %v1575 = vadd.f32 %v1547, %v1560
      %v1576 = vadd.f32 %v1548, %v1564
      %v1577 = vadd.f32 %v1549, %v1560
      %v1578 = vadd.f32 %v1550, %v1564
      %v1579 = vadd.f32 %v1551, %v1560
      %v1580 = vadd.f32 %v1552, %v1564
      %v1581 = vadd.f32 %v1553, %v1560
      %v1582 = vadd.f32 %v1554, %v1564
      %v1583 = vmax.f32 %v1567, 0.0
      %v1584 = vmax.f32 %v1568, 0.0
      %v1585 = vmax.f32 %v1569, 0.0
      %v1586 = vmax.f32 %v1570, 0.0
      %v1587 = vmax.f32 %v1571, 0.0
      %v1588 = vmax.f32 %v1572, 0.0
      %v1589 = vmax.f32 %v1573, 0.0
      %v1590 = vmax.f32 %v1574, 0.0
      %v1591 = vmax.f32 %v1575, 0.0
      %v1592 = vmax.f32 %v1576, 0.0
      %v1593 = vmax.f32 %v1577, 0.0
      %v1594 = vmax.f32 %v1578, 0.0
      %v1595 = vmax.f32 %v1579, 0.0
      %v1596 = vmax.f32 %v1580, 0.0
      %v1597 = vmax.f32 %v1581, 0.0
      %v1598 = vmax.f32 %v1582, 0.0
      %v1599 = vpack.c.bf16 %v1585, %v1583
      %v1600 = vpack.c.bf16 %v1586, %v1584
      %v1601 = vpack.c.bf16 %v1589, %v1587
      %v1602 = vpack.c.bf16 %v1590, %v1588
      %v1603 = vpack.c.bf16 %v1593, %v1591
      %v1604 = vpack.c.bf16 %v1594, %v1592
      %v1605 = vpack.c.bf16 %v1597, %v1595
      %v1606 = vpack.c.bf16 %v1598, %v1596
      %v1607 = vld [vmem:[%s7] sm:$0xff]
      %v1608 = vld [vmem:[%s7 + $0x8] sm:$0xff]
      %v1609 = vld [vmem:[%s7 + $0x10] sm:$0xff]
      %v1610 = vld [vmem:[%s7 + $0x18] sm:$0xff]
      %v1611 = vld [vmem:[%s7 + $0x20] sm:$0xff]
      %v1612 = vld [vmem:[%s7 + $0x28] sm:$0xff]
      %v1613 = vld [vmem:[%s7 + $0x30] sm:$0xff]
      %v1614 = vld [vmem:[%s7 + $0x38] sm:$0xff]
      %v1615 = vld [vmem:[%s7 + $0x40] sm:$0xff]
      %v1616 = vld [vmem:[%s7 + $0x48] sm:$0xff]
      %v1617 = vld [vmem:[%s7 + $0x50] sm:$0xff]
      %v1618 = vld [vmem:[%s7 + $0x58] sm:$0xff]
      %v1619 = vld [vmem:[%s7 + $0x60] sm:$0xff]
      %v1620 = vld [vmem:[%s7 + $0x68] sm:$0xff]
      %v1621 = vld [vmem:[%s7 + $0x70] sm:$0xff]
      %v1622 = vld [vmem:[%s7 + $0x78] sm:$0xff]
      %v1623 = vld [vmem:[%s7 + $0x80] sm:$0xff]
      %v1624 = vld [vmem:[%s7 + $0x88] sm:$0xff]
      %v1625 = vld [vmem:[%s7 + $0x90] sm:$0xff]
      %v1626 = vld [vmem:[%s7 + $0x98] sm:$0xff]
      %v1627 = vld [vmem:[%s7 + $0xa0] sm:$0xff]
      %v1628 = vld [vmem:[%s7 + $0xa8] sm:$0xff]
      %v1629 = vld [vmem:[%s7 + $0xb0] sm:$0xff]
      %v1630 = vld [vmem:[%s7 + $0xb8] sm:$0xff]
      %v1631 = vld [vmem:[%s7 + $0xc0] sm:$0xff]
      %v1632 = vld [vmem:[%s7 + $0xc8] sm:$0xff]
      %v1633 = vld [vmem:[%s7 + $0xd0] sm:$0xff]
      %v1634 = vld [vmem:[%s7 + $0xd8] sm:$0xff]
      %v1635 = vld [vmem:[%s7 + $0xe0] sm:$0xff]
      %v1636 = vld [vmem:[%s7 + $0xe8] sm:$0xff]
      %v1637 = vld [vmem:[%s7 + $0xf0] sm:$0xff]
      %v1638 = vld [vmem:[%s7 + $0xf8] sm:$0xff]
      %v1639 = vld [vmem:[%s7 + $0x100] sm:$0xff]
      %v1640 = vld [vmem:[%s7 + $0x108] sm:$0xff]
      %v1641 = vld [vmem:[%s7 + $0x110] sm:$0xff]
      %v1642 = vld [vmem:[%s7 + $0x118] sm:$0xff]
      %v1643 = vld [vmem:[%s7 + $0x120] sm:$0xff]
      %v1644 = vld [vmem:[%s7 + $0x128] sm:$0xff]
      %v1645 = vld [vmem:[%s7 + $0x130] sm:$0xff]
      %v1646 = vld [vmem:[%s7 + $0x138] sm:$0xff]
      %v1647 = vld [vmem:[%s7 + $0x140] sm:$0xff]
      %v1648 = vld [vmem:[%s7 + $0x148] sm:$0xff]
      %v1649 = vld [vmem:[%s7 + $0x150] sm:$0xff]
      %v1650 = vld [vmem:[%s7 + $0x158] sm:$0xff]
      %v1651 = vld [vmem:[%s7 + $0x160] sm:$0xff]
      %v1652 = vld [vmem:[%s7 + $0x168] sm:$0xff]
      %v1653 = vld [vmem:[%s7 + $0x170] sm:$0xff]
      %v1654 = vld [vmem:[%s7 + $0x178] sm:$0xff]
      %v1656 = vshrl.u32 %v1599, 16
      %v1658 = vshll.u32 %v1599, 16
      %v1660 = vrot.slane %v1658, 1
      %v1661 = vor.u32 %v1656, %v1660
      %v1663 = vshll.u32 %v1601, 16
      %v1665 = vrot.slane %v1663, 1
      %v1666 = vsel %vm449, %v1661, %v1665
      %v1668 = vshrl.u32 %v1600, 16
      %v1670 = vshll.u32 %v1600, 16
      %v1672 = vrot.slane %v1670, 1
      %v1673 = vor.u32 %v1668, %v1672
      %v1675 = vshll.u32 %v1602, 16
      %v1677 = vrot.slane %v1675, 1
      %v1678 = vsel %vm449, %v1673, %v1677
      %v1679 = vshrl.u32 %v1601, 16
      %v1681 = vor.u32 %v1679, %v1665
      %v1683 = vshll.u32 %v1603, 16
      %v1685 = vrot.slane %v1683, 1
      %v1686 = vsel %vm449, %v1681, %v1685
      %v1687 = vshrl.u32 %v1602, 16
      %v1689 = vor.u32 %v1687, %v1677
      %v1691 = vshll.u32 %v1604, 16
      %v1693 = vrot.slane %v1691, 1
      %v1694 = vsel %vm449, %v1689, %v1693
      %v1695 = vshrl.u32 %v1603, 16
      %v1697 = vor.u32 %v1695, %v1685
      %v1699 = vshll.u32 %v1605, 16
      %v1701 = vrot.slane %v1699, 1
      %v1702 = vsel %vm449, %v1697, %v1701
      %v1703 = vshrl.u32 %v1604, 16
      %v1705 = vor.u32 %v1703, %v1693
      %v1707 = vshll.u32 %v1606, 16
      %v1709 = vrot.slane %v1707, 1
      %v1710 = vsel %vm449, %v1705, %v1709
      %v1711 = vshrl.u32 %v1605, 16
      %v1713 = vor.u32 %v1711, %v1701
      %v1714 = vshrl.u32 %v1606, 16
      %v1716 = vor.u32 %v1714, %v1709
      %v1745 = vunpack.c.l.b16 %v1631
      %v1746 = vunpack.c.h.b16 %v1631
      %v1747 = vunpack.c.l.b16 %v1632
      %v1748 = vunpack.c.h.b16 %v1632
      %v1749 = vunpack.c.l.b16 %v1633
      %v1750 = vunpack.c.h.b16 %v1633
      %v1751 = vunpack.c.l.b16 %v1634
      %v1752 = vunpack.c.h.b16 %v1634
      %v1753 = vunpack.c.l.b16 %v1635
      %v1754 = vunpack.c.h.b16 %v1635
      %v1755 = vunpack.c.l.b16 %v1636
      %v1756 = vunpack.c.h.b16 %v1636
      %v1757 = vunpack.c.l.b16 %v1637
      %v1758 = vunpack.c.h.b16 %v1637
      %v1759 = vunpack.c.l.b16 %v1638
      %v1760 = vunpack.c.h.b16 %v1638
      %v1761 = vunpack.c.l.b16 %v1639
      %v1762 = vunpack.c.h.b16 %v1639
      %v1763 = vunpack.c.l.b16 %v1640
      %v1764 = vunpack.c.h.b16 %v1640
      %v1765 = vunpack.c.l.b16 %v1641
      %v1766 = vunpack.c.h.b16 %v1641
      %v1767 = vunpack.c.l.b16 %v1642
      %v1768 = vunpack.c.h.b16 %v1642
      %v1769 = vunpack.c.l.b16 %v1643
      %v1770 = vunpack.c.h.b16 %v1643
      %v1771 = vunpack.c.l.b16 %v1644
      %v1772 = vunpack.c.h.b16 %v1644
      %v1773 = vunpack.c.l.b16 %v1645
      %v1774 = vunpack.c.h.b16 %v1645
      %v1775 = vunpack.c.l.b16 %v1646
      %v1776 = vunpack.c.h.b16 %v1646
      %v1777 = vunpack.c.l.b16 %v1647
      %v1778 = vunpack.c.h.b16 %v1647
      %v1779 = vunpack.c.l.b16 %v1648
      %v1780 = vunpack.c.h.b16 %v1648
      %v1781 = vunpack.c.l.b16 %v1649
      %v1782 = vunpack.c.h.b16 %v1649
      %v1783 = vunpack.c.l.b16 %v1650
      %v1784 = vunpack.c.h.b16 %v1650
      %v1785 = vunpack.c.l.b16 %v1651
      %v1786 = vunpack.c.h.b16 %v1651
      %v1787 = vunpack.c.l.b16 %v1652
      %v1788 = vunpack.c.h.b16 %v1652
      %v1789 = vunpack.c.l.b16 %v1653
      %v1790 = vunpack.c.h.b16 %v1653
      %v1791 = vunpack.c.l.b16 %v1654
      %v1792 = vunpack.c.h.b16 %v1654
      %v1793 = vpack.c.b16 %v1747, %v1745
      %v1794 = vpack.c.b16 %v1748, %v1746
      %v1795 = vpack.c.b16 %v1751, %v1749
      %v1796 = vpack.c.b16 %v1752, %v1750
      %v1797 = vpack.c.b16 %v1755, %v1753
      %v1798 = vpack.c.b16 %v1756, %v1754
      %v1799 = vpack.c.b16 %v1759, %v1757
      %v1800 = vpack.c.b16 %v1760, %v1758
      %v1801 = vpack.c.b16 %v1763, %v1761
      %v1802 = vpack.c.b16 %v1764, %v1762
      %v1803 = vpack.c.b16 %v1767, %v1765
      %v1804 = vpack.c.b16 %v1768, %v1766
      %v1805 = vpack.c.b16 %v1771, %v1769
      %v1806 = vpack.c.b16 %v1772, %v1770
      %v1807 = vpack.c.b16 %v1775, %v1773
      %v1808 = vpack.c.b16 %v1776, %v1774
      %v1809 = vpack.c.b16 %v1779, %v1777
      %v1810 = vpack.c.b16 %v1780, %v1778
      %v1811 = vpack.c.b16 %v1783, %v1781
      %v1812 = vpack.c.b16 %v1784, %v1782
      %v1813 = vpack.c.b16 %v1787, %v1785
      %v1814 = vpack.c.b16 %v1788, %v1786
      %v1815 = vpack.c.b16 %v1791, %v1789
      %v1816 = vpack.c.b16 %v1792, %v1790
      %v1842 = vsel %vm636, %v1678, 0
      %v1845 = vsel %vm636, %v1694, 0
      %v1848 = vsel %vm636, %v1710, 0
      %v1851 = vsel %vm636, %v1716, 0
      %1853 = vmatprep.subr.bf16.mxu0 %v1794
      %1854 = vmatpush1.bf16.msra.mxu0 %v1793
      %1855 = vmatprep.subr.bf16.mxu0 %v1796
      %1856 = vmatpush1.bf16.msra.mxu0 %v1795
      %1857 = vmatprep.subr.bf16.mxu0 %v1798
      %1858 = vmatpush1.bf16.msra.mxu0 %v1797
      %1859 = vmatprep.subr.bf16.mxu0 %v1800
      %1860 = vmatpush1.bf16.msra.mxu0 %v1799
      %1861 = vmatprep.subr.bf16.mxu0 %v1802
      %1862 = vmatpush1.bf16.msra.mxu0 %v1801
      %1863 = vmatprep.subr.bf16.mxu0 %v1804
      %1864 = vmatpush1.bf16.msra.mxu0 %v1803
      %1865 = vmatprep.subr.bf16.mxu0 %v1806
      %1866 = vmatpush1.bf16.msra.mxu0 %v1805
      %1867 = vmatprep.subr.bf16.mxu0 %v1808
      %1868 = vmatpush1.bf16.msra.mxu0 %v1807
      %1869 = vmatprep.subr.bf16.mxu0 %v1810
      %1870 = vmatpush1.bf16.msra.mxu0 %v1809
      %1871 = vmatprep.subr.bf16.mxu0 %v1812
      %1872 = vmatpush1.bf16.msra.mxu0 %v1811
      %1873 = vmatprep.subr.bf16.mxu0 %v1814
      %1874 = vmatpush1.bf16.msra.mxu0 %v1813
      %1875 = vmatprep.subr.bf16.mxu0 %v1816
      %1876 = vmatpush1.bf16.msra.mxu0 %v1815
      %1877 = vmatprep.subr.bf16.mxu0 0
      %1878 = vmatpush1.bf16.msra.mxu0 0
      %1879 = vmatprep.subr.bf16.mxu0 0
      %1880 = vmatpush1.bf16.msra.mxu0 0
      %1881 = vmatprep.subr.bf16.mxu0 0
      %1882 = vmatpush1.bf16.msra.mxu0 0
      %1883 = vmatprep.subr.bf16.mxu0 0
      %1884 = vmatpush1.bf16.msra.mxu0 0
      %1885 = vmatprep.mubr.bf16.mxu0 %v1842
      %1886 = vmatmul.mubr.bf16.gmra.mrb[0].mxu0 %v1666
      %v1887 = vpop.f32.mrb[0].mxu0
      %v1888 = vadd.f32 0.0, %v1887
      %v1889 = vpop.f32.mrb[0].mxu0
      %v1890 = vadd.f32 0.0, %v1889
      %v1891 = vpop.f32.mrb[0].mxu0
      %v1892 = vadd.f32 0.0, %v1891
      %v1893 = vpop.f32.mrb[0].mxu0
      %v1894 = vadd.f32 0.0, %v1893
      %1895 = vmatprep.mubr.bf16.mxu0 %v1845
      %1896 = vmatmul.mubr.bf16.gmra.mrb[0].mxu0 %v1686
      %v1897 = vpop.f32.mrb[0].mxu0
      %v1898 = vadd.f32 0.0, %v1897
      %v1899 = vpop.f32.mrb[0].mxu0
      %v1900 = vadd.f32 0.0, %v1899
      %v1901 = vpop.f32.mrb[0].mxu0
      %v1902 = vadd.f32 0.0, %v1901
      %v1903 = vpop.f32.mrb[0].mxu0
      %v1904 = vadd.f32 0.0, %v1903
      %1905 = vmatprep.mubr.bf16.mxu0 %v1848
      %1906 = vmatmul.mubr.bf16.gmra.mrb[0].mxu0 %v1702
      %v1907 = vpop.f32.mrb[0].mxu0
      %v1908 = vadd.f32 0.0, %v1907
      %v1909 = vpop.f32.mrb[0].mxu0
      %v1910 = vadd.f32 0.0, %v1909
      %v1911 = vpop.f32.mrb[0].mxu0
      %v1912 = vadd.f32 0.0, %v1911
      %v1913 = vpop.f32.mrb[0].mxu0
      %v1914 = vadd.f32 0.0, %v1913
      %1915 = vmatprep.mubr.bf16.mxu0 %v1851
      %1916 = vmatmul.mubr.bf16.gmra.mrb[0].mxu0 %v1713
      %v1917 = vpop.f32.mrb[0].mxu0
      %v1918 = vadd.f32 0.0, %v1917
      %v1919 = vpop.f32.mrb[0].mxu0
      %v1920 = vadd.f32 0.0, %v1919
      %v1921 = vpop.f32.mrb[0].mxu0
      %v1922 = vadd.f32 0.0, %v1921
      %v1923 = vpop.f32.mrb[0].mxu0
      %v1924 = vadd.f32 0.0, %v1923
      %1925 = vdwg.mxu0
      %v1950 = vunpack.c.l.b16 %v1607
      %v1951 = vunpack.c.h.b16 %v1607
      %v1952 = vunpack.c.l.b16 %v1608
      %v1953 = vunpack.c.h.b16 %v1608
      %v1954 = vunpack.c.l.b16 %v1609
      %v1955 = vunpack.c.h.b16 %v1609
      %v1956 = vunpack.c.l.b16 %v1610
      %v1957 = vunpack.c.h.b16 %v1610
      %v1958 = vunpack.c.l.b16 %v1611
      %v1959 = vunpack.c.h.b16 %v1611
      %v1960 = vunpack.c.l.b16 %v1612
      %v1961 = vunpack.c.h.b16 %v1612
      %v1962 = vunpack.c.l.b16 %v1613
      %v1963 = vunpack.c.h.b16 %v1613
      %v1964 = vunpack.c.l.b16 %v1614
      %v1965 = vunpack.c.h.b16 %v1614
      %v1966 = vunpack.c.l.b16 %v1615
      %v1967 = vunpack.c.h.b16 %v1615
      %v1968 = vunpack.c.l.b16 %v1616
      %v1969 = vunpack.c.h.b16 %v1616
      %v1970 = vunpack.c.l.b16 %v1617
      %v1971 = vunpack.c.h.b16 %v1617
      %v1972 = vunpack.c.l.b16 %v1618
      %v1973 = vunpack.c.h.b16 %v1618
      %v1974 = vunpack.c.l.b16 %v1619
      %v1975 = vunpack.c.h.b16 %v1619
      %v1976 = vunpack.c.l.b16 %v1620
      %v1977 = vunpack.c.h.b16 %v1620
      %v1978 = vunpack.c.l.b16 %v1621
      %v1979 = vunpack.c.h.b16 %v1621
      %v1980 = vunpack.c.l.b16 %v1622
      %v1981 = vunpack.c.h.b16 %v1622
      %v1982 = vunpack.c.l.b16 %v1623
      %v1983 = vunpack.c.h.b16 %v1623
      %v1984 = vunpack.c.l.b16 %v1624
      %v1985 = vunpack.c.h.b16 %v1624
      %v1986 = vunpack.c.l.b16 %v1625
      %v1987 = vunpack.c.h.b16 %v1625
      %v1988 = vunpack.c.l.b16 %v1626
      %v1989 = vunpack.c.h.b16 %v1626
      %v1990 = vunpack.c.l.b16 %v1627
      %v1991 = vunpack.c.h.b16 %v1627
      %v1992 = vunpack.c.l.b16 %v1628
      %v1993 = vunpack.c.h.b16 %v1628
      %v1994 = vunpack.c.l.b16 %v1629
      %v1995 = vunpack.c.h.b16 %v1629
      %v1996 = vunpack.c.l.b16 %v1630
      %v1997 = vunpack.c.h.b16 %v1630
      %v1998 = vpack.c.b16 %v1952, %v1950
      %v1999 = vpack.c.b16 %v1953, %v1951
      %v2000 = vpack.c.b16 %v1956, %v1954
      %v2001 = vpack.c.b16 %v1957, %v1955
      %v2002 = vpack.c.b16 %v1960, %v1958
      %v2003 = vpack.c.b16 %v1961, %v1959
      %v2004 = vpack.c.b16 %v1964, %v1962
      %v2005 = vpack.c.b16 %v1965, %v1963
      %v2006 = vpack.c.b16 %v1968, %v1966
      %v2007 = vpack.c.b16 %v1969, %v1967
      %v2008 = vpack.c.b16 %v1972, %v1970
      %v2009 = vpack.c.b16 %v1973, %v1971
      %v2010 = vpack.c.b16 %v1976, %v1974
      %v2011 = vpack.c.b16 %v1977, %v1975
      %v2012 = vpack.c.b16 %v1980, %v1978
      %v2013 = vpack.c.b16 %v1981, %v1979
      %v2014 = vpack.c.b16 %v1984, %v1982
      %v2015 = vpack.c.b16 %v1985, %v1983
      %v2016 = vpack.c.b16 %v1988, %v1986
      %v2017 = vpack.c.b16 %v1989, %v1987
      %v2018 = vpack.c.b16 %v1992, %v1990
      %v2019 = vpack.c.b16 %v1993, %v1991
      %v2020 = vpack.c.b16 %v1996, %v1994
      %v2021 = vpack.c.b16 %v1997, %v1995
      %v2046 = vsel %vm636, %v1600, 0
      %v2048 = vsel %vm636, %v1602, 0
      %v2050 = vsel %vm636, %v1604, 0
      %v2052 = vsel %vm636, %v1606, 0
      %2054 = vmatprep.subr.bf16.mxu0 %v1999
      %2055 = vmatpush1.bf16.msra.mxu0 %v1998
      %2056 = vmatprep.subr.bf16.mxu0 %v2001
      %2057 = vmatpush1.bf16.msra.mxu0 %v2000
      %2058 = vmatprep.subr.bf16.mxu0 %v2003
      %2059 = vmatpush1.bf16.msra.mxu0 %v2002
      %2060 = vmatprep.subr.bf16.mxu0 %v2005
      %2061 = vmatpush1.bf16.msra.mxu0 %v2004
      %2062 = vmatprep.subr.bf16.mxu0 %v2007
      %2063 = vmatpush1.bf16.msra.mxu0 %v2006
      %2064 = vmatprep.subr.bf16.mxu0 %v2009
      %2065 = vmatpush1.bf16.msra.mxu0 %v2008
      %2066 = vmatprep.subr.bf16.mxu0 %v2011
      %2067 = vmatpush1.bf16.msra.mxu0 %v2010
      %2068 = vmatprep.subr.bf16.mxu0 %v2013
      %2069 = vmatpush1.bf16.msra.mxu0 %v2012
      %2070 = vmatprep.subr.bf16.mxu0 %v2015
      %2071 = vmatpush1.bf16.msra.mxu0 %v2014
      %2072 = vmatprep.subr.bf16.mxu0 %v2017
      %2073 = vmatpush1.bf16.msra.mxu0 %v2016
      %2074 = vmatprep.subr.bf16.mxu0 %v2019
      %2075 = vmatpush1.bf16.msra.mxu0 %v2018
      %2076 = vmatprep.subr.bf16.mxu0 %v2021
      %2077 = vmatpush1.bf16.msra.mxu0 %v2020
      %2078 = vmatprep.subr.bf16.mxu0 0
      %2079 = vmatpush1.bf16.msra.mxu0 0
      %2080 = vmatprep.subr.bf16.mxu0 0
      %2081 = vmatpush1.bf16.msra.mxu0 0
      %2082 = vmatprep.subr.bf16.mxu0 0
      %2083 = vmatpush1.bf16.msra.mxu0 0
      %2084 = vmatprep.subr.bf16.mxu0 0
      %2085 = vmatpush1.bf16.msra.mxu0 0
      %2086 = vmatprep.mubr.bf16.mxu0 %v2046
      %2087 = vmatmul.mubr.bf16.gmra.mrb[0].mxu0 %v1599
      %v2088 = vpop.f32.mrb[0].mxu0
      %v2089 = vadd.f32 %v1888, %v2088
      %v2090 = vpop.f32.mrb[0].mxu0
      %v2091 = vadd.f32 %v1890, %v2090
      %v2092 = vpop.f32.mrb[0].mxu0
      %v2093 = vadd.f32 %v1892, %v2092
      %v2094 = vpop.f32.mrb[0].mxu0
      %v2095 = vadd.f32 %v1894, %v2094
      %2096 = vmatprep.mubr.bf16.mxu0 %v2048
      %2097 = vmatmul.mubr.bf16.gmra.mrb[0].mxu0 %v1601
      %v2098 = vpop.f32.mrb[0].mxu0
      %v2099 = vadd.f32 %v1898, %v2098
      %v2100 = vpop.f32.mrb[0].mxu0
      %v2101 = vadd.f32 %v1900, %v2100
      %v2102 = vpop.f32.mrb[0].mxu0
      %v2103 = vadd.f32 %v1902, %v2102
      %v2104 = vpop.f32.mrb[0].mxu0
      %v2105 = vadd.f32 %v1904, %v2104
      %2106 = vmatprep.mubr.bf16.mxu0 %v2050
      %2107 = vmatmul.mubr.bf16.gmra.mrb[0].mxu0 %v1603
      %v2108 = vpop.f32.mrb[0].mxu0
      %v2109 = vadd.f32 %v1908, %v2108
      %v2110 = vpop.f32.mrb[0].mxu0
      %v2111 = vadd.f32 %v1910, %v2110
      %v2112 = vpop.f32.mrb[0].mxu0
      %v2113 = vadd.f32 %v1912, %v2112
      %v2114 = vpop.f32.mrb[0].mxu0
      %v2115 = vadd.f32 %v1914, %v2114
      %2116 = vmatprep.mubr.bf16.mxu0 %v2052
      %2117 = vmatmul.mubr.bf16.gmra.mrb[0].mxu0 %v1605
      %v2118 = vpop.f32.mrb[0].mxu0
      %v2119 = vadd.f32 %v1918, %v2118
      %v2120 = vpop.f32.mrb[0].mxu0
      %v2121 = vadd.f32 %v1920, %v2120
      %v2122 = vpop.f32.mrb[0].mxu0
      %v2123 = vadd.f32 %v1922, %v2122
      %v2124 = vpop.f32.mrb[0].mxu0
      %v2125 = vadd.f32 %v1924, %v2124
      %2126 = vdwg.mxu0
      %v2127 = vld [vmem:[%s7 + $0x180] sm:$0xff]
      %v2128 = vld [vmem:[%s7 + $0x188] sm:$0xff]
      %v2129 = vld [vmem:[%s7 + $0x190] sm:$0xff]
      %v2130 = vld [vmem:[%s7 + $0x198] sm:$0xff]
      %v2131 = vld [vmem:[%s7 + $0x1a0] sm:$0xff]
      %v2132 = vld [vmem:[%s7 + $0x1a8] sm:$0xff]
      %v2133 = vld [vmem:[%s7 + $0x1b0] sm:$0xff]
      %v2134 = vld [vmem:[%s7 + $0x1b8] sm:$0xff]
      %v2135 = vld [vmem:[%s7 + $0x1c0] sm:$0xff]
      %v2136 = vld [vmem:[%s7 + $0x1c8] sm:$0xff]
      %v2137 = vld [vmem:[%s7 + $0x1d0] sm:$0xff]
      %v2138 = vld [vmem:[%s7 + $0x1d8] sm:$0xff]
      %v2139 = vld [vmem:[%s7 + $0x1e0] sm:$0xff]
      %v2140 = vld [vmem:[%s7 + $0x1e8] sm:$0xff]
      %v2141 = vld [vmem:[%s7 + $0x1f0] sm:$0xff]
      %v2142 = vld [vmem:[%s7 + $0x1f8] sm:$0xff]
      %v2143 = vld [vmem:[%s7 + $0x200] sm:$0xff]
      %v2144 = vld [vmem:[%s7 + $0x208] sm:$0xff]
      %v2145 = vld [vmem:[%s7 + $0x210] sm:$0xff]
      %v2146 = vld [vmem:[%s7 + $0x218] sm:$0xff]
      %v2147 = vld [vmem:[%s7 + $0x220] sm:$0xff]
      %v2148 = vld [vmem:[%s7 + $0x228] sm:$0xff]
      %v2149 = vld [vmem:[%s7 + $0x230] sm:$0xff]
      %v2150 = vld [vmem:[%s7 + $0x238] sm:$0xff]
      %vm2159 = vcmask 1046528
      %v2160 = vrot.slane %v1599, 1
      %v2161 = vrot.slane %v1601, 1
      %v2162 = vsel %vm2159, %v2160, %v2161
      %v2163 = vrot.slane %v1600, 1
      %v2164 = vrot.slane %v1602, 1
      %v2165 = vsel %vm2159, %v2163, %v2164
      %v2166 = vrot.slane %v1603, 1
      %v2167 = vsel %vm2159, %v2161, %v2166
      %v2168 = vrot.slane %v1604, 1
      %v2169 = vsel %vm2159, %v2164, %v2168
      %v2170 = vrot.slane %v1605, 1
      %v2171 = vsel %vm2159, %v2166, %v2170
      %v2172 = vrot.slane %v1606, 1
      %v2173 = vsel %vm2159, %v2168, %v2172
      %v2202 = vunpack.c.l.b16 %v2127
      %v2203 = vunpack.c.h.b16 %v2127
      %v2204 = vunpack.c.l.b16 %v2128
      %v2205 = vunpack.c.h.b16 %v2128
      %v2206 = vunpack.c.l.b16 %v2129
      %v2207 = vunpack.c.h.b16 %v2129
      %v2208 = vunpack.c.l.b16 %v2130
      %v2209 = vunpack.c.h.b16 %v2130
      %v2210 = vunpack.c.l.b16 %v2131
      %v2211 = vunpack.c.h.b16 %v2131
      %v2212 = vunpack.c.l.b16 %v2132
      %v2213 = vunpack.c.h.b16 %v2132
      %v2214 = vunpack.c.l.b16 %v2133
      %v2215 = vunpack.c.h.b16 %v2133
      %v2216 = vunpack.c.l.b16 %v2134
      %v2217 = vunpack.c.h.b16 %v2134
      %v2218 = vunpack.c.l.b16 %v2135
      %v2219 = vunpack.c.h.b16 %v2135
      %v2220 = vunpack.c.l.b16 %v2136
      %v2221 = vunpack.c.h.b16 %v2136
      %v2222 = vunpack.c.l.b16 %v2137
      %v2223 = vunpack.c.h.b16 %v2137
      %v2224 = vunpack.c.l.b16 %v2138
      %v2225 = vunpack.c.h.b16 %v2138
      %v2226 = vunpack.c.l.b16 %v2139
      %v2227 = vunpack.c.h.b16 %v2139
      %v2228 = vunpack.c.l.b16 %v2140
      %v2229 = vunpack.c.h.b16 %v2140
      %v2230 = vunpack.c.l.b16 %v2141
      %v2231 = vunpack.c.h.b16 %v2141
      %v2232 = vunpack.c.l.b16 %v2142
      %v2233 = vunpack.c.h.b16 %v2142
      %v2234 = vunpack.c.l.b16 %v2143
      %v2235 = vunpack.c.h.b16 %v2143
      %v2236 = vunpack.c.l.b16 %v2144
      %v2237 = vunpack.c.h.b16 %v2144
      %v2238 = vunpack.c.l.b16 %v2145
      %v2239 = vunpack.c.h.b16 %v2145
      %v2240 = vunpack.c.l.b16 %v2146
      %v2241 = vunpack.c.h.b16 %v2146
      %v2242 = vunpack.c.l.b16 %v2147
      %v2243 = vunpack.c.h.b16 %v2147
      %v2244 = vunpack.c.l.b16 %v2148
      %v2245 = vunpack.c.h.b16 %v2148
      %v2246 = vunpack.c.l.b16 %v2149
      %v2247 = vunpack.c.h.b16 %v2149
      %v2248 = vunpack.c.l.b16 %v2150
      %v2249 = vunpack.c.h.b16 %v2150
      %v2250 = vpack.c.b16 %v2204, %v2202
      %v2251 = vpack.c.b16 %v2205, %v2203
      %v2252 = vpack.c.b16 %v2208, %v2206
      %v2253 = vpack.c.b16 %v2209, %v2207
      %v2254 = vpack.c.b16 %v2212, %v2210
      %v2255 = vpack.c.b16 %v2213, %v2211
      %v2256 = vpack.c.b16 %v2216, %v2214
      %v2257 = vpack.c.b16 %v2217, %v2215
      %v2258 = vpack.c.b16 %v2220, %v2218
      %v2259 = vpack.c.b16 %v2221, %v2219
      %v2260 = vpack.c.b16 %v2224, %v2222
      %v2261 = vpack.c.b16 %v2225, %v2223
      %v2262 = vpack.c.b16 %v2228, %v2226
      %v2263 = vpack.c.b16 %v2229, %v2227
      %v2264 = vpack.c.b16 %v2232, %v2230
      %v2265 = vpack.c.b16 %v2233, %v2231
      %v2266 = vpack.c.b16 %v2236, %v2234
      %v2267 = vpack.c.b16 %v2237, %v2235
      %v2268 = vpack.c.b16 %v2240, %v2238
      %v2269 = vpack.c.b16 %v2241, %v2239
      %v2270 = vpack.c.b16 %v2244, %v2242
      %v2271 = vpack.c.b16 %v2245, %v2243
      %v2272 = vpack.c.b16 %v2248, %v2246
      %v2273 = vpack.c.b16 %v2249, %v2247
      %v2299 = vsel %vm636, %v2165, 0
      %v2302 = vsel %vm636, %v2169, 0
      %v2305 = vsel %vm636, %v2173, 0
      %v2308 = vsel %vm636, %v2172, 0
      %2310 = vmatprep.subr.bf16.mxu0 %v2251
      %2311 = vmatpush1.bf16.msra.mxu0 %v2250
      %2312 = vmatprep.subr.bf16.mxu0 %v2253
      %2313 = vmatpush1.bf16.msra.mxu0 %v2252
      %2314 = vmatprep.subr.bf16.mxu0 %v2255
      %2315 = vmatpush1.bf16.msra.mxu0 %v2254
      %2316 = vmatprep.subr.bf16.mxu0 %v2257
      %2317 = vmatpush1.bf16.msra.mxu0 %v2256
      %2318 = vmatprep.subr.bf16.mxu0 %v2259
      %2319 = vmatpush1.bf16.msra.mxu0 %v2258
      %2320 = vmatprep.subr.bf16.mxu0 %v2261
      %2321 = vmatpush1.bf16.msra.mxu0 %v2260
      %2322 = vmatprep.subr.bf16.mxu0 %v2263
      %2323 = vmatpush1.bf16.msra.mxu0 %v2262
      %2324 = vmatprep.subr.bf16.mxu0 %v2265
      %2325 = vmatpush1.bf16.msra.mxu0 %v2264
      %2326 = vmatprep.subr.bf16.mxu0 %v2267
      %2327 = vmatpush1.bf16.msra.mxu0 %v2266
      %2328 = vmatprep.subr.bf16.mxu0 %v2269
      %2329 = vmatpush1.bf16.msra.mxu0 %v2268
      %2330 = vmatprep.subr.bf16.mxu0 %v2271
      %2331 = vmatpush1.bf16.msra.mxu0 %v2270
      %2332 = vmatprep.subr.bf16.mxu0 %v2273
      %2333 = vmatpush1.bf16.msra.mxu0 %v2272
      %2334 = vmatprep.subr.bf16.mxu0 0
      %2335 = vmatpush1.bf16.msra.mxu0 0
      %2336 = vmatprep.subr.bf16.mxu0 0
      %2337 = vmatpush1.bf16.msra.mxu0 0
      %2338 = vmatprep.subr.bf16.mxu0 0
      %2339 = vmatpush1.bf16.msra.mxu0 0
      %2340 = vmatprep.subr.bf16.mxu0 0
      %2341 = vmatpush1.bf16.msra.mxu0 0
      %2342 = vmatprep.mubr.bf16.mxu0 %v2299
      %2343 = vmatmul.mubr.bf16.gmra.mrb[0].mxu0 %v2162
      %v2344 = vpop.f32.mrb[0].mxu0
      %v2345 = vadd.f32 0.0, %v2344
      %v2346 = vpop.f32.mrb[0].mxu0
      %v2347 = vadd.f32 0.0, %v2346
      %v2348 = vpop.f32.mrb[0].mxu0
      %v2349 = vadd.f32 0.0, %v2348
      %v2350 = vpop.f32.mrb[0].mxu0
      %v2351 = vadd.f32 0.0, %v2350
      %2352 = vmatprep.mubr.bf16.mxu0 %v2302
      %2353 = vmatmul.mubr.bf16.gmra.mrb[0].mxu0 %v2167
      %v2354 = vpop.f32.mrb[0].mxu0
      %v2355 = vadd.f32 0.0, %v2354
      %v2356 = vpop.f32.mrb[0].mxu0
      %v2357 = vadd.f32 0.0, %v2356
      %v2358 = vpop.f32.mrb[0].mxu0
      %v2359 = vadd.f32 0.0, %v2358
      %v2360 = vpop.f32.mrb[0].mxu0
      %v2361 = vadd.f32 0.0, %v2360
      %2362 = vmatprep.mubr.bf16.mxu0 %v2305
      %2363 = vmatmul.mubr.bf16.gmra.mrb[0].mxu0 %v2171
      %v2364 = vpop.f32.mrb[0].mxu0
      %v2365 = vadd.f32 0.0, %v2364
      %v2366 = vpop.f32.mrb[0].mxu0
      %v2367 = vadd.f32 0.0, %v2366
      %v2368 = vpop.f32.mrb[0].mxu0
      %v2369 = vadd.f32 0.0, %v2368
      %v2370 = vpop.f32.mrb[0].mxu0
      %v2371 = vadd.f32 0.0, %v2370
      %2372 = vmatprep.mubr.bf16.mxu0 %v2308
      %2373 = vmatmul.mubr.bf16.gmra.mrb[0].mxu0 %v2170
      %v2374 = vpop.f32.mrb[0].mxu0
      %v2375 = vadd.f32 0.0, %v2374
      %v2376 = vpop.f32.mrb[0].mxu0
      %v2377 = vadd.f32 0.0, %v2376
      %v2378 = vpop.f32.mrb[0].mxu0
      %v2379 = vadd.f32 0.0, %v2378
      %v2380 = vpop.f32.mrb[0].mxu0
      %v2381 = vadd.f32 0.0, %v2380
      %2382 = vdwg.mxu0
      %v2383 = vadd.f32 %v2089, %v2345
      %v2384 = vadd.f32 %v2091, %v2347
      %v2385 = vadd.f32 %v2093, %v2349
      %v2386 = vadd.f32 %v2095, %v2351
      %v2387 = vadd.f32 %v2099, %v2355
      %v2388 = vadd.f32 %v2101, %v2357
      %v2389 = vadd.f32 %v2103, %v2359
      %v2390 = vadd.f32 %v2105, %v2361
      %v2391 = vadd.f32 %v2109, %v2365
      %v2392 = vadd.f32 %v2111, %v2367
      %v2393 = vadd.f32 %v2113, %v2369
      %v2394 = vadd.f32 %v2115, %v2371
      %v2395 = vadd.f32 %v2119, %v2375
      %v2396 = vadd.f32 %v2121, %v2377
      %v2397 = vadd.f32 %v2123, %v2379
      %v2398 = vadd.f32 %v2125, %v2381
      %v2399 = vld [vmem:[%s8] sm:$0x3]
      %v2401 = vlaneseq
      %v2402 = vshrl.u32 %v2401, 7
      %v2403 = vsub.s32 0, %v2402
      %v2404 = vrot.slane %v2399, %v2403
      %v2405 = vlaneseq
      %v2406 = vshrl.u32 %v2405, 7
      %v2407 = vsub.s32 1, %v2406
      %v2408 = vrot.slane %v2399, %v2407
      %v2411 = vmul.f32 %v2383, %v2404
      %v2412 = vmul.f32 %v2384, %v2408
      %v2413 = vmul.f32 %v2385, %v2404
      %v2414 = vmul.f32 %v2386, %v2408
      %v2415 = vmul.f32 %v2387, %v2404
      %v2416 = vmul.f32 %v2388, %v2408
      %v2417 = vmul.f32 %v2389, %v2404
      %v2418 = vmul.f32 %v2390, %v2408
      %v2419 = vmul.f32 %v2391, %v2404
      %v2420 = vmul.f32 %v2392, %v2408
      %v2421 = vmul.f32 %v2393, %v2404
      %v2422 = vmul.f32 %v2394, %v2408
      %v2423 = vmul.f32 %v2395, %v2404
      %v2424 = vmul.f32 %v2396, %v2408
      %v2425 = vmul.f32 %v2397, %v2404
      %v2426 = vmul.f32 %v2398, %v2408
      %v2427 = vld [vmem:[%s9] sm:$0x3]
      %v2429 = vlaneseq
      %v2430 = vshrl.u32 %v2429, 7
      %v2431 = vsub.s32 0, %v2430
      %v2432 = vrot.slane %v2427, %v2431
      %v2433 = vlaneseq
      %v2434 = vshrl.u32 %v2433, 7
      %v2435 = vsub.s32 1, %v2434
      %v2436 = vrot.slane %v2427, %v2435
      %v2439 = vadd.f32 %v2411, %v2432
      %v2440 = vadd.f32 %v2412, %v2436
      %v2441 = vadd.f32 %v2413, %v2432
      %v2442 = vadd.f32 %v2414, %v2436
      %v2443 = vadd.f32 %v2415, %v2432
      %v2444 = vadd.f32 %v2416, %v2436
      %v2445 = vadd.f32 %v2417, %v2432
      %v2446 = vadd.f32 %v2418, %v2436
      %v2447 = vadd.f32 %v2419, %v2432
      %v2448 = vadd.f32 %v2420, %v2436
      %v2449 = vadd.f32 %v2421, %v2432
      %v2450 = vadd.f32 %v2422, %v2436
      %v2451 = vadd.f32 %v2423, %v2432
      %v2452 = vadd.f32 %v2424, %v2436
      %v2453 = vadd.f32 %v2425, %v2432
      %v2454 = vadd.f32 %v2426, %v2436
      %2471 = vrot.lane.b32.xlu0 %v2439, 32
      %v2472 = vpop.permute.xlu0 %2471
      %2473 = vrot.lane.b32.xlu0 %v2440, 32
      %v2474 = vpop.permute.xlu0 %2473
      %2475 = vrot.lane.b32.xlu0 %v2441, 32
      %v2476 = vpop.permute.xlu0 %2475
      %2477 = vrot.lane.b32.xlu0 %v2442, 32
      %v2478 = vpop.permute.xlu0 %2477
      %2479 = vrot.lane.b32.xlu0 %v2443, 32
      %v2480 = vpop.permute.xlu0 %2479
      %2481 = vrot.lane.b32.xlu0 %v2444, 32
      %v2482 = vpop.permute.xlu0 %2481
      %2483 = vrot.lane.b32.xlu0 %v2445, 32
      %v2484 = vpop.permute.xlu0 %2483
      %2485 = vrot.lane.b32.xlu0 %v2446, 32
      %v2486 = vpop.permute.xlu0 %2485
      %2487 = vrot.lane.b32.xlu0 %v2447, 32
      %v2488 = vpop.permute.xlu0 %2487
      %2489 = vrot.lane.b32.xlu0 %v2448, 32
      %v2490 = vpop.permute.xlu0 %2489
      %2491 = vrot.lane.b32.xlu0 %v2449, 32
      %v2492 = vpop.permute.xlu0 %2491
      %2493 = vrot.lane.b32.xlu0 %v2450, 32
      %v2494 = vpop.permute.xlu0 %2493
      %2495 = vrot.lane.b32.xlu0 %v2451, 32
      %v2496 = vpop.permute.xlu0 %2495
      %2497 = vrot.lane.b32.xlu0 %v2452, 32
      %v2498 = vpop.permute.xlu0 %2497
      %2499 = vrot.lane.b32.xlu0 %v2453, 32
      %v2500 = vpop.permute.xlu0 %2499
      %2501 = vrot.lane.b32.xlu0 %v2454, 32
      %v2502 = vpop.permute.xlu0 %2501
      %vm2503 = vcmask 261120
      %v2504 = vsel %vm2503, %v2472, %v2474
      %v2505 = vsel %vm2503, %v2476, %v2478
      %v2506 = vsel %vm2503, %v2480, %v2482
      %v2507 = vsel %vm2503, %v2484, %v2486
      %v2508 = vsel %vm2503, %v2488, %v2490
      %v2509 = vsel %vm2503, %v2492, %v2494
      %v2510 = vsel %vm2503, %v2496, %v2498
      %v2511 = vsel %vm2503, %v2500, %v2502
      %v2520 = vmax.f32 %v2439, %v2504
      %v2521 = vmax.f32 %v2441, %v2505
      %v2522 = vmax.f32 %v2443, %v2506
      %v2523 = vmax.f32 %v2445, %v2507
      %v2524 = vmax.f32 %v2447, %v2508
      %v2525 = vmax.f32 %v2449, %v2509
      %v2526 = vmax.f32 %v2451, %v2510
      %v2527 = vmax.f32 %v2453, %v2511
      %vm2528 = vcmask 1046528
      %v2529 = vrot.slane %v2439, 1
      %v2530 = vrot.slane %v2441, 1
      %v2531 = vsel %vm2528, %v2529, %v2530
      %v2532 = vrot.slane %v2443, 1
      %v2533 = vsel %vm2528, %v2530, %v2532
      %v2534 = vrot.slane %v2445, 1
      %v2535 = vsel %vm2528, %v2532, %v2534
      %v2536 = vrot.slane %v2447, 1
      %v2537 = vsel %vm2528, %v2534, %v2536
      %v2538 = vrot.slane %v2449, 1
      %v2539 = vsel %vm2528, %v2536, %v2538
      %v2540 = vrot.slane %v2451, 1
      %v2541 = vsel %vm2528, %v2538, %v2540
      %v2542 = vrot.slane %v2453, 1
      %v2543 = vsel %vm2528, %v2540, %v2542
      %v2552 = vmax.f32 %v2520, %v2531
      %v2553 = vmax.f32 %v2521, %v2533
      %v2554 = vmax.f32 %v2522, %v2535
      %v2555 = vmax.f32 %v2523, %v2537
      %v2556 = vmax.f32 %v2524, %v2539
      %v2557 = vmax.f32 %v2525, %v2541
      %v2558 = vmax.f32 %v2526, %v2543
      %v2559 = vmax.f32 %v2527, %v2542
      %v2560 = vmax.f32 %v2552, 0.0
      %v2561 = vmax.f32 %v2553, 0.0
      %v2562 = vmax.f32 %v2554, 0.0
      %v2563 = vmax.f32 %v2555, 0.0
      %v2564 = vmax.f32 %v2556, 0.0
      %v2565 = vmax.f32 %v2557, 0.0
      %v2566 = vmax.f32 %v2558, 0.0
      %v2567 = vmax.f32 %v2559, 0.0
      %v2568 = vpack.c.bf16 %v2561, %v2560
      %v2569 = vpack.c.bf16 %v2563, %v2562
      %v2570 = vpack.c.bf16 %v2565, %v2564
      %v2571 = vpack.c.bf16 %v2567, %v2566
      %v2576 = vunpack.c.l.b16 %v2568
      %v2577 = vunpack.c.h.b16 %v2568
      %v2578 = vunpack.c.l.b16 %v2569
      %v2579 = vunpack.c.h.b16 %v2569
      %v2580 = vunpack.c.l.b16 %v2570
      %v2581 = vunpack.c.h.b16 %v2570
      %v2582 = vunpack.c.l.b16 %v2571
      %v2583 = vunpack.c.h.b16 %v2571
      %v2584 = vpack.c.b16 %v2576, %v2576
      %v2585 = vpack.c.b16 %v2577, %v2577
      %v2586 = vpack.c.b16 %v2578, %v2578
      %v2587 = vpack.c.b16 %v2579, %v2579
      %v2588 = vpack.c.b16 %v2580, %v2580
      %v2589 = vpack.c.b16 %v2581, %v2581
      %v2590 = vpack.c.b16 %v2582, %v2582
      %v2591 = vpack.c.b16 %v2583, %v2583
      %vm2600 = vcmask 781312
      %2601 = vst.msk [vmem:[%s359] sm:$0xf] %vm2600, %v2584
      %2602 = vst.msk [vmem:[%s359 + $0x4] sm:$0xf] %vm2600, %v2585
      %2603 = vst.msk [vmem:[%s359 + $0x8] sm:$0xf] %vm2600, %v2586
      %2604 = vst.msk [vmem:[%s359 + $0xc] sm:$0xf] %vm2600, %v2587
      %2605 = vst.msk [vmem:[%s359 + $0x10] sm:$0xf] %vm2600, %v2588
      %2606 = vst.msk [vmem:[%s359 + $0x14] sm:$0xf] %vm2600, %v2589
      %2607 = vst.msk [vmem:[%s359 + $0x18] sm:$0xf] %vm2600, %v2590
      %vm2608 = vcmask 778240
      %2609 = vst.msk [vmem:[%s359 + $0x1c] sm:$0x1] %vm2608, %v2591
      %p2610 = scmp.lt.s32.totalorder %s21, 1
      %s2611 = scalar_select %p2610, %s21, 1
      %s2612 = smul.addr %s2611, 8
      %s2613 = smul.addr %s2612, 4
      %s2614 = scalar_lea.vmem %s10, %s2613
      // Predicated region
      $region61: #{forward.2} parent=59 // pred_check
        %p2615 = pneg %p254
      $region62: #{forward.2} parent=59 // pred_check_branch
        %2617 = sbr.rel (%p2615) target = $region64
      $region63: #{forward.2} parent=59 // pred_region
        _
      $region64: #{forward.2} parent=59 // pred_fallthru
        _
    $region60: #{forward.2} parent=5 // pred_fallthru
      _
    %p2618 = scmp.le.s32.totalorder 2, %s16
    // Predicated region
    $region65: #{forward.2} parent=5 // pred_check
      %p2619 = pneg %p2618
    $region66: #{forward.2} parent=5 // pred_check_branch
      %2621 = sbr.rel (%p2619) target = $region68
    $region67: #{forward.2} parent=5 // pred_region
      %s2622 = ssub.s32 %s16, 2
      // Predicated region
      $region69: #{forward.2} parent=67 // pred_check
        %p2623 = pneg %p260
      $region70: #{forward.2} parent=67 // pred_check_branch
        %2625 = sbr.rel (%p2623) target = $region72
      $region71: #{forward.2} parent=67 // pred_region
        %p2626 = scmp.lt.s32.totalorder %s22, 1
        %s2627 = scalar_select %p2626, %s22, 1
        %s2628 = smul.addr %s2627, 8
        %s2629 = smul.addr %s2628, 4
        %s2630 = scalar_lea.vmem %s10, %s2629
      $region72: #{forward.2} parent=67 // pred_fallthru
        _
    $region68: #{forward.2} parent=5 // pred_fallthru
      _
  $region6: #{forward.2} parent=0 // loop_footer
    %s20 = sadd.s32 1, %s16
  $region7: #{forward.2} parent=0 // loop_footer_branch
    %15 = sbr.rel target = $region3
  $region8: #{forward.2} parent=0 // loop_exit
    _

// kernel: forward.3
$region0: #{forward.3}
  #allocation0 [shape = 'u32[]', space=smem, size = 0x4, offset = 0x4, fixed_abs, tag = 'smem constant byte address 0x4 - core index']
  #allocation1 [shape = 'u32[144,128]{1,0:T(1,128)}', space=vmem, size = 0x12000, scoped, tag = 'internal scratch']
  %s0 = inlined_call_operand.vmem [shape: bf16[2,5568], index: 0, kind: input, shape index: {}]
  %s1 = inlined_call_operand.vmem [shape: f32[2,48], index: 1, kind: input, shape index: {}]
  %s2 = inlined_call_operand.vmem [shape: bf16[5568,100], index: 2, kind: input, shape index: {}]
  %s3 = inlined_call_operand.vmem [shape: f32[1,100], index: 3, kind: input, shape index: {}]
  %s4 = inlined_call_operand.vmem [shape: bf16[100,25], index: 4, kind: input, shape index: {}]
  %s5 = inlined_call_operand.vmem [shape: f32[1,25], index: 5, kind: input, shape index: {}]
  %s6 = inlined_call_operand.vmem [shape: bf16[48,24], index: 6, kind: input, shape index: {}]
  %s7 = inlined_call_operand.vmem [shape: f32[1,24], index: 7, kind: input, shape index: {}]
  %s8 = inlined_call_operand.vmem [shape: bf16[24,10], index: 8, kind: input, shape index: {}]
  %s9 = inlined_call_operand.vmem [shape: f32[1,10], index: 9, kind: input, shape index: {}]
  %s10 = inlined_call_operand.vmem [shape: bf16[25,5], index: 10, kind: input, shape index: {}]
  %s11 = inlined_call_operand.vmem [shape: bf16[10,5], index: 11, kind: input, shape index: {}]
  %s12 = inlined_call_operand.vmem [shape: f32[1,5], index: 12, kind: input, shape index: {}]
  %s13 = inlined_call_operand.hbm [shape: f32[2,5], index: 13, kind: output, shape index: {}]
  %s14 = sld [smem:[#allocation0]]
  $region62: #{forward.3} parent=0
    _
  %s16 = ssub.s32 1, %s14
  %s17 = scalar_select 0, %s16, %s14
  $region1: #{forward.3} parent=0
    #allocation2 [shape = 'u8[1024]{0}', space=vmem, size = 0x400, scoped, tag = 'output window, operand 0, single buffered']
    #allocation3 [shape = 's32[1]{0}', space=sflag, size = 0x4, scoped, tag = 'scoped memory for forward.3']
    %18 = vsyncpa [#allocation3], 0
    // Predicated region
    $region2: #{forward.3} parent=1 // pred_check
      _
    $region3: #{forward.3} parent=1 // pred_check_branch
      %20 = sbr.rel (0) target = $region5
    $region4: #{forward.3} parent=1 // pred_region
      _
    $region5: #{forward.3} parent=1 // pred_fallthru
      _
    // Predicated region
    $region6: #{forward.3} parent=1 // pred_check
      _
    $region7: #{forward.3} parent=1 // pred_check_branch
      %22 = sbr.rel (0) target = $region9
    $region8: #{forward.3} parent=1 // pred_region
      _
    $region9: #{forward.3} parent=1 // pred_fallthru
      _
    // Predicated region
    $region10: #{forward.3} parent=1 // pred_check
      _
    $region11: #{forward.3} parent=1 // pred_check_branch
      %24 = sbr.rel (0) target = $region13
    $region12: #{forward.3} parent=1 // pred_region
      _
    $region13: #{forward.3} parent=1 // pred_fallthru
      _
    // Predicated region
    $region14: #{forward.3} parent=1 // pred_check
      _
    $region15: #{forward.3} parent=1 // pred_check_branch
      %26 = sbr.rel (0) target = $region17
    $region16: #{forward.3} parent=1 // pred_region
      _
    $region17: #{forward.3} parent=1 // pred_fallthru
      _
    // Predicated region
    $region18: #{forward.3} parent=1 // pred_check
      _
    $region19: #{forward.3} parent=1 // pred_check_branch
      %28 = sbr.rel (0) target = $region21
    $region20: #{forward.3} parent=1 // pred_region
      _
    $region21: #{forward.3} parent=1 // pred_fallthru
      _
    // Predicated region
    $region22: #{forward.3} parent=1 // pred_check
      _
    $region23: #{forward.3} parent=1 // pred_check_branch
      %30 = sbr.rel (0) target = $region25
    $region24: #{forward.3} parent=1 // pred_region
      _
    $region25: #{forward.3} parent=1 // pred_fallthru
      _
    // Predicated region
    $region26: #{forward.3} parent=1 // pred_check
      _
    $region27: #{forward.3} parent=1 // pred_check_branch
      %32 = sbr.rel (0) target = $region29
    $region28: #{forward.3} parent=1 // pred_region
      _
    $region29: #{forward.3} parent=1 // pred_fallthru
      _
    // Predicated region
    $region30: #{forward.3} parent=1 // pred_check
      _
    $region31: #{forward.3} parent=1 // pred_check_branch
      %34 = sbr.rel (0) target = $region33
    $region32: #{forward.3} parent=1 // pred_region
      _
    $region33: #{forward.3} parent=1 // pred_fallthru
      _
    // Predicated region
    $region34: #{forward.3} parent=1 // pred_check
      _
    $region35: #{forward.3} parent=1 // pred_check_branch
      %36 = sbr.rel (0) target = $region37
    $region36: #{forward.3} parent=1 // pred_region
      _
    $region37: #{forward.3} parent=1 // pred_fallthru
      _
    // Predicated region
    $region38: #{forward.3} parent=1 // pred_check
      _
    $region39: #{forward.3} parent=1 // pred_check_branch
      %38 = sbr.rel (0) target = $region41
    $region40: #{forward.3} parent=1 // pred_region
      _
    $region41: #{forward.3} parent=1 // pred_fallthru
      _
    // Predicated region
    $region42: #{forward.3} parent=1 // pred_check
      _
    $region43: #{forward.3} parent=1 // pred_check_branch
      %40 = sbr.rel (0) target = $region45
    $region44: #{forward.3} parent=1 // pred_region
      _
    $region45: #{forward.3} parent=1 // pred_fallthru
      _
    // Predicated region
    $region46: #{forward.3} parent=1 // pred_check
      _
    $region47: #{forward.3} parent=1 // pred_check_branch
      %42 = sbr.rel (0) target = $region49
    $region48: #{forward.3} parent=1 // pred_region
      _
    $region49: #{forward.3} parent=1 // pred_fallthru
      _
    // Predicated region
    $region50: #{forward.3} parent=1 // pred_check
      _
    $region51: #{forward.3} parent=1 // pred_check_branch
      %44 = sbr.rel (0) target = $region53
    $region52: #{forward.3} parent=1 // pred_region
      _
    $region53: #{forward.3} parent=1 // pred_fallthru
      _
    %v46 = vld [vmem:[%s0] sm:$0xff]
    %v47 = vld [vmem:[%s0 + $0x8] sm:$0xff]
    %v48 = vld [vmem:[%s0 + $0x10] sm:$0xff]
    %v49 = vld [vmem:[%s0 + $0x18] sm:$0xff]
    %v50 = vld [vmem:[%s0 + $0x20] sm:$0xff]
    %v51 = vld [vmem:[%s0 + $0x28] sm:$0xf]
    %v52 = vld [vmem:[%s2] sm:$0xf]
    %v53 = vld [vmem:[%s2 + $0x4] sm:$0xf]
    %v54 = vld [vmem:[%s2 + $0x8] sm:$0xf]
    %v55 = vld [vmem:[%s2 + $0xc] sm:$0xf]
    %v56 = vld [vmem:[%s2 + $0x10] sm:$0xf]
    %v57 = vld [vmem:[%s2 + $0x14] sm:$0xf]
    %v58 = vld [vmem:[%s2 + $0x18] sm:$0xf]
    %v59 = vld [vmem:[%s2 + $0x1c] sm:$0xf]
    %v60 = vld [vmem:[%s2 + $0x20] sm:$0xf]
    %v61 = vld [vmem:[%s2 + $0x24] sm:$0xf]
    %v62 = vld [vmem:[%s2 + $0x28] sm:$0xf]
    %v63 = vld [vmem:[%s2 + $0x2c] sm:$0xf]
    %v64 = vld [vmem:[%s2 + $0x30] sm:$0xf]
    %v65 = vld [vmem:[%s2 + $0x34] sm:$0xf]
    %v66 = vld [vmem:[%s2 + $0x38] sm:$0xf]
    %v67 = vld [vmem:[%s2 + $0x3c] sm:$0xf]
    %v68 = vld [vmem:[%s2 + $0x40] sm:$0xf]
    %v69 = vld [vmem:[%s2 + $0x44] sm:$0xf]
    %v70 = vld [vmem:[%s2 + $0x48] sm:$0xf]
    %v71 = vld [vmem:[%s2 + $0x4c] sm:$0xf]
    %v72 = vld [vmem:[%s2 + $0x50] sm:$0xf]
    %v73 = vld [vmem:[%s2 + $0x54] sm:$0xf]
    %v74 = vld [vmem:[%s2 + $0x58] sm:$0xf]
    %v75 = vld [vmem:[%s2 + $0x5c] sm:$0xf]
    %v76 = vld [vmem:[%s2 + $0x60] sm:$0xf]
    %v77 = vld [vmem:[%s2 + $0x64] sm:$0xf]
    %v78 = vld [vmem:[%s2 + $0x68] sm:$0xf]
    %v79 = vld [vmem:[%s2 + $0x6c] sm:$0xf]
    %v80 = vld [vmem:[%s2 + $0x70] sm:$0xf]
    %v81 = vld [vmem:[%s2 + $0x74] sm:$0xf]
    %v82 = vld [vmem:[%s2 + $0x78] sm:$0xf]
    %v83 = vld [vmem:[%s2 + $0x7c] sm:$0xf]
    %v84 = vld [vmem:[%s2 + $0x80] sm:$0xf]
    %v85 = vld [vmem:[%s2 + $0x84] sm:$0xf]
    %v86 = vld [vmem:[%s2 + $0x88] sm:$0xf]
    %v87 = vld [vmem:[%s2 + $0x8c] sm:$0xf]
    %v88 = vld [vmem:[%s2 + $0x90] sm:$0xf]
    %v89 = vld [vmem:[%s2 + $0x94] sm:$0xf]
    %v90 = vld [vmem:[%s2 + $0x98] sm:$0xf]
    %v91 = vld [vmem:[%s2 + $0x9c] sm:$0xf]
    %v92 = vld [vmem:[%s2 + $0xa0] sm:$0xf]
    %v93 = vld [vmem:[%s2 + $0xa4] sm:$0xf]
    %v94 = vld [vmem:[%s2 + $0xa8] sm:$0xf]
    %v95 = vld [vmem:[%s2 + $0xac] sm:$0xf]
    %v96 = vld [vmem:[%s2 + $0xb0] sm:$0xf]
    %v97 = vld [vmem:[%s2 + $0xb4] sm:$0xf]
    %v98 = vld [vmem:[%s2 + $0xb8] sm:$0xf]
    %v99 = vld [vmem:[%s2 + $0xbc] sm:$0xf]
    %v100 = vld [vmem:[%s2 + $0xc0] sm:$0xf]
    %v101 = vld [vmem:[%s2 + $0xc4] sm:$0xf]
    %v102 = vld [vmem:[%s2 + $0xc8] sm:$0xf]
    %v103 = vld [vmem:[%s2 + $0xcc] sm:$0xf]
    %v104 = vld [vmem:[%s2 + $0xd0] sm:$0xf]
    %v105 = vld [vmem:[%s2 + $0xd4] sm:$0xf]
    %v106 = vld [vmem:[%s2 + $0xd8] sm:$0xf]
    %v107 = vld [vmem:[%s2 + $0xdc] sm:$0xf]
    %v108 = vld [vmem:[%s2 + $0xe0] sm:$0xf]
    %v109 = vld [vmem:[%s2 + $0xe4] sm:$0xf]
    %v110 = vld [vmem:[%s2 + $0xe8] sm:$0xf]
    %v111 = vld [vmem:[%s2 + $0xec] sm:$0xf]
    %v112 = vld [vmem:[%s2 + $0xf0] sm:$0xf]
    %v113 = vld [vmem:[%s2 + $0xf4] sm:$0xf]
    %v114 = vld [vmem:[%s2 + $0xf8] sm:$0xf]
    %v115 = vld [vmem:[%s2 + $0xfc] sm:$0xf]
    %v116 = vld [vmem:[%s2 + $0x100] sm:$0xf]
    %v117 = vld [vmem:[%s2 + $0x104] sm:$0xf]
    %v118 = vld [vmem:[%s2 + $0x108] sm:$0xf]
    %v119 = vld [vmem:[%s2 + $0x10c] sm:$0xf]
    %v120 = vld [vmem:[%s2 + $0x110] sm:$0xf]
    %v121 = vld [vmem:[%s2 + $0x114] sm:$0xf]
    %v122 = vld [vmem:[%s2 + $0x118] sm:$0xf]
    %v123 = vld [vmem:[%s2 + $0x11c] sm:$0xf]
    %v124 = vld [vmem:[%s2 + $0x120] sm:$0xf]
    %v125 = vld [vmem:[%s2 + $0x124] sm:$0xf]
    %v126 = vld [vmem:[%s2 + $0x128] sm:$0xf]
    %v127 = vld [vmem:[%s2 + $0x12c] sm:$0xf]
    %v128 = vld [vmem:[%s2 + $0x130] sm:$0xf]
    %v129 = vld [vmem:[%s2 + $0x134] sm:$0xf]
    %v130 = vld [vmem:[%s2 + $0x138] sm:$0xf]
    %v131 = vld [vmem:[%s2 + $0x13c] sm:$0xf]
    %v132 = vld [vmem:[%s2 + $0x140] sm:$0xf]
    %v133 = vld [vmem:[%s2 + $0x144] sm:$0xf]
    %v134 = vld [vmem:[%s2 + $0x148] sm:$0xf]
    %v135 = vld [vmem:[%s2 + $0x14c] sm:$0xf]
    %v136 = vld [vmem:[%s2 + $0x150] sm:$0xf]
    %v137 = vld [vmem:[%s2 + $0x154] sm:$0xf]
    %v138 = vld [vmem:[%s2 + $0x158] sm:$0xf]
    %v139 = vld [vmem:[%s2 + $0x15c] sm:$0xf]
    %v140 = vld [vmem:[%s2 + $0x160] sm:$0xf]
    %v141 = vld [vmem:[%s2 + $0x164] sm:$0xf]
    %v142 = vld [vmem:[%s2 + $0x168] sm:$0xf]
    %v143 = vld [vmem:[%s2 + $0x16c] sm:$0xf]
    %v144 = vld [vmem:[%s2 + $0x170] sm:$0xf]
    %v145 = vld [vmem:[%s2 + $0x174] sm:$0xf]
    %v146 = vld [vmem:[%s2 + $0x178] sm:$0xf]
    %v147 = vld [vmem:[%s2 + $0x17c] sm:$0xf]
    %v148 = vld [vmem:[%s2 + $0x180] sm:$0xf]
    %v149 = vld [vmem:[%s2 + $0x184] sm:$0xf]
    %v150 = vld [vmem:[%s2 + $0x188] sm:$0xf]
    %v151 = vld [vmem:[%s2 + $0x18c] sm:$0xf]
    %v152 = vld [vmem:[%s2 + $0x190] sm:$0xf]
    %v153 = vld [vmem:[%s2 + $0x194] sm:$0xf]
    %v154 = vld [vmem:[%s2 + $0x198] sm:$0xf]
    %v155 = vld [vmem:[%s2 + $0x19c] sm:$0xf]
    %v156 = vld [vmem:[%s2 + $0x1a0] sm:$0xf]
    %v157 = vld [vmem:[%s2 + $0x1a4] sm:$0xf]
    %v158 = vld [vmem:[%s2 + $0x1a8] sm:$0xf]
    %v159 = vld [vmem:[%s2 + $0x1ac] sm:$0xf]
    %v160 = vld [vmem:[%s2 + $0x1b0] sm:$0xf]
    %v161 = vld [vmem:[%s2 + $0x1b4] sm:$0xf]
    %v162 = vld [vmem:[%s2 + $0x1b8] sm:$0xf]
    %v163 = vld [vmem:[%s2 + $0x1bc] sm:$0xf]
    %v164 = vld [vmem:[%s2 + $0x1c0] sm:$0xf]
    %v165 = vld [vmem:[%s2 + $0x1c4] sm:$0xf]
    %v166 = vld [vmem:[%s2 + $0x1c8] sm:$0xf]
    %v167 = vld [vmem:[%s2 + $0x1cc] sm:$0xf]
    %v168 = vld [vmem:[%s2 + $0x1d0] sm:$0xf]
    %v169 = vld [vmem:[%s2 + $0x1d4] sm:$0xf]
    %v170 = vld [vmem:[%s2 + $0x1d8] sm:$0xf]
    %v171 = vld [vmem:[%s2 + $0x1dc] sm:$0xf]
    %v172 = vld [vmem:[%s2 + $0x1e0] sm:$0xf]
    %v173 = vld [vmem:[%s2 + $0x1e4] sm:$0xf]
    %v174 = vld [vmem:[%s2 + $0x1e8] sm:$0xf]
    %v175 = vld [vmem:[%s2 + $0x1ec] sm:$0xf]
    %v176 = vld [vmem:[%s2 + $0x1f0] sm:$0xf]
    %v177 = vld [vmem:[%s2 + $0x1f4] sm:$0xf]
    %v178 = vld [vmem:[%s2 + $0x1f8] sm:$0xf]
    %v179 = vld [vmem:[%s2 + $0x1fc] sm:$0xf]
    %v180 = vld [vmem:[%s2 + $0x200] sm:$0xf]
    %v181 = vld [vmem:[%s2 + $0x204] sm:$0xf]
    %v182 = vld [vmem:[%s2 + $0x208] sm:$0xf]
    %v183 = vld [vmem:[%s2 + $0x20c] sm:$0xf]
    %v184 = vld [vmem:[%s2 + $0x210] sm:$0xf]
    %v185 = vld [vmem:[%s2 + $0x214] sm:$0xf]
    %v186 = vld [vmem:[%s2 + $0x218] sm:$0xf]
    %v187 = vld [vmem:[%s2 + $0x21c] sm:$0xf]
    %v188 = vld [vmem:[%s2 + $0x220] sm:$0xf]
    %v189 = vld [vmem:[%s2 + $0x224] sm:$0xf]
    %v190 = vld [vmem:[%s2 + $0x228] sm:$0xf]
    %v191 = vld [vmem:[%s2 + $0x22c] sm:$0xf]
    %v192 = vld [vmem:[%s2 + $0x230] sm:$0xf]
    %v193 = vld [vmem:[%s2 + $0x234] sm:$0xf]
    %v194 = vld [vmem:[%s2 + $0x238] sm:$0xf]
    %v195 = vld [vmem:[%s2 + $0x23c] sm:$0xf]
    %v196 = vld [vmem:[%s2 + $0x240] sm:$0xf]
    %v197 = vld [vmem:[%s2 + $0x244] sm:$0xf]
    %v198 = vld [vmem:[%s2 + $0x248] sm:$0xf]
    %v199 = vld [vmem:[%s2 + $0x24c] sm:$0xf]
    %v200 = vld [vmem:[%s2 + $0x250] sm:$0xf]
    %v201 = vld [vmem:[%s2 + $0x254] sm:$0xf]
    %v202 = vld [vmem:[%s2 + $0x258] sm:$0xf]
    %v203 = vld [vmem:[%s2 + $0x25c] sm:$0xf]
    %v204 = vld [vmem:[%s2 + $0x260] sm:$0xf]
    %v205 = vld [vmem:[%s2 + $0x264] sm:$0xf]
    %v206 = vld [vmem:[%s2 + $0x268] sm:$0xf]
    %v207 = vld [vmem:[%s2 + $0x26c] sm:$0xf]
    %v208 = vld [vmem:[%s2 + $0x270] sm:$0xf]
    %v209 = vld [vmem:[%s2 + $0x274] sm:$0xf]
    %v210 = vld [vmem:[%s2 + $0x278] sm:$0xf]
    %v211 = vld [vmem:[%s2 + $0x27c] sm:$0xf]
    %v212 = vld [vmem:[%s2 + $0x280] sm:$0xf]
    %v213 = vld [vmem:[%s2 + $0x284] sm:$0xf]
    %v214 = vld [vmem:[%s2 + $0x288] sm:$0xf]
    %v215 = vld [vmem:[%s2 + $0x28c] sm:$0xf]
    %v216 = vld [vmem:[%s2 + $0x290] sm:$0xf]
    %v217 = vld [vmem:[%s2 + $0x294] sm:$0xf]
    %v218 = vld [vmem:[%s2 + $0x298] sm:$0xf]
    %v219 = vld [vmem:[%s2 + $0x29c] sm:$0xf]
    %v220 = vld [vmem:[%s2 + $0x2a0] sm:$0xf]
    %v221 = vld [vmem:[%s2 + $0x2a4] sm:$0xf]
    %v222 = vld [vmem:[%s2 + $0x2a8] sm:$0xf]
    %v223 = vld [vmem:[%s2 + $0x2ac] sm:$0xf]
    %v224 = vld [vmem:[%s2 + $0x2b0] sm:$0xf]
    %v225 = vld [vmem:[%s2 + $0x2b4] sm:$0xf]
    %v226 = vld [vmem:[%s2 + $0x2b8] sm:$0xf]
    %v227 = vld [vmem:[%s2 + $0x2bc] sm:$0xf]
    %v228 = vld [vmem:[%s2 + $0x2c0] sm:$0xf]
    %v229 = vld [vmem:[%s2 + $0x2c4] sm:$0xf]
    %v230 = vld [vmem:[%s2 + $0x2c8] sm:$0xf]
    %v231 = vld [vmem:[%s2 + $0x2cc] sm:$0xf]
    %v232 = vld [vmem:[%s2 + $0x2d0] sm:$0xf]
    %v233 = vld [vmem:[%s2 + $0x2d4] sm:$0xf]
    %v234 = vld [vmem:[%s2 + $0x2d8] sm:$0xf]
    %v235 = vld [vmem:[%s2 + $0x2dc] sm:$0xf]
    %v236 = vld [vmem:[%s2 + $0x2e0] sm:$0xf]
    %v237 = vld [vmem:[%s2 + $0x2e4] sm:$0xf]
    %v238 = vld [vmem:[%s2 + $0x2e8] sm:$0xf]
    %v239 = vld [vmem:[%s2 + $0x2ec] sm:$0xf]
    %v240 = vld [vmem:[%s2 + $0x2f0] sm:$0xf]
    %v241 = vld [vmem:[%s2 + $0x2f4] sm:$0xf]
    %v242 = vld [vmem:[%s2 + $0x2f8] sm:$0xf]
    %v243 = vld [vmem:[%s2 + $0x2fc] sm:$0xf]
    %v244 = vld [vmem:[%s2 + $0x300] sm:$0xf]
    %v245 = vld [vmem:[%s2 + $0x304] sm:$0xf]
    %v246 = vld [vmem:[%s2 + $0x308] sm:$0xf]
    %v247 = vld [vmem:[%s2 + $0x30c] sm:$0xf]
    %v248 = vld [vmem:[%s2 + $0x310] sm:$0xf]
    %v249 = vld [vmem:[%s2 + $0x314] sm:$0xf]
    %v250 = vld [vmem:[%s2 + $0x318] sm:$0xf]
    %v251 = vld [vmem:[%s2 + $0x31c] sm:$0xf]
    %v252 = vld [vmem:[%s2 + $0x320] sm:$0xf]
    %v253 = vld [vmem:[%s2 + $0x324] sm:$0xf]
    %v254 = vld [vmem:[%s2 + $0x328] sm:$0xf]
    %v255 = vld [vmem:[%s2 + $0x32c] sm:$0xf]
    %v256 = vld [vmem:[%s2 + $0x330] sm:$0xf]
    %v257 = vld [vmem:[%s2 + $0x334] sm:$0xf]
    %v258 = vld [vmem:[%s2 + $0x338] sm:$0xf]
    %v259 = vld [vmem:[%s2 + $0x33c] sm:$0xf]
    %v260 = vld [vmem:[%s2 + $0x340] sm:$0xf]
    %v261 = vld [vmem:[%s2 + $0x344] sm:$0xf]
    %v262 = vld [vmem:[%s2 + $0x348] sm:$0xf]
    %v263 = vld [vmem:[%s2 + $0x34c] sm:$0xf]
    %v264 = vld [vmem:[%s2 + $0x350] sm:$0xf]
    %v265 = vld [vmem:[%s2 + $0x354] sm:$0xf]
    %v266 = vld [vmem:[%s2 + $0x358] sm:$0xf]
    %v267 = vld [vmem:[%s2 + $0x35c] sm:$0xf]
    %v268 = vld [vmem:[%s2 + $0x360] sm:$0xf]
    %v269 = vld [vmem:[%s2 + $0x364] sm:$0xf]
    %v270 = vld [vmem:[%s2 + $0x368] sm:$0xf]
    %v271 = vld [vmem:[%s2 + $0x36c] sm:$0xf]
    %v272 = vld [vmem:[%s2 + $0x370] sm:$0xf]
    %v273 = vld [vmem:[%s2 + $0x374] sm:$0xf]
    %v274 = vld [vmem:[%s2 + $0x378] sm:$0xf]
    %v275 = vld [vmem:[%s2 + $0x37c] sm:$0xf]
    %v276 = vld [vmem:[%s2 + $0x380] sm:$0xf]
    %v277 = vld [vmem:[%s2 + $0x384] sm:$0xf]
    %v278 = vld [vmem:[%s2 + $0x388] sm:$0xf]
    %v279 = vld [vmem:[%s2 + $0x38c] sm:$0xf]
    %v280 = vld [vmem:[%s2 + $0x390] sm:$0xf]
    %v281 = vld [vmem:[%s2 + $0x394] sm:$0xf]
    %v282 = vld [vmem:[%s2 + $0x398] sm:$0xf]
    %v283 = vld [vmem:[%s2 + $0x39c] sm:$0xf]
    %v284 = vld [vmem:[%s2 + $0x3a0] sm:$0xf]
    %v285 = vld [vmem:[%s2 + $0x3a4] sm:$0xf]
    %v286 = vld [vmem:[%s2 + $0x3a8] sm:$0xf]
    %v287 = vld [vmem:[%s2 + $0x3ac] sm:$0xf]
    %v288 = vld [vmem:[%s2 + $0x3b0] sm:$0xf]
    %v289 = vld [vmem:[%s2 + $0x3b4] sm:$0xf]
    %v290 = vld [vmem:[%s2 + $0x3b8] sm:$0xf]
    %v291 = vld [vmem:[%s2 + $0x3bc] sm:$0xf]
    %v292 = vld [vmem:[%s2 + $0x3c0] sm:$0xf]
    %v293 = vld [vmem:[%s2 + $0x3c4] sm:$0xf]
    %v294 = vld [vmem:[%s2 + $0x3c8] sm:$0xf]
    %v295 = vld [vmem:[%s2 + $0x3cc] sm:$0xf]
    %v296 = vld [vmem:[%s2 + $0x3d0] sm:$0xf]
    %v297 = vld [vmem:[%s2 + $0x3d4] sm:$0xf]
    %v298 = vld [vmem:[%s2 + $0x3d8] sm:$0xf]
    %v299 = vld [vmem:[%s2 + $0x3dc] sm:$0xf]
    %v300 = vld [vmem:[%s2 + $0x3e0] sm:$0xf]
    %v301 = vld [vmem:[%s2 + $0x3e4] sm:$0xf]
    %v302 = vld [vmem:[%s2 + $0x3e8] sm:$0xf]
    %v303 = vld [vmem:[%s2 + $0x3ec] sm:$0xf]
    %v304 = vld [vmem:[%s2 + $0x3f0] sm:$0xf]
    %v305 = vld [vmem:[%s2 + $0x3f4] sm:$0xf]
    %v306 = vld [vmem:[%s2 + $0x3f8] sm:$0xf]
    %v307 = vld [vmem:[%s2 + $0x3fc] sm:$0xf]
    %v308 = vld [vmem:[%s2 + $0x400] sm:$0xf]
    %v309 = vld [vmem:[%s2 + $0x404] sm:$0xf]
    %v310 = vld [vmem:[%s2 + $0x408] sm:$0xf]
    %v311 = vld [vmem:[%s2 + $0x40c] sm:$0xf]
    %v312 = vld [vmem:[%s2 + $0x410] sm:$0xf]
    %v313 = vld [vmem:[%s2 + $0x414] sm:$0xf]
    %v314 = vld [vmem:[%s2 + $0x418] sm:$0xf]
    %v315 = vld [vmem:[%s2 + $0x41c] sm:$0xf]
    %v316 = vld [vmem:[%s2 + $0x420] sm:$0xf]
    %v317 = vld [vmem:[%s2 + $0x424] sm:$0xf]
    %v318 = vld [vmem:[%s2 + $0x428] sm:$0xf]
    %v319 = vld [vmem:[%s2 + $0x42c] sm:$0xf]
    %v320 = vld [vmem:[%s2 + $0x430] sm:$0xf]
    %v321 = vld [vmem:[%s2 + $0x434] sm:$0xf]
    %v322 = vld [vmem:[%s2 + $0x438] sm:$0xf]
    %v323 = vld [vmem:[%s2 + $0x43c] sm:$0xf]
    %v324 = vld [vmem:[%s2 + $0x440] sm:$0xf]
    %v325 = vld [vmem:[%s2 + $0x444] sm:$0xf]
    %v326 = vld [vmem:[%s2 + $0x448] sm:$0xf]
    %v327 = vld [vmem:[%s2 + $0x44c] sm:$0xf]
    %v328 = vld [vmem:[%s2 + $0x450] sm:$0xf]
    %v329 = vld [vmem:[%s2 + $0x454] sm:$0xf]
    %v330 = vld [vmem:[%s2 + $0x458] sm:$0xf]
    %v331 = vld [vmem:[%s2 + $0x45c] sm:$0xf]
    %v332 = vld [vmem:[%s2 + $0x460] sm:$0xf]
    %v333 = vld [vmem:[%s2 + $0x464] sm:$0xf]
    %v334 = vld [vmem:[%s2 + $0x468] sm:$0xf]
    %v335 = vld [vmem:[%s2 + $0x46c] sm:$0xf]
    %v336 = vld [vmem:[%s2 + $0x470] sm:$0xf]
    %v337 = vld [vmem:[%s2 + $0x474] sm:$0xf]
    %v338 = vld [vmem:[%s2 + $0x478] sm:$0xf]
    %v339 = vld [vmem:[%s2 + $0x47c] sm:$0xf]
    %v340 = vld [vmem:[%s2 + $0x480] sm:$0xf]
    %v341 = vld [vmem:[%s2 + $0x484] sm:$0xf]
    %v342 = vld [vmem:[%s2 + $0x488] sm:$0xf]
    %v343 = vld [vmem:[%s2 + $0x48c] sm:$0xf]
    %v344 = vld [vmem:[%s2 + $0x490] sm:$0xf]
    %v345 = vld [vmem:[%s2 + $0x494] sm:$0xf]
    %v346 = vld [vmem:[%s2 + $0x498] sm:$0xf]
    %v347 = vld [vmem:[%s2 + $0x49c] sm:$0xf]
    %v348 = vld [vmem:[%s2 + $0x4a0] sm:$0xf]
    %v349 = vld [vmem:[%s2 + $0x4a4] sm:$0xf]
    %v350 = vld [vmem:[%s2 + $0x4a8] sm:$0xf]
    %v351 = vld [vmem:[%s2 + $0x4ac] sm:$0xf]
    %v352 = vld [vmem:[%s2 + $0x4b0] sm:$0xf]
    %v353 = vld [vmem:[%s2 + $0x4b4] sm:$0xf]
    %v354 = vld [vmem:[%s2 + $0x4b8] sm:$0xf]
    %v355 = vld [vmem:[%s2 + $0x4bc] sm:$0xf]
    %v356 = vld [vmem:[%s2 + $0x4c0] sm:$0xf]
    %v357 = vld [vmem:[%s2 + $0x4c4] sm:$0xf]
    %v358 = vld [vmem:[%s2 + $0x4c8] sm:$0xf]
    %v359 = vld [vmem:[%s2 + $0x4cc] sm:$0xf]
    %v360 = vld [vmem:[%s2 + $0x4d0] sm:$0xf]
    %v361 = vld [vmem:[%s2 + $0x4d4] sm:$0xf]
    %v362 = vld [vmem:[%s2 + $0x4d8] sm:$0xf]
    %v363 = vld [vmem:[%s2 + $0x4dc] sm:$0xf]
    %v364 = vld [vmem:[%s2 + $0x4e0] sm:$0xf]
    %v365 = vld [vmem:[%s2 + $0x4e4] sm:$0xf]
    %v366 = vld [vmem:[%s2 + $0x4e8] sm:$0xf]
    %v367 = vld [vmem:[%s2 + $0x4ec] sm:$0xf]
    %v368 = vld [vmem:[%s2 + $0x4f0] sm:$0xf]
    %v369 = vld [vmem:[%s2 + $0x4f4] sm:$0xf]
    %v370 = vld [vmem:[%s2 + $0x4f8] sm:$0xf]
    %v371 = vld [vmem:[%s2 + $0x4fc] sm:$0xf]
    %v372 = vld [vmem:[%s2 + $0x500] sm:$0xf]
    %v373 = vld [vmem:[%s2 + $0x504] sm:$0xf]
    %v374 = vld [vmem:[%s2 + $0x508] sm:$0xf]
    %v375 = vld [vmem:[%s2 + $0x50c] sm:$0xf]
    %v376 = vld [vmem:[%s2 + $0x510] sm:$0xf]
    %v377 = vld [vmem:[%s2 + $0x514] sm:$0xf]
    %v378 = vld [vmem:[%s2 + $0x518] sm:$0xf]
    %v379 = vld [vmem:[%s2 + $0x51c] sm:$0xf]
    %v380 = vld [vmem:[%s2 + $0x520] sm:$0xf]
    %v381 = vld [vmem:[%s2 + $0x524] sm:$0xf]
    %v382 = vld [vmem:[%s2 + $0x528] sm:$0xf]
    %v383 = vld [vmem:[%s2 + $0x52c] sm:$0xf]
    %v384 = vld [vmem:[%s2 + $0x530] sm:$0xf]
    %v385 = vld [vmem:[%s2 + $0x534] sm:$0xf]
    %v386 = vld [vmem:[%s2 + $0x538] sm:$0xf]
    %v387 = vld [vmem:[%s2 + $0x53c] sm:$0xf]
    %v388 = vld [vmem:[%s2 + $0x540] sm:$0xf]
    %v389 = vld [vmem:[%s2 + $0x544] sm:$0xf]
    %v390 = vld [vmem:[%s2 + $0x548] sm:$0xf]
    %v391 = vld [vmem:[%s2 + $0x54c] sm:$0xf]
    %v392 = vld [vmem:[%s2 + $0x550] sm:$0xf]
    %v393 = vld [vmem:[%s2 + $0x554] sm:$0xf]
    %v394 = vld [vmem:[%s2 + $0x558] sm:$0xf]
    %v395 = vld [vmem:[%s2 + $0x55c] sm:$0xf]
    %v396 = vld [vmem:[%s2 + $0x560] sm:$0xf]
    %v397 = vld [vmem:[%s2 + $0x564] sm:$0xf]
    %v398 = vld [vmem:[%s2 + $0x568] sm:$0xf]
    %v399 = vld [vmem:[%s2 + $0x56c] sm:$0xf]
    %v400 = vld [vmem:[%s2 + $0x570] sm:$0xf]
    %v401 = vld [vmem:[%s2 + $0x574] sm:$0xf]
    %v402 = vld [vmem:[%s2 + $0x578] sm:$0xf]
    %v403 = vld [vmem:[%s2 + $0x57c] sm:$0xf]
    %v404 = vld [vmem:[%s2 + $0x580] sm:$0xf]
    %v405 = vld [vmem:[%s2 + $0x584] sm:$0xf]
    %v406 = vld [vmem:[%s2 + $0x588] sm:$0xf]
    %v407 = vld [vmem:[%s2 + $0x58c] sm:$0xf]
    %v408 = vld [vmem:[%s2 + $0x590] sm:$0xf]
    %v409 = vld [vmem:[%s2 + $0x594] sm:$0xf]
    %v410 = vld [vmem:[%s2 + $0x598] sm:$0xf]
    %v411 = vld [vmem:[%s2 + $0x59c] sm:$0xf]
    %v412 = vld [vmem:[%s2 + $0x5a0] sm:$0xf]
    %v413 = vld [vmem:[%s2 + $0x5a4] sm:$0xf]
    %v414 = vld [vmem:[%s2 + $0x5a8] sm:$0xf]
    %v415 = vld [vmem:[%s2 + $0x5ac] sm:$0xf]
    %v416 = vld [vmem:[%s2 + $0x5b0] sm:$0xf]
    %v417 = vld [vmem:[%s2 + $0x5b4] sm:$0xf]
    %v418 = vld [vmem:[%s2 + $0x5b8] sm:$0xf]
    %v419 = vld [vmem:[%s2 + $0x5bc] sm:$0xf]
    %v420 = vld [vmem:[%s2 + $0x5c0] sm:$0xf]
    %v421 = vld [vmem:[%s2 + $0x5c4] sm:$0xf]
    %v422 = vld [vmem:[%s2 + $0x5c8] sm:$0xf]
    %v423 = vld [vmem:[%s2 + $0x5cc] sm:$0xf]
    %v424 = vld [vmem:[%s2 + $0x5d0] sm:$0xf]
    %v425 = vld [vmem:[%s2 + $0x5d4] sm:$0xf]
    %v426 = vld [vmem:[%s2 + $0x5d8] sm:$0xf]
    %v427 = vld [vmem:[%s2 + $0x5dc] sm:$0xf]
    %v428 = vld [vmem:[%s2 + $0x5e0] sm:$0xf]
    %v429 = vld [vmem:[%s2 + $0x5e4] sm:$0xf]
    %v430 = vld [vmem:[%s2 + $0x5e8] sm:$0xf]
    %v431 = vld [vmem:[%s2 + $0x5ec] sm:$0xf]
    %v432 = vld [vmem:[%s2 + $0x5f0] sm:$0xf]
    %v433 = vld [vmem:[%s2 + $0x5f4] sm:$0xf]
    %v434 = vld [vmem:[%s2 + $0x5f8] sm:$0xf]
    %v435 = vld [vmem:[%s2 + $0x5fc] sm:$0xf]
    %v436 = vld [vmem:[%s2 + $0x600] sm:$0xf]
    %v437 = vld [vmem:[%s2 + $0x604] sm:$0xf]
    %v438 = vld [vmem:[%s2 + $0x608] sm:$0xf]
    %v439 = vld [vmem:[%s2 + $0x60c] sm:$0xf]
    %v440 = vld [vmem:[%s2 + $0x610] sm:$0xf]
    %v441 = vld [vmem:[%s2 + $0x614] sm:$0xf]
    %v442 = vld [vmem:[%s2 + $0x618] sm:$0xf]
    %v443 = vld [vmem:[%s2 + $0x61c] sm:$0xf]
    %v444 = vld [vmem:[%s2 + $0x620] sm:$0xf]
    %v445 = vld [vmem:[%s2 + $0x624] sm:$0xf]
    %v446 = vld [vmem:[%s2 + $0x628] sm:$0xf]
    %v447 = vld [vmem:[%s2 + $0x62c] sm:$0xf]
    %v448 = vld [vmem:[%s2 + $0x630] sm:$0xf]
    %v449 = vld [vmem:[%s2 + $0x634] sm:$0xf]
    %v450 = vld [vmem:[%s2 + $0x638] sm:$0xf]
    %v451 = vld [vmem:[%s2 + $0x63c] sm:$0xf]
    %v452 = vld [vmem:[%s2 + $0x640] sm:$0xf]
    %v453 = vld [vmem:[%s2 + $0x644] sm:$0xf]
    %v454 = vld [vmem:[%s2 + $0x648] sm:$0xf]
    %v455 = vld [vmem:[%s2 + $0x64c] sm:$0xf]
    %v456 = vld [vmem:[%s2 + $0x650] sm:$0xf]
    %v457 = vld [vmem:[%s2 + $0x654] sm:$0xf]
    %v458 = vld [vmem:[%s2 + $0x658] sm:$0xf]
    %v459 = vld [vmem:[%s2 + $0x65c] sm:$0xf]
    %v460 = vld [vmem:[%s2 + $0x660] sm:$0xf]
    %v461 = vld [vmem:[%s2 + $0x664] sm:$0xf]
    %v462 = vld [vmem:[%s2 + $0x668] sm:$0xf]
    %v463 = vld [vmem:[%s2 + $0x66c] sm:$0xf]
    %v464 = vld [vmem:[%s2 + $0x670] sm:$0xf]
    %v465 = vld [vmem:[%s2 + $0x674] sm:$0xf]
    %v466 = vld [vmem:[%s2 + $0x678] sm:$0xf]
    %v467 = vld [vmem:[%s2 + $0x67c] sm:$0xf]
    %v468 = vld [vmem:[%s2 + $0x680] sm:$0xf]
    %v469 = vld [vmem:[%s2 + $0x684] sm:$0xf]
    %v470 = vld [vmem:[%s2 + $0x688] sm:$0xf]
    %v471 = vld [vmem:[%s2 + $0x68c] sm:$0xf]
    %v472 = vld [vmem:[%s2 + $0x690] sm:$0xf]
    %v473 = vld [vmem:[%s2 + $0x694] sm:$0xf]
    %v474 = vld [vmem:[%s2 + $0x698] sm:$0xf]
    %v475 = vld [vmem:[%s2 + $0x69c] sm:$0xf]
    %v476 = vld [vmem:[%s2 + $0x6a0] sm:$0xf]
    %v477 = vld [vmem:[%s2 + $0x6a4] sm:$0xf]
    %v478 = vld [vmem:[%s2 + $0x6a8] sm:$0xf]
    %v479 = vld [vmem:[%s2 + $0x6ac] sm:$0xf]
    %v480 = vld [vmem:[%s2 + $0x6b0] sm:$0xf]
    %v481 = vld [vmem:[%s2 + $0x6b4] sm:$0xf]
    %v482 = vld [vmem:[%s2 + $0x6b8] sm:$0xf]
    %v483 = vld [vmem:[%s2 + $0x6bc] sm:$0xf]
    %v484 = vld [vmem:[%s2 + $0x6c0] sm:$0xf]
    %v485 = vld [vmem:[%s2 + $0x6c4] sm:$0xf]
    %v486 = vld [vmem:[%s2 + $0x6c8] sm:$0xf]
    %v487 = vld [vmem:[%s2 + $0x6cc] sm:$0xf]
    %v488 = vld [vmem:[%s2 + $0x6d0] sm:$0xf]
    %v489 = vld [vmem:[%s2 + $0x6d4] sm:$0xf]
    %v490 = vld [vmem:[%s2 + $0x6d8] sm:$0xf]
    %v491 = vld [vmem:[%s2 + $0x6dc] sm:$0xf]
    %v492 = vld [vmem:[%s2 + $0x6e0] sm:$0xf]
    %v493 = vld [vmem:[%s2 + $0x6e4] sm:$0xf]
    %v494 = vld [vmem:[%s2 + $0x6e8] sm:$0xf]
    %v495 = vld [vmem:[%s2 + $0x6ec] sm:$0xf]
    %v496 = vld [vmem:[%s2 + $0x6f0] sm:$0xf]
    %v497 = vld [vmem:[%s2 + $0x6f4] sm:$0xf]
    %v498 = vld [vmem:[%s2 + $0x6f8] sm:$0xf]
    %v499 = vld [vmem:[%s2 + $0x6fc] sm:$0xf]
    %v500 = vld [vmem:[%s2 + $0x700] sm:$0xf]
    %v501 = vld [vmem:[%s2 + $0x704] sm:$0xf]
    %v502 = vld [vmem:[%s2 + $0x708] sm:$0xf]
    %v503 = vld [vmem:[%s2 + $0x70c] sm:$0xf]
    %v504 = vld [vmem:[%s2 + $0x710] sm:$0xf]
    %v505 = vld [vmem:[%s2 + $0x714] sm:$0xf]
    %v506 = vld [vmem:[%s2 + $0x718] sm:$0xf]
    %v507 = vld [vmem:[%s2 + $0x71c] sm:$0xf]
    %v508 = vld [vmem:[%s2 + $0x720] sm:$0xf]
    %v509 = vld [vmem:[%s2 + $0x724] sm:$0xf]
    %v510 = vld [vmem:[%s2 + $0x728] sm:$0xf]
    %v511 = vld [vmem:[%s2 + $0x72c] sm:$0xf]
    %v512 = vld [vmem:[%s2 + $0x730] sm:$0xf]
    %v513 = vld [vmem:[%s2 + $0x734] sm:$0xf]
    %v514 = vld [vmem:[%s2 + $0x738] sm:$0xf]
    %v515 = vld [vmem:[%s2 + $0x73c] sm:$0xf]
    %v516 = vld [vmem:[%s2 + $0x740] sm:$0xf]
    %v517 = vld [vmem:[%s2 + $0x744] sm:$0xf]
    %v518 = vld [vmem:[%s2 + $0x748] sm:$0xf]
    %v519 = vld [vmem:[%s2 + $0x74c] sm:$0xf]
    %v520 = vld [vmem:[%s2 + $0x750] sm:$0xf]
    %v521 = vld [vmem:[%s2 + $0x754] sm:$0xf]
    %v522 = vld [vmem:[%s2 + $0x758] sm:$0xf]
    %v523 = vld [vmem:[%s2 + $0x75c] sm:$0xf]
    %v524 = vld [vmem:[%s2 + $0x760] sm:$0xf]
    %v525 = vld [vmem:[%s2 + $0x764] sm:$0xf]
    %v526 = vld [vmem:[%s2 + $0x768] sm:$0xf]
    %v527 = vld [vmem:[%s2 + $0x76c] sm:$0xf]
    %v528 = vld [vmem:[%s2 + $0x770] sm:$0xf]
    %v529 = vld [vmem:[%s2 + $0x774] sm:$0xf]
    %v530 = vld [vmem:[%s2 + $0x778] sm:$0xf]
    %v531 = vld [vmem:[%s2 + $0x77c] sm:$0xf]
    %v532 = vld [vmem:[%s2 + $0x780] sm:$0xf]
    %v533 = vld [vmem:[%s2 + $0x784] sm:$0xf]
    %v534 = vld [vmem:[%s2 + $0x788] sm:$0xf]
    %v535 = vld [vmem:[%s2 + $0x78c] sm:$0xf]
    %v536 = vld [vmem:[%s2 + $0x790] sm:$0xf]
    %v537 = vld [vmem:[%s2 + $0x794] sm:$0xf]
    %v538 = vld [vmem:[%s2 + $0x798] sm:$0xf]
    %v539 = vld [vmem:[%s2 + $0x79c] sm:$0xf]
    %v540 = vld [vmem:[%s2 + $0x7a0] sm:$0xf]
    %v541 = vld [vmem:[%s2 + $0x7a4] sm:$0xf]
    %v542 = vld [vmem:[%s2 + $0x7a8] sm:$0xf]
    %v543 = vld [vmem:[%s2 + $0x7ac] sm:$0xf]
    %v544 = vld [vmem:[%s2 + $0x7b0] sm:$0xf]
    %v545 = vld [vmem:[%s2 + $0x7b4] sm:$0xf]
    %v546 = vld [vmem:[%s2 + $0x7b8] sm:$0xf]
    %v547 = vld [vmem:[%s2 + $0x7bc] sm:$0xf]
    %v548 = vld [vmem:[%s2 + $0x7c0] sm:$0xf]
    %v549 = vld [vmem:[%s2 + $0x7c4] sm:$0xf]
    %v550 = vld [vmem:[%s2 + $0x7c8] sm:$0xf]
    %v551 = vld [vmem:[%s2 + $0x7cc] sm:$0xf]
    %v552 = vld [vmem:[%s2 + $0x7d0] sm:$0xf]
    %v553 = vld [vmem:[%s2 + $0x7d4] sm:$0xf]
    %v554 = vld [vmem:[%s2 + $0x7d8] sm:$0xf]
    %v555 = vld [vmem:[%s2 + $0x7dc] sm:$0xf]
    %v556 = vld [vmem:[%s2 + $0x7e0] sm:$0xf]
    %v557 = vld [vmem:[%s2 + $0x7e4] sm:$0xf]
    %v558 = vld [vmem:[%s2 + $0x7e8] sm:$0xf]
    %v559 = vld [vmem:[%s2 + $0x7ec] sm:$0xf]
    %v560 = vld [vmem:[%s2 + $0x7f0] sm:$0xf]
    %v561 = vld [vmem:[%s2 + $0x7f4] sm:$0xf]
    %v562 = vld [vmem:[%s2 + $0x7f8] sm:$0xf]
    %v563 = vld [vmem:[%s2 + $0x7fc] sm:$0xf]
    %v564 = vld [vmem:[%s2 + $0x800] sm:$0xf]
    %v565 = vld [vmem:[%s2 + $0x804] sm:$0xf]
    %v566 = vld [vmem:[%s2 + $0x808] sm:$0xf]
    %v567 = vld [vmem:[%s2 + $0x80c] sm:$0xf]
    %v568 = vld [vmem:[%s2 + $0x810] sm:$0xf]
    %v569 = vld [vmem:[%s2 + $0x814] sm:$0xf]
    %v570 = vld [vmem:[%s2 + $0x818] sm:$0xf]
    %v571 = vld [vmem:[%s2 + $0x81c] sm:$0xf]
    %v572 = vld [vmem:[%s2 + $0x820] sm:$0xf]
    %v573 = vld [vmem:[%s2 + $0x824] sm:$0xf]
    %v574 = vld [vmem:[%s2 + $0x828] sm:$0xf]
    %v575 = vld [vmem:[%s2 + $0x82c] sm:$0xf]
    %v576 = vld [vmem:[%s2 + $0x830] sm:$0xf]
    %v577 = vld [vmem:[%s2 + $0x834] sm:$0xf]
    %v578 = vld [vmem:[%s2 + $0x838] sm:$0xf]
    %v579 = vld [vmem:[%s2 + $0x83c] sm:$0xf]
    %v580 = vld [vmem:[%s2 + $0x840] sm:$0xf]
    %v581 = vld [vmem:[%s2 + $0x844] sm:$0xf]
    %v582 = vld [vmem:[%s2 + $0x848] sm:$0xf]
    %v583 = vld [vmem:[%s2 + $0x84c] sm:$0xf]
    %v584 = vld [vmem:[%s2 + $0x850] sm:$0xf]
    %v585 = vld [vmem:[%s2 + $0x854] sm:$0xf]
    %v586 = vld [vmem:[%s2 + $0x858] sm:$0xf]
    %v587 = vld [vmem:[%s2 + $0x85c] sm:$0xf]
    %v588 = vld [vmem:[%s2 + $0x860] sm:$0xf]
    %v589 = vld [vmem:[%s2 + $0x864] sm:$0xf]
    %v590 = vld [vmem:[%s2 + $0x868] sm:$0xf]
    %v591 = vld [vmem:[%s2 + $0x86c] sm:$0xf]
    %v592 = vld [vmem:[%s2 + $0x870] sm:$0xf]
    %v593 = vld [vmem:[%s2 + $0x874] sm:$0xf]
    %v594 = vld [vmem:[%s2 + $0x878] sm:$0xf]
    %v595 = vld [vmem:[%s2 + $0x87c] sm:$0xf]
    %v596 = vld [vmem:[%s2 + $0x880] sm:$0xf]
    %v597 = vld [vmem:[%s2 + $0x884] sm:$0xf]
    %v598 = vld [vmem:[%s2 + $0x888] sm:$0xf]
    %v599 = vld [vmem:[%s2 + $0x88c] sm:$0xf]
    %v600 = vld [vmem:[%s2 + $0x890] sm:$0xf]
    %v601 = vld [vmem:[%s2 + $0x894] sm:$0xf]
    %v602 = vld [vmem:[%s2 + $0x898] sm:$0xf]
    %v603 = vld [vmem:[%s2 + $0x89c] sm:$0xf]
    %v604 = vld [vmem:[%s2 + $0x8a0] sm:$0xf]
    %v605 = vld [vmem:[%s2 + $0x8a4] sm:$0xf]
    %v606 = vld [vmem:[%s2 + $0x8a8] sm:$0xf]
    %v607 = vld [vmem:[%s2 + $0x8ac] sm:$0xf]
    %v608 = vld [vmem:[%s2 + $0x8b0] sm:$0xf]
    %v609 = vld [vmem:[%s2 + $0x8b4] sm:$0xf]
    %v610 = vld [vmem:[%s2 + $0x8b8] sm:$0xf]
    %v611 = vld [vmem:[%s2 + $0x8bc] sm:$0xf]
    %v612 = vld [vmem:[%s2 + $0x8c0] sm:$0xf]
    %v613 = vld [vmem:[%s2 + $0x8c4] sm:$0xf]
    %v614 = vld [vmem:[%s2 + $0x8c8] sm:$0xf]
    %v615 = vld [vmem:[%s2 + $0x8cc] sm:$0xf]
    %v616 = vld [vmem:[%s2 + $0x8d0] sm:$0xf]
    %v617 = vld [vmem:[%s2 + $0x8d4] sm:$0xf]
    %v618 = vld [vmem:[%s2 + $0x8d8] sm:$0xf]
    %v619 = vld [vmem:[%s2 + $0x8dc] sm:$0xf]
    %v620 = vld [vmem:[%s2 + $0x8e0] sm:$0xf]
    %v621 = vld [vmem:[%s2 + $0x8e4] sm:$0xf]
    %v622 = vld [vmem:[%s2 + $0x8e8] sm:$0xf]
    %v623 = vld [vmem:[%s2 + $0x8ec] sm:$0xf]
    %v624 = vld [vmem:[%s2 + $0x8f0] sm:$0xf]
    %v625 = vld [vmem:[%s2 + $0x8f4] sm:$0xf]
    %v626 = vld [vmem:[%s2 + $0x8f8] sm:$0xf]
    %v627 = vld [vmem:[%s2 + $0x8fc] sm:$0xf]
    %v628 = vld [vmem:[%s2 + $0x900] sm:$0xf]
    %v629 = vld [vmem:[%s2 + $0x904] sm:$0xf]
    %v630 = vld [vmem:[%s2 + $0x908] sm:$0xf]
    %v631 = vld [vmem:[%s2 + $0x90c] sm:$0xf]
    %v632 = vld [vmem:[%s2 + $0x910] sm:$0xf]
    %v633 = vld [vmem:[%s2 + $0x914] sm:$0xf]
    %v634 = vld [vmem:[%s2 + $0x918] sm:$0xf]
    %v635 = vld [vmem:[%s2 + $0x91c] sm:$0xf]
    %v636 = vld [vmem:[%s2 + $0x920] sm:$0xf]
    %v637 = vld [vmem:[%s2 + $0x924] sm:$0xf]
    %v638 = vld [vmem:[%s2 + $0x928] sm:$0xf]
    %v639 = vld [vmem:[%s2 + $0x92c] sm:$0xf]
    %v640 = vld [vmem:[%s2 + $0x930] sm:$0xf]
    %v641 = vld [vmem:[%s2 + $0x934] sm:$0xf]
    %v642 = vld [vmem:[%s2 + $0x938] sm:$0xf]
    %v643 = vld [vmem:[%s2 + $0x93c] sm:$0xf]
    %v644 = vld [vmem:[%s2 + $0x940] sm:$0xf]
    %v645 = vld [vmem:[%s2 + $0x944] sm:$0xf]
    %v646 = vld [vmem:[%s2 + $0x948] sm:$0xf]
    %v647 = vld [vmem:[%s2 + $0x94c] sm:$0xf]
    %v648 = vld [vmem:[%s2 + $0x950] sm:$0xf]
    %v649 = vld [vmem:[%s2 + $0x954] sm:$0xf]
    %v650 = vld [vmem:[%s2 + $0x958] sm:$0xf]
    %v651 = vld [vmem:[%s2 + $0x95c] sm:$0xf]
    %v652 = vld [vmem:[%s2 + $0x960] sm:$0xf]
    %v653 = vld [vmem:[%s2 + $0x964] sm:$0xf]
    %v654 = vld [vmem:[%s2 + $0x968] sm:$0xf]
    %v655 = vld [vmem:[%s2 + $0x96c] sm:$0xf]
    %v656 = vld [vmem:[%s2 + $0x970] sm:$0xf]
    %v657 = vld [vmem:[%s2 + $0x974] sm:$0xf]
    %v658 = vld [vmem:[%s2 + $0x978] sm:$0xf]
    %v659 = vld [vmem:[%s2 + $0x97c] sm:$0xf]
    %v660 = vld [vmem:[%s2 + $0x980] sm:$0xf]
    %v661 = vld [vmem:[%s2 + $0x984] sm:$0xf]
    %v662 = vld [vmem:[%s2 + $0x988] sm:$0xf]
    %v663 = vld [vmem:[%s2 + $0x98c] sm:$0xf]
    %v664 = vld [vmem:[%s2 + $0x990] sm:$0xf]
    %v665 = vld [vmem:[%s2 + $0x994] sm:$0xf]
    %v666 = vld [vmem:[%s2 + $0x998] sm:$0xf]
    %v667 = vld [vmem:[%s2 + $0x99c] sm:$0xf]
    %v668 = vld [vmem:[%s2 + $0x9a0] sm:$0xf]
    %v669 = vld [vmem:[%s2 + $0x9a4] sm:$0xf]
    %v670 = vld [vmem:[%s2 + $0x9a8] sm:$0xf]
    %v671 = vld [vmem:[%s2 + $0x9ac] sm:$0xf]
    %v672 = vld [vmem:[%s2 + $0x9b0] sm:$0xf]
    %v673 = vld [vmem:[%s2 + $0x9b4] sm:$0xf]
    %v674 = vld [vmem:[%s2 + $0x9b8] sm:$0xf]
    %v675 = vld [vmem:[%s2 + $0x9bc] sm:$0xf]
    %v676 = vld [vmem:[%s2 + $0x9c0] sm:$0xf]
    %v677 = vld [vmem:[%s2 + $0x9c4] sm:$0xf]
    %v678 = vld [vmem:[%s2 + $0x9c8] sm:$0xf]
    %v679 = vld [vmem:[%s2 + $0x9cc] sm:$0xf]
    %v680 = vld [vmem:[%s2 + $0x9d0] sm:$0xf]
    %v681 = vld [vmem:[%s2 + $0x9d4] sm:$0xf]
    %v682 = vld [vmem:[%s2 + $0x9d8] sm:$0xf]
    %v683 = vld [vmem:[%s2 + $0x9dc] sm:$0xf]
    %v684 = vld [vmem:[%s2 + $0x9e0] sm:$0xf]
    %v685 = vld [vmem:[%s2 + $0x9e4] sm:$0xf]
    %v686 = vld [vmem:[%s2 + $0x9e8] sm:$0xf]
    %v687 = vld [vmem:[%s2 + $0x9ec] sm:$0xf]
    %v688 = vld [vmem:[%s2 + $0x9f0] sm:$0xf]
    %v689 = vld [vmem:[%s2 + $0x9f4] sm:$0xf]
    %v690 = vld [vmem:[%s2 + $0x9f8] sm:$0xf]
    %v691 = vld [vmem:[%s2 + $0x9fc] sm:$0xf]
    %v692 = vld [vmem:[%s2 + $0xa00] sm:$0xf]
    %v693 = vld [vmem:[%s2 + $0xa04] sm:$0xf]
    %v694 = vld [vmem:[%s2 + $0xa08] sm:$0xf]
    %v695 = vld [vmem:[%s2 + $0xa0c] sm:$0xf]
    %v696 = vld [vmem:[%s2 + $0xa10] sm:$0xf]
    %v697 = vld [vmem:[%s2 + $0xa14] sm:$0xf]
    %v698 = vld [vmem:[%s2 + $0xa18] sm:$0xf]
    %v699 = vld [vmem:[%s2 + $0xa1c] sm:$0xf]
    %v700 = vld [vmem:[%s2 + $0xa20] sm:$0xf]
    %v701 = vld [vmem:[%s2 + $0xa24] sm:$0xf]
    %v702 = vld [vmem:[%s2 + $0xa28] sm:$0xf]
    %v703 = vld [vmem:[%s2 + $0xa2c] sm:$0xf]
    %v704 = vld [vmem:[%s2 + $0xa30] sm:$0xf]
    %v705 = vld [vmem:[%s2 + $0xa34] sm:$0xf]
    %v706 = vld [vmem:[%s2 + $0xa38] sm:$0xf]
    %v707 = vld [vmem:[%s2 + $0xa3c] sm:$0xf]
    %v708 = vld [vmem:[%s2 + $0xa40] sm:$0xf]
    %v709 = vld [vmem:[%s2 + $0xa44] sm:$0xf]
    %v710 = vld [vmem:[%s2 + $0xa48] sm:$0xf]
    %v711 = vld [vmem:[%s2 + $0xa4c] sm:$0xf]
    %v712 = vld [vmem:[%s2 + $0xa50] sm:$0xf]
    %v713 = vld [vmem:[%s2 + $0xa54] sm:$0xf]
    %v714 = vld [vmem:[%s2 + $0xa58] sm:$0xf]
    %v715 = vld [vmem:[%s2 + $0xa5c] sm:$0xf]
    %v716 = vld [vmem:[%s2 + $0xa60] sm:$0xf]
    %v717 = vld [vmem:[%s2 + $0xa64] sm:$0xf]
    %v718 = vld [vmem:[%s2 + $0xa68] sm:$0xf]
    %v719 = vld [vmem:[%s2 + $0xa6c] sm:$0xf]
    %v720 = vld [vmem:[%s2 + $0xa70] sm:$0xf]
    %v721 = vld [vmem:[%s2 + $0xa74] sm:$0xf]
    %v722 = vld [vmem:[%s2 + $0xa78] sm:$0xf]
    %v723 = vld [vmem:[%s2 + $0xa7c] sm:$0xf]
    %v724 = vld [vmem:[%s2 + $0xa80] sm:$0xf]
    %v725 = vld [vmem:[%s2 + $0xa84] sm:$0xf]
    %v726 = vld [vmem:[%s2 + $0xa88] sm:$0xf]
    %v727 = vld [vmem:[%s2 + $0xa8c] sm:$0xf]
    %v728 = vld [vmem:[%s2 + $0xa90] sm:$0xf]
    %v729 = vld [vmem:[%s2 + $0xa94] sm:$0xf]
    %v730 = vld [vmem:[%s2 + $0xa98] sm:$0xf]
    %v731 = vld [vmem:[%s2 + $0xa9c] sm:$0xf]
    %v732 = vld [vmem:[%s2 + $0xaa0] sm:$0xf]
    %v733 = vld [vmem:[%s2 + $0xaa4] sm:$0xf]
    %v734 = vld [vmem:[%s2 + $0xaa8] sm:$0xf]
    %v735 = vld [vmem:[%s2 + $0xaac] sm:$0xf]
    %v736 = vld [vmem:[%s2 + $0xab0] sm:$0xf]
    %v737 = vld [vmem:[%s2 + $0xab4] sm:$0xf]
    %v738 = vld [vmem:[%s2 + $0xab8] sm:$0xf]
    %v739 = vld [vmem:[%s2 + $0xabc] sm:$0xf]
    %v740 = vld [vmem:[%s2 + $0xac0] sm:$0xf]
    %v741 = vld [vmem:[%s2 + $0xac4] sm:$0xf]
    %v742 = vld [vmem:[%s2 + $0xac8] sm:$0xf]
    %v743 = vld [vmem:[%s2 + $0xacc] sm:$0xf]
    %v744 = vld [vmem:[%s2 + $0xad0] sm:$0xf]
    %v745 = vld [vmem:[%s2 + $0xad4] sm:$0xf]
    %v746 = vld [vmem:[%s2 + $0xad8] sm:$0xf]
    %v747 = vld [vmem:[%s2 + $0xadc] sm:$0xf]
    %v748 = vld [vmem:[%s3] sm:$0x1]
    %v750 = vlaneseq
    %v751 = vshrl.u32 %v750, 7
    %v752 = vsub.s32 0, %v751
    %v753 = vrot.slane %v748, %v752
    %v761 = vcombine.high %v46, %v46
    %v763 = vunpack.c.l.s4 1966171168
    %v764 = vunpack.c.0.s8 %v763
    %v765 = vlaneseq
    %v766 = vshrl.u32 %v765, 7
    %v767 = vsub.s32 %v764, %v766
    %v768 = vrot.slane %v46, %v767
    %v770 = vunpack.c.l.s4 1966171168
    %v771 = vunpack.c.0.s8 %v770
    %v772 = vlaneseq
    %v773 = vshrl.u32 %v772, 7
    %v774 = vsub.s32 %v771, %v773
    %v775 = vrot.slane %v761, %v774
    %v776 = vcombine.high %v768, %v768
    %v777 = vcombine.high %v775, %v775
    %v779 = vunpack.c.l.s4 1966171168
    %v780 = vunpack.c.0.s8 %v779
    %v781 = vlaneseq
    %v782 = vshrl.u32 %v781, 7
    %v783 = vsub.s32 %v780, %v782
    %v784 = vrot.slane %v768, %v783
    %v786 = vunpack.c.l.s4 1966171168
    %v787 = vunpack.c.0.s8 %v786
    %v788 = vlaneseq
    %v789 = vshrl.u32 %v788, 7
    %v790 = vsub.s32 %v787, %v789
    %v791 = vrot.slane %v775, %v790
    %v793 = vunpack.c.l.s4 1966171168
    %v794 = vunpack.c.0.s8 %v793
    %v795 = vlaneseq
    %v796 = vshrl.u32 %v795, 7
    %v797 = vsub.s32 %v794, %v796
    %v798 = vrot.slane %v776, %v797
    %v800 = vunpack.c.l.s4 1966171168
    %v801 = vunpack.c.0.s8 %v800
    %v802 = vlaneseq
    %v803 = vshrl.u32 %v802, 7
    %v804 = vsub.s32 %v801, %v803
    %v805 = vrot.slane %v777, %v804
    %v806 = vcombine.high %v784, %v784
    %v807 = vcombine.high %v791, %v791
    %v808 = vcombine.high %v798, %v798
    %v809 = vcombine.high %v805, %v805
    %v810 = vcombine.high %v47, %v47
    %v812 = vunpack.c.l.s4 1966171168
    %v813 = vunpack.c.0.s8 %v812
    %v814 = vlaneseq
    %v815 = vshrl.u32 %v814, 7
    %v816 = vsub.s32 %v813, %v815
    %v817 = vrot.slane %v47, %v816
    %v819 = vunpack.c.l.s4 1966171168
    %v820 = vunpack.c.0.s8 %v819
    %v821 = vlaneseq
    %v822 = vshrl.u32 %v821, 7
    %v823 = vsub.s32 %v820, %v822
    %v824 = vrot.slane %v810, %v823
    %v825 = vcombine.high %v817, %v817
    %v826 = vcombine.high %v824, %v824
    %v828 = vunpack.c.l.s4 1966171168
    %v829 = vunpack.c.0.s8 %v828
    %v830 = vlaneseq
    %v831 = vshrl.u32 %v830, 7
    %v832 = vsub.s32 %v829, %v831
    %v833 = vrot.slane %v817, %v832
    %v835 = vunpack.c.l.s4 1966171168
    %v836 = vunpack.c.0.s8 %v835
    %v837 = vlaneseq
    %v838 = vshrl.u32 %v837, 7
    %v839 = vsub.s32 %v836, %v838
    %v840 = vrot.slane %v824, %v839
    %v842 = vunpack.c.l.s4 1966171168
    %v843 = vunpack.c.0.s8 %v842
    %v844 = vlaneseq
    %v845 = vshrl.u32 %v844, 7
    %v846 = vsub.s32 %v843, %v845
    %v847 = vrot.slane %v825, %v846
    %v849 = vunpack.c.l.s4 1966171168
    %v850 = vunpack.c.0.s8 %v849
    %v851 = vlaneseq
    %v852 = vshrl.u32 %v851, 7
    %v853 = vsub.s32 %v850, %v852
    %v854 = vrot.slane %v826, %v853
    %v855 = vcombine.high %v833, %v833
    %v856 = vcombine.high %v840, %v840
    %v857 = vcombine.high %v847, %v847
    %v858 = vcombine.high %v854, %v854
    %v859 = vcombine.high %v48, %v48
    %v861 = vunpack.c.l.s4 1966171168
    %v862 = vunpack.c.0.s8 %v861
    %v863 = vlaneseq
    %v864 = vshrl.u32 %v863, 7
    %v865 = vsub.s32 %v862, %v864
    %v866 = vrot.slane %v48, %v865
    %v868 = vunpack.c.l.s4 1966171168
    %v869 = vunpack.c.0.s8 %v868
    %v870 = vlaneseq
    %v871 = vshrl.u32 %v870, 7
    %v872 = vsub.s32 %v869, %v871
    %v873 = vrot.slane %v859, %v872
    %v874 = vcombine.high %v866, %v866
    %v875 = vcombine.high %v873, %v873
    %v877 = vunpack.c.l.s4 1966171168
    %v878 = vunpack.c.0.s8 %v877
    %v879 = vlaneseq
    %v880 = vshrl.u32 %v879, 7
    %v881 = vsub.s32 %v878, %v880
    %v882 = vrot.slane %v866, %v881
    %v884 = vunpack.c.l.s4 1966171168
    %v885 = vunpack.c.0.s8 %v884
    %v886 = vlaneseq
    %v887 = vshrl.u32 %v886, 7
    %v888 = vsub.s32 %v885, %v887
    %v889 = vrot.slane %v873, %v888
    %v891 = vunpack.c.l.s4 1966171168
    %v892 = vunpack.c.0.s8 %v891
    %v893 = vlaneseq
    %v894 = vshrl.u32 %v893, 7
    %v895 = vsub.s32 %v892, %v894
    %v896 = vrot.slane %v874, %v895
    %v898 = vunpack.c.l.s4 1966171168
    %v899 = vunpack.c.0.s8 %v898
    %v900 = vlaneseq
    %v901 = vshrl.u32 %v900, 7
    %v902 = vsub.s32 %v899, %v901
    %v903 = vrot.slane %v875, %v902
    %v904 = vcombine.high %v882, %v882
    %v905 = vcombine.high %v889, %v889
    %v906 = vcombine.high %v896, %v896
    %v907 = vcombine.high %v903, %v903
    %v908 = vcombine.high %v49, %v49
    %v910 = vunpack.c.l.s4 1966171168
    %v911 = vunpack.c.0.s8 %v910
    %v912 = vlaneseq
    %v913 = vshrl.u32 %v912, 7
    %v914 = vsub.s32 %v911, %v913
    %v915 = vrot.slane %v49, %v914
    %v917 = vunpack.c.l.s4 1966171168
    %v918 = vunpack.c.0.s8 %v917
    %v919 = vlaneseq
    %v920 = vshrl.u32 %v919, 7
    %v921 = vsub.s32 %v918, %v920
    %v922 = vrot.slane %v908, %v921
    %v923 = vcombine.high %v915, %v915
    %v924 = vcombine.high %v922, %v922
    %v926 = vunpack.c.l.s4 1966171168
    %v927 = vunpack.c.0.s8 %v926
    %v928 = vlaneseq
    %v929 = vshrl.u32 %v928, 7
    %v930 = vsub.s32 %v927, %v929
    %v931 = vrot.slane %v915, %v930
    %v933 = vunpack.c.l.s4 1966171168
    %v934 = vunpack.c.0.s8 %v933
    %v935 = vlaneseq
    %v936 = vshrl.u32 %v935, 7
    %v937 = vsub.s32 %v934, %v936
    %v938 = vrot.slane %v922, %v937
    %v940 = vunpack.c.l.s4 1966171168
    %v941 = vunpack.c.0.s8 %v940
    %v942 = vlaneseq
    %v943 = vshrl.u32 %v942, 7
    %v944 = vsub.s32 %v941, %v943
    %v945 = vrot.slane %v923, %v944
    %v947 = vunpack.c.l.s4 1966171168
    %v948 = vunpack.c.0.s8 %v947
    %v949 = vlaneseq
    %v950 = vshrl.u32 %v949, 7
    %v951 = vsub.s32 %v948, %v950
    %v952 = vrot.slane %v924, %v951
    %v953 = vcombine.high %v931, %v931
    %v954 = vcombine.high %v938, %v938
    %v955 = vcombine.high %v945, %v945
    %v956 = vcombine.high %v952, %v952
    %v957 = vcombine.high %v50, %v50
    %v959 = vunpack.c.l.s4 1966171168
    %v960 = vunpack.c.0.s8 %v959
    %v961 = vlaneseq
    %v962 = vshrl.u32 %v961, 7
    %v963 = vsub.s32 %v960, %v962
    %v964 = vrot.slane %v50, %v963
    %v966 = vunpack.c.l.s4 1966171168
    %v967 = vunpack.c.0.s8 %v966
    %v968 = vlaneseq
    %v969 = vshrl.u32 %v968, 7
    %v970 = vsub.s32 %v967, %v969
    %v971 = vrot.slane %v957, %v970
    %v972 = vcombine.high %v964, %v964
    %v973 = vcombine.high %v971, %v971
    %v975 = vunpack.c.l.s4 1966171168
    %v976 = vunpack.c.0.s8 %v975
    %v977 = vlaneseq
    %v978 = vshrl.u32 %v977, 7
    %v979 = vsub.s32 %v976, %v978
    %v980 = vrot.slane %v964, %v979
    %v982 = vunpack.c.l.s4 1966171168
    %v983 = vunpack.c.0.s8 %v982
    %v984 = vlaneseq
    %v985 = vshrl.u32 %v984, 7
    %v986 = vsub.s32 %v983, %v985
    %v987 = vrot.slane %v971, %v986
    %v989 = vunpack.c.l.s4 1966171168
    %v990 = vunpack.c.0.s8 %v989
    %v991 = vlaneseq
    %v992 = vshrl.u32 %v991, 7
    %v993 = vsub.s32 %v990, %v992
    %v994 = vrot.slane %v972, %v993
    %v996 = vunpack.c.l.s4 1966171168
    %v997 = vunpack.c.0.s8 %v996
    %v998 = vlaneseq
    %v999 = vshrl.u32 %v998, 7
    %v1000 = vsub.s32 %v997, %v999
    %v1001 = vrot.slane %v973, %v1000
    %v1002 = vcombine.high %v980, %v980
    %v1003 = vcombine.high %v987, %v987
    %v1004 = vcombine.high %v994, %v994
    %v1005 = vcombine.high %v1001, %v1001
    %v1007 = vunpack.c.l.s4 1966171168
    %v1008 = vunpack.c.0.s8 %v1007
    %v1009 = vlaneseq
    %v1010 = vshrl.u32 %v1009, 7
    %v1011 = vsub.s32 %v1008, %v1010
    %v1012 = vrot.slane %v51, %v1011
    %v1013 = vcombine.high %v1012, %v1012
    %v1015 = vunpack.c.l.s4 1966171168
    %v1016 = vunpack.c.0.s8 %v1015
    %v1017 = vlaneseq
    %v1018 = vshrl.u32 %v1017, 7
    %v1019 = vsub.s32 %v1016, %v1018
    %v1020 = vrot.slane %v1012, %v1019
    %v1022 = vunpack.c.l.s4 1966171168
    %v1023 = vunpack.c.0.s8 %v1022
    %v1024 = vlaneseq
    %v1025 = vshrl.u32 %v1024, 7
    %v1026 = vsub.s32 %v1023, %v1025
    %v1027 = vrot.slane %v1013, %v1026
    %v1028 = vcombine.high %v1020, %v1020
    %v1029 = vcombine.high %v1027, %v1027
    %v1769 = vunpack.c.l.b16 %v52
    %v1770 = vunpack.c.l.b16 %v53
    %v1771 = vunpack.c.l.b16 %v54
    %v1772 = vunpack.c.l.b16 %v55
    %v1773 = vunpack.c.l.b16 %v56
    %v1774 = vunpack.c.l.b16 %v57
    %v1775 = vunpack.c.l.b16 %v58
    %v1776 = vunpack.c.l.b16 %v59
    %v1777 = vunpack.c.l.b16 %v60
    %v1778 = vunpack.c.l.b16 %v61
    %v1779 = vunpack.c.l.b16 %v62
    %v1780 = vunpack.c.l.b16 %v63
    %v1781 = vunpack.c.l.b16 %v64
    %v1782 = vunpack.c.l.b16 %v65
    %v1783 = vunpack.c.l.b16 %v66
    %v1784 = vunpack.c.l.b16 %v67
    %v1785 = vunpack.c.l.b16 %v68
    %v1786 = vunpack.c.l.b16 %v69
    %v1787 = vunpack.c.l.b16 %v70
    %v1788 = vunpack.c.l.b16 %v71
    %v1789 = vunpack.c.l.b16 %v72
    %v1790 = vunpack.c.l.b16 %v73
    %v1791 = vunpack.c.l.b16 %v74
    %v1792 = vunpack.c.l.b16 %v75
    %v1793 = vunpack.c.l.b16 %v76
    %v1794 = vunpack.c.l.b16 %v77
    %v1795 = vunpack.c.l.b16 %v78
    %v1796 = vunpack.c.l.b16 %v79
    %v1797 = vunpack.c.l.b16 %v80
    %v1798 = vunpack.c.l.b16 %v81
    %v1799 = vunpack.c.l.b16 %v82
    %v1800 = vunpack.c.l.b16 %v83
    %v1801 = vunpack.c.l.b16 %v84
    %v1802 = vunpack.c.l.b16 %v85
    %v1803 = vunpack.c.l.b16 %v86
    %v1804 = vunpack.c.l.b16 %v87
    %v1805 = vunpack.c.l.b16 %v88
    %v1806 = vunpack.c.l.b16 %v89
    %v1807 = vunpack.c.l.b16 %v90
    %v1808 = vunpack.c.l.b16 %v91
    %v1809 = vunpack.c.l.b16 %v92
    %v1810 = vunpack.c.l.b16 %v93
    %v1811 = vunpack.c.l.b16 %v94
    %v1812 = vunpack.c.l.b16 %v95
    %v1813 = vunpack.c.l.b16 %v96
    %v1814 = vunpack.c.l.b16 %v97
    %v1815 = vunpack.c.l.b16 %v98
    %v1816 = vunpack.c.l.b16 %v99
    %v1817 = vunpack.c.l.b16 %v100
    %v1818 = vunpack.c.l.b16 %v101
    %v1819 = vunpack.c.l.b16 %v102
    %v1820 = vunpack.c.l.b16 %v103
    %v1821 = vunpack.c.l.b16 %v104
    %v1822 = vunpack.c.l.b16 %v105
    %v1823 = vunpack.c.l.b16 %v106
    %v1824 = vunpack.c.l.b16 %v107
    %v1825 = vunpack.c.l.b16 %v108
    %v1826 = vunpack.c.l.b16 %v109
    %v1827 = vunpack.c.l.b16 %v110
    %v1828 = vunpack.c.l.b16 %v111
    %v1829 = vunpack.c.l.b16 %v112
    %v1830 = vunpack.c.l.b16 %v113
    %v1831 = vunpack.c.l.b16 %v114
    %v1832 = vunpack.c.l.b16 %v115
    %v1833 = vunpack.c.l.b16 %v116
    %v1834 = vunpack.c.l.b16 %v117
    %v1835 = vunpack.c.l.b16 %v118
    %v1836 = vunpack.c.l.b16 %v119
    %v1837 = vunpack.c.l.b16 %v120
    %v1838 = vunpack.c.l.b16 %v121
    %v1839 = vunpack.c.l.b16 %v122
    %v1840 = vunpack.c.l.b16 %v123
    %v1841 = vunpack.c.l.b16 %v124
    %v1842 = vunpack.c.l.b16 %v125
    %v1843 = vunpack.c.l.b16 %v126
    %v1844 = vunpack.c.l.b16 %v127
    %v1845 = vunpack.c.l.b16 %v128
    %v1846 = vunpack.c.l.b16 %v129
    %v1847 = vunpack.c.l.b16 %v130
    %v1848 = vunpack.c.l.b16 %v131
    %v1849 = vunpack.c.l.b16 %v132
    %v1850 = vunpack.c.l.b16 %v133
    %v1851 = vunpack.c.l.b16 %v134
    %v1852 = vunpack.c.l.b16 %v135
    %v1853 = vunpack.c.l.b16 %v136
    %v1854 = vunpack.c.l.b16 %v137
    %v1855 = vunpack.c.l.b16 %v138
    %v1856 = vunpack.c.l.b16 %v139
    %v1857 = vunpack.c.l.b16 %v140
    %v1858 = vunpack.c.l.b16 %v141
    %v1859 = vunpack.c.l.b16 %v142
    %v1860 = vunpack.c.l.b16 %v143
    %v1861 = vunpack.c.l.b16 %v144
    %v1862 = vunpack.c.l.b16 %v145
    %v1863 = vunpack.c.l.b16 %v146
    %v1864 = vunpack.c.l.b16 %v147
    %v1865 = vunpack.c.l.b16 %v148
    %v1866 = vunpack.c.l.b16 %v149
    %v1867 = vunpack.c.l.b16 %v150
    %v1868 = vunpack.c.l.b16 %v151
    %v1869 = vunpack.c.l.b16 %v152
    %v1870 = vunpack.c.l.b16 %v153
    %v1871 = vunpack.c.l.b16 %v154
    %v1872 = vunpack.c.l.b16 %v155
    %v1873 = vunpack.c.l.b16 %v156
    %v1874 = vunpack.c.l.b16 %v157
    %v1875 = vunpack.c.l.b16 %v158
    %v1876 = vunpack.c.l.b16 %v159
    %v1877 = vunpack.c.l.b16 %v160
    %v1878 = vunpack.c.l.b16 %v161
    %v1879 = vunpack.c.l.b16 %v162
    %v1880 = vunpack.c.l.b16 %v163
    %v1881 = vunpack.c.l.b16 %v164
    %v1882 = vunpack.c.l.b16 %v165
    %v1883 = vunpack.c.l.b16 %v166
    %v1884 = vunpack.c.l.b16 %v167
    %v1885 = vunpack.c.l.b16 %v168
    %v1886 = vunpack.c.l.b16 %v169
    %v1887 = vunpack.c.l.b16 %v170
    %v1888 = vunpack.c.l.b16 %v171
    %v1889 = vunpack.c.l.b16 %v172
    %v1890 = vunpack.c.l.b16 %v173
    %v1891 = vunpack.c.l.b16 %v174
    %v1892 = vunpack.c.l.b16 %v175
    %v1893 = vunpack.c.l.b16 %v176
    %v1894 = vunpack.c.l.b16 %v177
    %v1895 = vunpack.c.l.b16 %v178
    %v1896 = vunpack.c.l.b16 %v179
    %v1897 = vunpack.c.l.b16 %v180
    %v1898 = vunpack.c.l.b16 %v181
    %v1899 = vunpack.c.l.b16 %v182
    %v1900 = vunpack.c.l.b16 %v183
    %v1901 = vunpack.c.l.b16 %v184
    %v1902 = vunpack.c.l.b16 %v185
    %v1903 = vunpack.c.l.b16 %v186
    %v1904 = vunpack.c.l.b16 %v187
    %v1905 = vunpack.c.l.b16 %v188
    %v1906 = vunpack.c.l.b16 %v189
    %v1907 = vunpack.c.l.b16 %v190
    %v1908 = vunpack.c.l.b16 %v191
    %v1909 = vunpack.c.l.b16 %v192
    %v1910 = vunpack.c.l.b16 %v193
    %v1911 = vunpack.c.l.b16 %v194
    %v1912 = vunpack.c.l.b16 %v195
    %v1913 = vunpack.c.l.b16 %v196
    %v1914 = vunpack.c.l.b16 %v197
    %v1915 = vunpack.c.l.b16 %v198
    %v1916 = vunpack.c.l.b16 %v199
    %v1917 = vunpack.c.l.b16 %v200
    %v1918 = vunpack.c.l.b16 %v201
    %v1919 = vunpack.c.l.b16 %v202
    %v1920 = vunpack.c.l.b16 %v203
    %v1921 = vunpack.c.l.b16 %v204
    %v1922 = vunpack.c.l.b16 %v205
    %v1923 = vunpack.c.l.b16 %v206
    %v1924 = vunpack.c.l.b16 %v207
    %v1925 = vunpack.c.l.b16 %v208
    %v1926 = vunpack.c.l.b16 %v209
    %v1927 = vunpack.c.l.b16 %v210
    %v1928 = vunpack.c.l.b16 %v211
    %v1929 = vunpack.c.l.b16 %v212
    %v1930 = vunpack.c.l.b16 %v213
    %v1931 = vunpack.c.l.b16 %v214
    %v1932 = vunpack.c.l.b16 %v215
    %v1933 = vunpack.c.l.b16 %v216
    %v1934 = vunpack.c.l.b16 %v217
    %v1935 = vunpack.c.l.b16 %v218
    %v1936 = vunpack.c.l.b16 %v219
    %v1937 = vunpack.c.l.b16 %v220
    %v1938 = vunpack.c.l.b16 %v221
    %v1939 = vunpack.c.l.b16 %v222
    %v1940 = vunpack.c.l.b16 %v223
    %v1941 = vunpack.c.l.b16 %v224
    %v1942 = vunpack.c.l.b16 %v225
    %v1943 = vunpack.c.l.b16 %v226
    %v1944 = vunpack.c.l.b16 %v227
    %v1945 = vunpack.c.l.b16 %v228
    %v1946 = vunpack.c.l.b16 %v229
    %v1947 = vunpack.c.l.b16 %v230
    %v1948 = vunpack.c.l.b16 %v231
    %v1949 = vunpack.c.l.b16 %v232
    %v1950 = vunpack.c.l.b16 %v233
    %v1951 = vunpack.c.l.b16 %v234
    %v1952 = vunpack.c.l.b16 %v235
    %v1953 = vunpack.c.l.b16 %v236
    %v1954 = vunpack.c.l.b16 %v237
    %v1955 = vunpack.c.l.b16 %v238
    %v1956 = vunpack.c.l.b16 %v239
    %v1957 = vunpack.c.l.b16 %v240
    %v1958 = vunpack.c.l.b16 %v241
    %v1959 = vunpack.c.l.b16 %v242
    %v1960 = vunpack.c.l.b16 %v243
    %v1961 = vunpack.c.l.b16 %v244
    %v1962 = vunpack.c.l.b16 %v245
    %v1963 = vunpack.c.l.b16 %v246
    %v1964 = vunpack.c.l.b16 %v247
    %v1965 = vunpack.c.l.b16 %v248
    %v1966 = vunpack.c.l.b16 %v249
    %v1967 = vunpack.c.l.b16 %v250
    %v1968 = vunpack.c.l.b16 %v251
    %v1969 = vunpack.c.l.b16 %v252
    %v1970 = vunpack.c.l.b16 %v253
    %v1971 = vunpack.c.l.b16 %v254
    %v1972 = vunpack.c.l.b16 %v255
    %v1973 = vunpack.c.l.b16 %v256
    %v1974 = vunpack.c.l.b16 %v257
    %v1975 = vunpack.c.l.b16 %v258
    %v1976 = vunpack.c.l.b16 %v259
    %v1977 = vunpack.c.l.b16 %v260
    %v1978 = vunpack.c.l.b16 %v261
    %v1979 = vunpack.c.l.b16 %v262
    %v1980 = vunpack.c.l.b16 %v263
    %v1981 = vunpack.c.l.b16 %v264
    %v1982 = vunpack.c.l.b16 %v265
    %v1983 = vunpack.c.l.b16 %v266
    %v1984 = vunpack.c.l.b16 %v267
    %v1985 = vunpack.c.l.b16 %v268
    %v1986 = vunpack.c.l.b16 %v269
    %v1987 = vunpack.c.l.b16 %v270
    %v1988 = vunpack.c.l.b16 %v271
    %v1989 = vunpack.c.l.b16 %v272
    %v1990 = vunpack.c.l.b16 %v273
    %v1991 = vunpack.c.l.b16 %v274
    %v1992 = vunpack.c.l.b16 %v275
    %v1993 = vunpack.c.l.b16 %v276
    %v1994 = vunpack.c.l.b16 %v277
    %v1995 = vunpack.c.l.b16 %v278
    %v1996 = vunpack.c.l.b16 %v279
    %v1997 = vunpack.c.l.b16 %v280
    %v1998 = vunpack.c.l.b16 %v281
    %v1999 = vunpack.c.l.b16 %v282
    %v2000 = vunpack.c.l.b16 %v283
    %v2001 = vunpack.c.l.b16 %v284
    %v2002 = vunpack.c.l.b16 %v285
    %v2003 = vunpack.c.l.b16 %v286
    %v2004 = vunpack.c.l.b16 %v287
    %v2005 = vunpack.c.l.b16 %v288
    %v2006 = vunpack.c.l.b16 %v289
    %v2007 = vunpack.c.l.b16 %v290
    %v2008 = vunpack.c.l.b16 %v291
    %v2009 = vunpack.c.l.b16 %v292
    %v2010 = vunpack.c.l.b16 %v293
    %v2011 = vunpack.c.l.b16 %v294
    %v2012 = vunpack.c.l.b16 %v295
    %v2013 = vunpack.c.l.b16 %v296
    %v2014 = vunpack.c.l.b16 %v297
    %v2015 = vunpack.c.l.b16 %v298
    %v2016 = vunpack.c.l.b16 %v299
    %v2017 = vunpack.c.l.b16 %v300
    %v2018 = vunpack.c.l.b16 %v301
    %v2019 = vunpack.c.l.b16 %v302
    %v2020 = vunpack.c.l.b16 %v303
    %v2021 = vunpack.c.l.b16 %v304
    %v2022 = vunpack.c.l.b16 %v305
    %v2023 = vunpack.c.l.b16 %v306
    %v2024 = vunpack.c.l.b16 %v307
    %v2025 = vunpack.c.l.b16 %v308
    %v2026 = vunpack.c.l.b16 %v309
    %v2027 = vunpack.c.l.b16 %v310
    %v2028 = vunpack.c.l.b16 %v311
    %v2029 = vunpack.c.l.b16 %v312
    %v2030 = vunpack.c.l.b16 %v313
    %v2031 = vunpack.c.l.b16 %v314
    %v2032 = vunpack.c.l.b16 %v315
    %v2033 = vunpack.c.l.b16 %v316
    %v2034 = vunpack.c.l.b16 %v317
    %v2035 = vunpack.c.l.b16 %v318
    %v2036 = vunpack.c.l.b16 %v319
    %v2037 = vunpack.c.l.b16 %v320
    %v2038 = vunpack.c.l.b16 %v321
    %v2039 = vunpack.c.l.b16 %v322
    %v2040 = vunpack.c.l.b16 %v323
    %v2041 = vunpack.c.l.b16 %v324
    %v2042 = vunpack.c.l.b16 %v325
    %v2043 = vunpack.c.l.b16 %v326
    %v2044 = vunpack.c.l.b16 %v327
    %v2045 = vunpack.c.l.b16 %v328
    %v2046 = vunpack.c.l.b16 %v329
    %v2047 = vunpack.c.l.b16 %v330
    %v2048 = vunpack.c.l.b16 %v331
    %v2049 = vunpack.c.l.b16 %v332
    %v2050 = vunpack.c.l.b16 %v333
    %v2051 = vunpack.c.l.b16 %v334
    %v2052 = vunpack.c.l.b16 %v335
    %v2053 = vunpack.c.l.b16 %v336
    %v2054 = vunpack.c.l.b16 %v337
    %v2055 = vunpack.c.l.b16 %v338
    %v2056 = vunpack.c.l.b16 %v339
    %v2057 = vunpack.c.l.b16 %v340
    %v2058 = vunpack.c.l.b16 %v341
    %v2059 = vunpack.c.l.b16 %v342
    %v2060 = vunpack.c.l.b16 %v343
    %v2061 = vunpack.c.l.b16 %v344
    %v2062 = vunpack.c.l.b16 %v345
    %v2063 = vunpack.c.l.b16 %v346
    %v2064 = vunpack.c.l.b16 %v347
    %v2065 = vunpack.c.l.b16 %v348
    %v2066 = vunpack.c.l.b16 %v349
    %v2067 = vunpack.c.l.b16 %v350
    %v2068 = vunpack.c.l.b16 %v351
    %v2069 = vunpack.c.l.b16 %v352
    %v2070 = vunpack.c.l.b16 %v353
    %v2071 = vunpack.c.l.b16 %v354
    %v2072 = vunpack.c.l.b16 %v355
    %v2073 = vunpack.c.l.b16 %v356
    %v2074 = vunpack.c.l.b16 %v357
    %v2075 = vunpack.c.l.b16 %v358
    %v2076 = vunpack.c.l.b16 %v359
    %v2077 = vunpack.c.l.b16 %v360
    %v2078 = vunpack.c.l.b16 %v361
    %v2079 = vunpack.c.l.b16 %v362
    %v2080 = vunpack.c.l.b16 %v363
    %v2081 = vunpack.c.l.b16 %v364
    %v2082 = vunpack.c.l.b16 %v365
    %v2083 = vunpack.c.l.b16 %v366
    %v2084 = vunpack.c.l.b16 %v367
    %v2085 = vunpack.c.l.b16 %v368
    %v2086 = vunpack.c.l.b16 %v369
    %v2087 = vunpack.c.l.b16 %v370
    %v2088 = vunpack.c.l.b16 %v371
    %v2089 = vunpack.c.l.b16 %v372
    %v2090 = vunpack.c.l.b16 %v373
    %v2091 = vunpack.c.l.b16 %v374
    %v2092 = vunpack.c.l.b16 %v375
    %v2093 = vunpack.c.l.b16 %v376
    %v2094 = vunpack.c.l.b16 %v377
    %v2095 = vunpack.c.l.b16 %v378
    %v2096 = vunpack.c.l.b16 %v379
    %v2097 = vunpack.c.l.b16 %v380
    %v2098 = vunpack.c.l.b16 %v381
    %v2099 = vunpack.c.l.b16 %v382
    %v2100 = vunpack.c.l.b16 %v383
    %v2101 = vunpack.c.l.b16 %v384
    %v2102 = vunpack.c.l.b16 %v385
    %v2103 = vunpack.c.l.b16 %v386
    %v2104 = vunpack.c.l.b16 %v387
    %v2105 = vunpack.c.l.b16 %v388
    %v2106 = vunpack.c.l.b16 %v389
    %v2107 = vunpack.c.l.b16 %v390
    %v2108 = vunpack.c.l.b16 %v391
    %v2109 = vunpack.c.l.b16 %v392
    %v2110 = vunpack.c.l.b16 %v393
    %v2111 = vunpack.c.l.b16 %v394
    %v2112 = vunpack.c.l.b16 %v395
    %v2113 = vunpack.c.l.b16 %v396
    %v2114 = vunpack.c.l.b16 %v397
    %v2115 = vunpack.c.l.b16 %v398
    %v2116 = vunpack.c.l.b16 %v399
    %v2117 = vunpack.c.l.b16 %v400
    %v2118 = vunpack.c.l.b16 %v401
    %v2119 = vunpack.c.l.b16 %v402
    %v2120 = vunpack.c.l.b16 %v403
    %v2121 = vunpack.c.l.b16 %v404
    %v2122 = vunpack.c.l.b16 %v405
    %v2123 = vunpack.c.l.b16 %v406
    %v2124 = vunpack.c.l.b16 %v407
    %v2125 = vunpack.c.l.b16 %v408
    %v2126 = vunpack.c.l.b16 %v409
    %v2127 = vunpack.c.l.b16 %v410
    %v2128 = vunpack.c.l.b16 %v411
    %v2129 = vunpack.c.l.b16 %v412
    %v2130 = vunpack.c.l.b16 %v413
    %v2131 = vunpack.c.l.b16 %v414
    %v2132 = vunpack.c.l.b16 %v415
    %v2133 = vunpack.c.l.b16 %v416
    %v2134 = vunpack.c.l.b16 %v417
    %v2135 = vunpack.c.l.b16 %v418
    %v2136 = vunpack.c.l.b16 %v419
    %v2137 = vunpack.c.l.b16 %v420
    %v2138 = vunpack.c.l.b16 %v421
    %v2139 = vunpack.c.l.b16 %v422
    %v2140 = vunpack.c.l.b16 %v423
    %v2141 = vunpack.c.l.b16 %v424
    %v2142 = vunpack.c.l.b16 %v425
    %v2143 = vunpack.c.l.b16 %v426
    %v2144 = vunpack.c.l.b16 %v427
    %v2145 = vunpack.c.l.b16 %v428
    %v2146 = vunpack.c.l.b16 %v429
    %v2147 = vunpack.c.l.b16 %v430
    %v2148 = vunpack.c.l.b16 %v431
    %v2149 = vunpack.c.l.b16 %v432
    %v2150 = vunpack.c.l.b16 %v433
    %v2151 = vunpack.c.l.b16 %v434
    %v2152 = vunpack.c.l.b16 %v435
    %v2153 = vunpack.c.l.b16 %v436
    %v2154 = vunpack.c.l.b16 %v437
    %v2155 = vunpack.c.l.b16 %v438
    %v2156 = vunpack.c.l.b16 %v439
    %v2157 = vunpack.c.l.b16 %v440
    %v2158 = vunpack.c.l.b16 %v441
    %v2159 = vunpack.c.l.b16 %v442
    %v2160 = vunpack.c.l.b16 %v443
    %v2161 = vunpack.c.l.b16 %v444
    %v2162 = vunpack.c.l.b16 %v445
    %v2163 = vunpack.c.l.b16 %v446
    %v2164 = vunpack.c.l.b16 %v447
    %v2165 = vunpack.c.l.b16 %v448
    %v2166 = vunpack.c.l.b16 %v449
    %v2167 = vunpack.c.l.b16 %v450
    %v2168 = vunpack.c.l.b16 %v451
    %v2169 = vunpack.c.l.b16 %v452
    %v2170 = vunpack.c.l.b16 %v453
    %v2171 = vunpack.c.l.b16 %v454
    %v2172 = vunpack.c.l.b16 %v455
    %v2173 = vunpack.c.l.b16 %v456
    %v2174 = vunpack.c.l.b16 %v457
    %v2175 = vunpack.c.l.b16 %v458
    %v2176 = vunpack.c.l.b16 %v459
    %v2177 = vunpack.c.l.b16 %v460
    %v2178 = vunpack.c.l.b16 %v461
    %v2179 = vunpack.c.l.b16 %v462
    %v2180 = vunpack.c.l.b16 %v463
    %v2181 = vunpack.c.l.b16 %v464
    %v2182 = vunpack.c.l.b16 %v465
    %v2183 = vunpack.c.l.b16 %v466
    %v2184 = vunpack.c.l.b16 %v467
    %v2185 = vunpack.c.l.b16 %v468
    %v2186 = vunpack.c.l.b16 %v469
    %v2187 = vunpack.c.l.b16 %v470
    %v2188 = vunpack.c.l.b16 %v471
    %v2189 = vunpack.c.l.b16 %v472
    %v2190 = vunpack.c.l.b16 %v473
    %v2191 = vunpack.c.l.b16 %v474
    %v2192 = vunpack.c.l.b16 %v475
    %v2193 = vunpack.c.l.b16 %v476
    %v2194 = vunpack.c.l.b16 %v477
    %v2195 = vunpack.c.l.b16 %v478
    %v2196 = vunpack.c.l.b16 %v479
    %v2197 = vunpack.c.l.b16 %v480
    %v2198 = vunpack.c.l.b16 %v481
    %v2199 = vunpack.c.l.b16 %v482
    %v2200 = vunpack.c.l.b16 %v483
    %v2201 = vunpack.c.l.b16 %v484
    %v2202 = vunpack.c.l.b16 %v485
    %v2203 = vunpack.c.l.b16 %v486
    %v2204 = vunpack.c.l.b16 %v487
    %v2205 = vunpack.c.l.b16 %v488
    %v2206 = vunpack.c.l.b16 %v489
    %v2207 = vunpack.c.l.b16 %v490
    %v2208 = vunpack.c.l.b16 %v491
    %v2209 = vunpack.c.l.b16 %v492
    %v2210 = vunpack.c.l.b16 %v493
    %v2211 = vunpack.c.l.b16 %v494
    %v2212 = vunpack.c.l.b16 %v495
    %v2213 = vunpack.c.l.b16 %v496
    %v2214 = vunpack.c.l.b16 %v497
    %v2215 = vunpack.c.l.b16 %v498
    %v2216 = vunpack.c.l.b16 %v499
    %v2217 = vunpack.c.l.b16 %v500
    %v2218 = vunpack.c.l.b16 %v501
    %v2219 = vunpack.c.l.b16 %v502
    %v2220 = vunpack.c.l.b16 %v503
    %v2221 = vunpack.c.l.b16 %v504
    %v2222 = vunpack.c.l.b16 %v505
    %v2223 = vunpack.c.l.b16 %v506
    %v2224 = vunpack.c.l.b16 %v507
    %v2225 = vunpack.c.l.b16 %v508
    %v2226 = vunpack.c.l.b16 %v509
    %v2227 = vunpack.c.l.b16 %v510
    %v2228 = vunpack.c.l.b16 %v511
    %v2229 = vunpack.c.l.b16 %v512
    %v2230 = vunpack.c.l.b16 %v513
    %v2231 = vunpack.c.l.b16 %v514
    %v2232 = vunpack.c.l.b16 %v515
    %v2233 = vunpack.c.l.b16 %v516
    %v2234 = vunpack.c.l.b16 %v517
    %v2235 = vunpack.c.l.b16 %v518
    %v2236 = vunpack.c.l.b16 %v519
    %v2237 = vunpack.c.l.b16 %v520
    %v2238 = vunpack.c.l.b16 %v521
    %v2239 = vunpack.c.l.b16 %v522
    %v2240 = vunpack.c.l.b16 %v523
    %v2241 = vunpack.c.l.b16 %v524
    %v2242 = vunpack.c.l.b16 %v525
    %v2243 = vunpack.c.l.b16 %v526
    %v2244 = vunpack.c.l.b16 %v527
    %v2245 = vunpack.c.l.b16 %v528
    %v2246 = vunpack.c.l.b16 %v529
    %v2247 = vunpack.c.l.b16 %v530
    %v2248 = vunpack.c.l.b16 %v531
    %v2249 = vunpack.c.l.b16 %v532
    %v2250 = vunpack.c.l.b16 %v533
    %v2251 = vunpack.c.l.b16 %v534
    %v2252 = vunpack.c.l.b16 %v535
    %v2253 = vunpack.c.l.b16 %v536
    %v2254 = vunpack.c.l.b16 %v537
    %v2255 = vunpack.c.l.b16 %v538
    %v2256 = vunpack.c.l.b16 %v539
    %v2257 = vunpack.c.l.b16 %v540
    %v2258 = vunpack.c.l.b16 %v541
    %v2259 = vunpack.c.l.b16 %v542
    %v2260 = vunpack.c.l.b16 %v543
    %v2261 = vunpack.c.l.b16 %v544
    %v2262 = vunpack.c.l.b16 %v545
    %v2263 = vunpack.c.l.b16 %v546
    %v2264 = vunpack.c.l.b16 %v547
    %v2265 = vunpack.c.l.b16 %v548
    %v2266 = vunpack.c.l.b16 %v549
    %v2267 = vunpack.c.l.b16 %v550
    %v2268 = vunpack.c.l.b16 %v551
    %v2269 = vunpack.c.l.b16 %v552
    %v2270 = vunpack.c.l.b16 %v553
    %v2271 = vunpack.c.l.b16 %v554
    %v2272 = vunpack.c.l.b16 %v555
    %v2273 = vunpack.c.l.b16 %v556
    %v2274 = vunpack.c.l.b16 %v557
    %v2275 = vunpack.c.l.b16 %v558
    %v2276 = vunpack.c.l.b16 %v559
    %v2277 = vunpack.c.l.b16 %v560
    %v2278 = vunpack.c.l.b16 %v561
    %v2279 = vunpack.c.l.b16 %v562
    %v2280 = vunpack.c.l.b16 %v563
    %v2281 = vunpack.c.l.b16 %v564
    %v2282 = vunpack.c.l.b16 %v565
    %v2283 = vunpack.c.l.b16 %v566
    %v2284 = vunpack.c.l.b16 %v567
    %v2285 = vunpack.c.l.b16 %v568
    %v2286 = vunpack.c.l.b16 %v569
    %v2287 = vunpack.c.l.b16 %v570
    %v2288 = vunpack.c.l.b16 %v571
    %v2289 = vunpack.c.l.b16 %v572
    %v2290 = vunpack.c.l.b16 %v573
    %v2291 = vunpack.c.l.b16 %v574
    %v2292 = vunpack.c.l.b16 %v575
    %v2293 = vunpack.c.l.b16 %v576
    %v2294 = vunpack.c.l.b16 %v577
    %v2295 = vunpack.c.l.b16 %v578
    %v2296 = vunpack.c.l.b16 %v579
    %v2297 = vunpack.c.l.b16 %v580
    %v2298 = vunpack.c.l.b16 %v581
    %v2299 = vunpack.c.l.b16 %v582
    %v2300 = vunpack.c.l.b16 %v583
    %v2301 = vunpack.c.l.b16 %v584
    %v2302 = vunpack.c.l.b16 %v585
    %v2303 = vunpack.c.l.b16 %v586
    %v2304 = vunpack.c.l.b16 %v587
    %v2305 = vunpack.c.l.b16 %v588
    %v2306 = vunpack.c.l.b16 %v589
    %v2307 = vunpack.c.l.b16 %v590
    %v2308 = vunpack.c.l.b16 %v591
    %v2309 = vunpack.c.l.b16 %v592
    %v2310 = vunpack.c.l.b16 %v593
    %v2311 = vunpack.c.l.b16 %v594
    %v2312 = vunpack.c.l.b16 %v595
    %v2313 = vunpack.c.l.b16 %v596
    %v2314 = vunpack.c.l.b16 %v597
    %v2315 = vunpack.c.l.b16 %v598
    %v2316 = vunpack.c.l.b16 %v599
    %v2317 = vunpack.c.l.b16 %v600
    %v2318 = vunpack.c.l.b16 %v601
    %v2319 = vunpack.c.l.b16 %v602
    %v2320 = vunpack.c.l.b16 %v603
    %v2321 = vunpack.c.l.b16 %v604
    %v2322 = vunpack.c.l.b16 %v605
    %v2323 = vunpack.c.l.b16 %v606
    %v2324 = vunpack.c.l.b16 %v607
    %v2325 = vunpack.c.l.b16 %v608
    %v2326 = vunpack.c.l.b16 %v609
    %v2327 = vunpack.c.l.b16 %v610
    %v2328 = vunpack.c.l.b16 %v611
    %v2329 = vunpack.c.l.b16 %v612
    %v2330 = vunpack.c.l.b16 %v613
    %v2331 = vunpack.c.l.b16 %v614
    %v2332 = vunpack.c.l.b16 %v615
    %v2333 = vunpack.c.l.b16 %v616
    %v2334 = vunpack.c.l.b16 %v617
    %v2335 = vunpack.c.l.b16 %v618
    %v2336 = vunpack.c.l.b16 %v619
    %v2337 = vunpack.c.l.b16 %v620
    %v2338 = vunpack.c.l.b16 %v621
    %v2339 = vunpack.c.l.b16 %v622
    %v2340 = vunpack.c.l.b16 %v623
    %v2341 = vunpack.c.l.b16 %v624
    %v2342 = vunpack.c.l.b16 %v625
    %v2343 = vunpack.c.l.b16 %v626
    %v2344 = vunpack.c.l.b16 %v627
    %v2345 = vunpack.c.l.b16 %v628
    %v2346 = vunpack.c.l.b16 %v629
    %v2347 = vunpack.c.l.b16 %v630
    %v2348 = vunpack.c.l.b16 %v631
    %v2349 = vunpack.c.l.b16 %v632
    %v2350 = vunpack.c.l.b16 %v633
    %v2351 = vunpack.c.l.b16 %v634
    %v2352 = vunpack.c.l.b16 %v635
    %v2353 = vunpack.c.l.b16 %v636
    %v2354 = vunpack.c.l.b16 %v637
    %v2355 = vunpack.c.l.b16 %v638
    %v2356 = vunpack.c.l.b16 %v639
    %v2357 = vunpack.c.l.b16 %v640
    %v2358 = vunpack.c.l.b16 %v641
    %v2359 = vunpack.c.l.b16 %v642
    %v2360 = vunpack.c.l.b16 %v643
    %v2361 = vunpack.c.l.b16 %v644
    %v2362 = vunpack.c.l.b16 %v645
    %v2363 = vunpack.c.l.b16 %v646
    %v2364 = vunpack.c.l.b16 %v647
    %v2365 = vunpack.c.l.b16 %v648
    %v2366 = vunpack.c.l.b16 %v649
    %v2367 = vunpack.c.l.b16 %v650
    %v2368 = vunpack.c.l.b16 %v651
    %v2369 = vunpack.c.l.b16 %v652
    %v2370 = vunpack.c.l.b16 %v653
    %v2371 = vunpack.c.l.b16 %v654
    %v2372 = vunpack.c.l.b16 %v655
    %v2373 = vunpack.c.l.b16 %v656
    %v2374 = vunpack.c.l.b16 %v657
    %v2375 = vunpack.c.l.b16 %v658
    %v2376 = vunpack.c.l.b16 %v659
    %v2377 = vunpack.c.l.b16 %v660
    %v2378 = vunpack.c.l.b16 %v661
    %v2379 = vunpack.c.l.b16 %v662
    %v2380 = vunpack.c.l.b16 %v663
    %v2381 = vunpack.c.l.b16 %v664
    %v2382 = vunpack.c.l.b16 %v665
    %v2383 = vunpack.c.l.b16 %v666
    %v2384 = vunpack.c.l.b16 %v667
    %v2385 = vunpack.c.l.b16 %v668
    %v2386 = vunpack.c.l.b16 %v669
    %v2387 = vunpack.c.l.b16 %v670
    %v2388 = vunpack.c.l.b16 %v671
    %v2389 = vunpack.c.l.b16 %v672
    %v2390 = vunpack.c.l.b16 %v673
    %v2391 = vunpack.c.l.b16 %v674
    %v2392 = vunpack.c.l.b16 %v675
    %v2393 = vunpack.c.l.b16 %v676
    %v2394 = vunpack.c.l.b16 %v677
    %v2395 = vunpack.c.l.b16 %v678
    %v2396 = vunpack.c.l.b16 %v679
    %v2397 = vunpack.c.l.b16 %v680
    %v2398 = vunpack.c.l.b16 %v681
    %v2399 = vunpack.c.l.b16 %v682
    %v2400 = vunpack.c.l.b16 %v683
    %v2401 = vunpack.c.l.b16 %v684
    %v2402 = vunpack.c.l.b16 %v685
    %v2403 = vunpack.c.l.b16 %v686
    %v2404 = vunpack.c.l.b16 %v687
    %v2405 = vunpack.c.l.b16 %v688
    %v2406 = vunpack.c.l.b16 %v689
    %v2407 = vunpack.c.l.b16 %v690
    %v2408 = vunpack.c.l.b16 %v691
    %v2409 = vunpack.c.l.b16 %v692
    %v2410 = vunpack.c.l.b16 %v693
    %v2411 = vunpack.c.l.b16 %v694
    %v2412 = vunpack.c.l.b16 %v695
    %v2413 = vunpack.c.l.b16 %v696
    %v2414 = vunpack.c.l.b16 %v697
    %v2415 = vunpack.c.l.b16 %v698
    %v2416 = vunpack.c.l.b16 %v699
    %v2417 = vunpack.c.l.b16 %v700
    %v2418 = vunpack.c.l.b16 %v701
    %v2419 = vunpack.c.l.b16 %v702
    %v2420 = vunpack.c.l.b16 %v703
    %v2421 = vunpack.c.l.b16 %v704
    %v2422 = vunpack.c.l.b16 %v705
    %v2423 = vunpack.c.l.b16 %v706
    %v2424 = vunpack.c.l.b16 %v707
    %v2425 = vunpack.c.l.b16 %v708
    %v2426 = vunpack.c.l.b16 %v709
    %v2427 = vunpack.c.l.b16 %v710
    %v2428 = vunpack.c.l.b16 %v711
    %v2429 = vunpack.c.l.b16 %v712
    %v2430 = vunpack.c.l.b16 %v713
    %v2431 = vunpack.c.l.b16 %v714
    %v2432 = vunpack.c.l.b16 %v715
    %v2433 = vunpack.c.l.b16 %v716
    %v2434 = vunpack.c.l.b16 %v717
    %v2435 = vunpack.c.l.b16 %v718
    %v2436 = vunpack.c.l.b16 %v719
    %v2437 = vunpack.c.l.b16 %v720
    %v2438 = vunpack.c.l.b16 %v721
    %v2439 = vunpack.c.l.b16 %v722
    %v2440 = vunpack.c.l.b16 %v723
    %v2441 = vunpack.c.l.b16 %v724
    %v2442 = vunpack.c.l.b16 %v725
    %v2443 = vunpack.c.l.b16 %v726
    %v2444 = vunpack.c.l.b16 %v727
    %v2445 = vunpack.c.l.b16 %v728
    %v2446 = vunpack.c.l.b16 %v729
    %v2447 = vunpack.c.l.b16 %v730
    %v2448 = vunpack.c.l.b16 %v731
    %v2449 = vunpack.c.l.b16 %v732
    %v2450 = vunpack.c.l.b16 %v733
    %v2451 = vunpack.c.l.b16 %v734
    %v2452 = vunpack.c.l.b16 %v735
    %v2453 = vunpack.c.l.b16 %v736
    %v2454 = vunpack.c.l.b16 %v737
    %v2455 = vunpack.c.l.b16 %v738
    %v2456 = vunpack.c.l.b16 %v739
    %v2457 = vunpack.c.l.b16 %v740
    %v2458 = vunpack.c.l.b16 %v741
    %v2459 = vunpack.c.l.b16 %v742
    %v2460 = vunpack.c.l.b16 %v743
    %v2461 = vunpack.c.l.b16 %v744
    %v2462 = vunpack.c.l.b16 %v745
    %v2463 = vunpack.c.l.b16 %v746
    %v2464 = vunpack.c.l.b16 %v747
    %v2465 = vpack.c.b16 %v1770, %v1769
    %v2466 = vpack.c.b16 %v1772, %v1771
    %v2467 = vpack.c.b16 %v1774, %v1773
    %v2468 = vpack.c.b16 %v1776, %v1775
    %v2469 = vpack.c.b16 %v1778, %v1777
    %v2470 = vpack.c.b16 %v1780, %v1779
    %v2471 = vpack.c.b16 %v1782, %v1781
    %v2472 = vpack.c.b16 %v1784, %v1783
    %v2473 = vpack.c.b16 %v1786, %v1785
    %v2474 = vpack.c.b16 %v1788, %v1787
    %v2475 = vpack.c.b16 %v1790, %v1789
    %v2476 = vpack.c.b16 %v1792, %v1791
    %v2477 = vpack.c.b16 %v1794, %v1793
    %v2478 = vpack.c.b16 %v1796, %v1795
    %v2479 = vpack.c.b16 %v1798, %v1797
    %v2480 = vpack.c.b16 %v1800, %v1799
    %v2481 = vpack.c.b16 %v1802, %v1801
    %v2482 = vpack.c.b16 %v1804, %v1803
    %v2483 = vpack.c.b16 %v1806, %v1805
    %v2484 = vpack.c.b16 %v1808, %v1807
    %v2485 = vpack.c.b16 %v1810, %v1809
    %v2486 = vpack.c.b16 %v1812, %v1811
    %v2487 = vpack.c.b16 %v1814, %v1813
    %v2488 = vpack.c.b16 %v1816, %v1815
    %v2489 = vpack.c.b16 %v1818, %v1817
    %v2490 = vpack.c.b16 %v1820, %v1819
    %v2491 = vpack.c.b16 %v1822, %v1821
    %v2492 = vpack.c.b16 %v1824, %v1823
    %v2493 = vpack.c.b16 %v1826, %v1825
    %v2494 = vpack.c.b16 %v1828, %v1827
    %v2495 = vpack.c.b16 %v1830, %v1829
    %v2496 = vpack.c.b16 %v1832, %v1831
    %v2497 = vpack.c.b16 %v1834, %v1833
    %v2498 = vpack.c.b16 %v1836, %v1835
    %v2499 = vpack.c.b16 %v1838, %v1837
    %v2500 = vpack.c.b16 %v1840, %v1839
    %v2501 = vpack.c.b16 %v1842, %v1841
    %v2502 = vpack.c.b16 %v1844, %v1843
    %v2503 = vpack.c.b16 %v1846, %v1845
    %v2504 = vpack.c.b16 %v1848, %v1847
    %v2505 = vpack.c.b16 %v1850, %v1849
    %v2506 = vpack.c.b16 %v1852, %v1851
    %v2507 = vpack.c.b16 %v1854, %v1853
    %v2508 = vpack.c.b16 %v1856, %v1855
    %v2509 = vpack.c.b16 %v1858, %v1857
    %v2510 = vpack.c.b16 %v1860, %v1859
    %v2511 = vpack.c.b16 %v1862, %v1861
    %v2512 = vpack.c.b16 %v1864, %v1863
    %v2513 = vpack.c.b16 %v1866, %v1865
    %v2514 = vpack.c.b16 %v1868, %v1867
    %v2515 = vpack.c.b16 %v1870, %v1869
    %v2516 = vpack.c.b16 %v1872, %v1871
    %v2517 = vpack.c.b16 %v1874, %v1873
    %v2518 = vpack.c.b16 %v1876, %v1875
    %v2519 = vpack.c.b16 %v1878, %v1877
    %v2520 = vpack.c.b16 %v1880, %v1879
    %v2521 = vpack.c.b16 %v1882, %v1881
    %v2522 = vpack.c.b16 %v1884, %v1883
    %v2523 = vpack.c.b16 %v1886, %v1885
    %v2524 = vpack.c.b16 %v1888, %v1887
    %v2525 = vpack.c.b16 %v1890, %v1889
    %v2526 = vpack.c.b16 %v1892, %v1891
    %v2527 = vpack.c.b16 %v1894, %v1893
    %v2528 = vpack.c.b16 %v1896, %v1895
    %v2529 = vpack.c.b16 %v1898, %v1897
    %v2530 = vpack.c.b16 %v1900, %v1899
    %v2531 = vpack.c.b16 %v1902, %v1901
    %v2532 = vpack.c.b16 %v1904, %v1903
    %v2533 = vpack.c.b16 %v1906, %v1905
    %v2534 = vpack.c.b16 %v1908, %v1907
    %v2535 = vpack.c.b16 %v1910, %v1909
    %v2536 = vpack.c.b16 %v1912, %v1911
    %v2537 = vpack.c.b16 %v1914, %v1913
    %v2538 = vpack.c.b16 %v1916, %v1915
    %v2539 = vpack.c.b16 %v1918, %v1917
    %v2540 = vpack.c.b16 %v1920, %v1919
    %v2541 = vpack.c.b16 %v1922, %v1921
    %v2542 = vpack.c.b16 %v1924, %v1923
    %v2543 = vpack.c.b16 %v1926, %v1925
    %v2544 = vpack.c.b16 %v1928, %v1927
    %v2545 = vpack.c.b16 %v1930, %v1929
    %v2546 = vpack.c.b16 %v1932, %v1931
    %v2547 = vpack.c.b16 %v1934, %v1933
    %v2548 = vpack.c.b16 %v1936, %v1935
    %v2549 = vpack.c.b16 %v1938, %v1937
    %v2550 = vpack.c.b16 %v1940, %v1939
    %v2551 = vpack.c.b16 %v1942, %v1941
    %v2552 = vpack.c.b16 %v1944, %v1943
    %v2553 = vpack.c.b16 %v1946, %v1945
    %v2554 = vpack.c.b16 %v1948, %v1947
    %v2555 = vpack.c.b16 %v1950, %v1949
    %v2556 = vpack.c.b16 %v1952, %v1951
    %v2557 = vpack.c.b16 %v1954, %v1953
    %v2558 = vpack.c.b16 %v1956, %v1955
    %v2559 = vpack.c.b16 %v1958, %v1957
    %v2560 = vpack.c.b16 %v1960, %v1959
    %v2561 = vpack.c.b16 %v1962, %v1961
    %v2562 = vpack.c.b16 %v1964, %v1963
    %v2563 = vpack.c.b16 %v1966, %v1965
    %v2564 = vpack.c.b16 %v1968, %v1967
    %v2565 = vpack.c.b16 %v1970, %v1969
    %v2566 = vpack.c.b16 %v1972, %v1971
    %v2567 = vpack.c.b16 %v1974, %v1973
    %v2568 = vpack.c.b16 %v1976, %v1975
    %v2569 = vpack.c.b16 %v1978, %v1977
    %v2570 = vpack.c.b16 %v1980, %v1979
    %v2571 = vpack.c.b16 %v1982, %v1981
    %v2572 = vpack.c.b16 %v1984, %v1983
    %v2573 = vpack.c.b16 %v1986, %v1985
    %v2574 = vpack.c.b16 %v1988, %v1987
    %v2575 = vpack.c.b16 %v1990, %v1989
    %v2576 = vpack.c.b16 %v1992, %v1991
    %v2577 = vpack.c.b16 %v1994, %v1993
    %v2578 = vpack.c.b16 %v1996, %v1995
    %v2579 = vpack.c.b16 %v1998, %v1997
    %v2580 = vpack.c.b16 %v2000, %v1999
    %v2581 = vpack.c.b16 %v2002, %v2001
    %v2582 = vpack.c.b16 %v2004, %v2003
    %v2583 = vpack.c.b16 %v2006, %v2005
    %v2584 = vpack.c.b16 %v2008, %v2007
    %v2585 = vpack.c.b16 %v2010, %v2009
    %v2586 = vpack.c.b16 %v2012, %v2011
    %v2587 = vpack.c.b16 %v2014, %v2013
    %v2588 = vpack.c.b16 %v2016, %v2015
    %v2589 = vpack.c.b16 %v2018, %v2017
    %v2590 = vpack.c.b16 %v2020, %v2019
    %v2591 = vpack.c.b16 %v2022, %v2021
    %v2592 = vpack.c.b16 %v2024, %v2023
    %v2593 = vpack.c.b16 %v2026, %v2025
    %v2594 = vpack.c.b16 %v2028, %v2027
    %v2595 = vpack.c.b16 %v2030, %v2029
    %v2596 = vpack.c.b16 %v2032, %v2031
    %v2597 = vpack.c.b16 %v2034, %v2033
    %v2598 = vpack.c.b16 %v2036, %v2035
    %v2599 = vpack.c.b16 %v2038, %v2037
    %v2600 = vpack.c.b16 %v2040, %v2039
    %v2601 = vpack.c.b16 %v2042, %v2041
    %v2602 = vpack.c.b16 %v2044, %v2043
    %v2603 = vpack.c.b16 %v2046, %v2045
    %v2604 = vpack.c.b16 %v2048, %v2047
    %v2605 = vpack.c.b16 %v2050, %v2049
    %v2606 = vpack.c.b16 %v2052, %v2051
    %v2607 = vpack.c.b16 %v2054, %v2053
    %v2608 = vpack.c.b16 %v2056, %v2055
    %v2609 = vpack.c.b16 %v2058, %v2057
    %v2610 = vpack.c.b16 %v2060, %v2059
    %v2611 = vpack.c.b16 %v2062, %v2061
    %v2612 = vpack.c.b16 %v2064, %v2063
    %v2613 = vpack.c.b16 %v2066, %v2065
    %v2614 = vpack.c.b16 %v2068, %v2067
    %v2615 = vpack.c.b16 %v2070, %v2069
    %v2616 = vpack.c.b16 %v2072, %v2071
    %v2617 = vpack.c.b16 %v2074, %v2073
    %v2618 = vpack.c.b16 %v2076, %v2075
    %v2619 = vpack.c.b16 %v2078, %v2077
    %v2620 = vpack.c.b16 %v2080, %v2079
    %v2621 = vpack.c.b16 %v2082, %v2081
    %v2622 = vpack.c.b16 %v2084, %v2083
    %v2623 = vpack.c.b16 %v2086, %v2085
    %v2624 = vpack.c.b16 %v2088, %v2087
    %v2625 = vpack.c.b16 %v2090, %v2089
    %v2626 = vpack.c.b16 %v2092, %v2091
    %v2627 = vpack.c.b16 %v2094, %v2093
    %v2628 = vpack.c.b16 %v2096, %v2095
    %v2629 = vpack.c.b16 %v2098, %v2097
    %v2630 = vpack.c.b16 %v2100, %v2099
    %v2631 = vpack.c.b16 %v2102, %v2101
    %v2632 = vpack.c.b16 %v2104, %v2103
    %v2633 = vpack.c.b16 %v2106, %v2105
    %v2634 = vpack.c.b16 %v2108, %v2107
    %v2635 = vpack.c.b16 %v2110, %v2109
    %v2636 = vpack.c.b16 %v2112, %v2111
    %v2637 = vpack.c.b16 %v2114, %v2113
    %v2638 = vpack.c.b16 %v2116, %v2115
    %v2639 = vpack.c.b16 %v2118, %v2117
    %v2640 = vpack.c.b16 %v2120, %v2119
    %v2641 = vpack.c.b16 %v2122, %v2121
    %v2642 = vpack.c.b16 %v2124, %v2123
    %v2643 = vpack.c.b16 %v2126, %v2125
    %v2644 = vpack.c.b16 %v2128, %v2127
    %v2645 = vpack.c.b16 %v2130, %v2129
    %v2646 = vpack.c.b16 %v2132, %v2131
    %v2647 = vpack.c.b16 %v2134, %v2133
    %v2648 = vpack.c.b16 %v2136, %v2135
    %v2649 = vpack.c.b16 %v2138, %v2137
    %v2650 = vpack.c.b16 %v2140, %v2139
    %v2651 = vpack.c.b16 %v2142, %v2141
    %v2652 = vpack.c.b16 %v2144, %v2143
    %v2653 = vpack.c.b16 %v2146, %v2145
    %v2654 = vpack.c.b16 %v2148, %v2147
    %v2655 = vpack.c.b16 %v2150, %v2149
    %v2656 = vpack.c.b16 %v2152, %v2151
    %v2657 = vpack.c.b16 %v2154, %v2153
    %v2658 = vpack.c.b16 %v2156, %v2155
    %v2659 = vpack.c.b16 %v2158, %v2157
    %v2660 = vpack.c.b16 %v2160, %v2159
    %v2661 = vpack.c.b16 %v2162, %v2161
    %v2662 = vpack.c.b16 %v2164, %v2163
    %v2663 = vpack.c.b16 %v2166, %v2165
    %v2664 = vpack.c.b16 %v2168, %v2167
    %v2665 = vpack.c.b16 %v2170, %v2169
    %v2666 = vpack.c.b16 %v2172, %v2171
    %v2667 = vpack.c.b16 %v2174, %v2173
    %v2668 = vpack.c.b16 %v2176, %v2175
    %v2669 = vpack.c.b16 %v2178, %v2177
    %v2670 = vpack.c.b16 %v2180, %v2179
    %v2671 = vpack.c.b16 %v2182, %v2181
    %v2672 = vpack.c.b16 %v2184, %v2183
    %v2673 = vpack.c.b16 %v2186, %v2185
    %v2674 = vpack.c.b16 %v2188, %v2187
    %v2675 = vpack.c.b16 %v2190, %v2189
    %v2676 = vpack.c.b16 %v2192, %v2191
    %v2677 = vpack.c.b16 %v2194, %v2193
    %v2678 = vpack.c.b16 %v2196, %v2195
    %v2679 = vpack.c.b16 %v2198, %v2197
    %v2680 = vpack.c.b16 %v2200, %v2199
    %v2681 = vpack.c.b16 %v2202, %v2201
    %v2682 = vpack.c.b16 %v2204, %v2203
    %v2683 = vpack.c.b16 %v2206, %v2205
    %v2684 = vpack.c.b16 %v2208, %v2207
    %v2685 = vpack.c.b16 %v2210, %v2209
    %v2686 = vpack.c.b16 %v2212, %v2211
    %v2687 = vpack.c.b16 %v2214, %v2213
    %v2688 = vpack.c.b16 %v2216, %v2215
    %v2689 = vpack.c.b16 %v2218, %v2217
    %v2690 = vpack.c.b16 %v2220, %v2219
    %v2691 = vpack.c.b16 %v2222, %v2221
    %v2692 = vpack.c.b16 %v2224, %v2223
    %v2693 = vpack.c.b16 %v2226, %v2225
    %v2694 = vpack.c.b16 %v2228, %v2227
    %v2695 = vpack.c.b16 %v2230, %v2229
    %v2696 = vpack.c.b16 %v2232, %v2231
    %v2697 = vpack.c.b16 %v2234, %v2233
    %v2698 = vpack.c.b16 %v2236, %v2235
    %v2699 = vpack.c.b16 %v2238, %v2237
    %v2700 = vpack.c.b16 %v2240, %v2239
    %v2701 = vpack.c.b16 %v2242, %v2241
    %v2702 = vpack.c.b16 %v2244, %v2243
    %v2703 = vpack.c.b16 %v2246, %v2245
    %v2704 = vpack.c.b16 %v2248, %v2247
    %v2705 = vpack.c.b16 %v2250, %v2249
    %v2706 = vpack.c.b16 %v2252, %v2251
    %v2707 = vpack.c.b16 %v2254, %v2253
    %v2708 = vpack.c.b16 %v2256, %v2255
    %v2709 = vpack.c.b16 %v2258, %v2257
    %v2710 = vpack.c.b16 %v2260, %v2259
    %v2711 = vpack.c.b16 %v2262, %v2261
    %v2712 = vpack.c.b16 %v2264, %v2263
    %v2713 = vpack.c.b16 %v2266, %v2265
    %v2714 = vpack.c.b16 %v2268, %v2267
    %v2715 = vpack.c.b16 %v2270, %v2269
    %v2716 = vpack.c.b16 %v2272, %v2271
    %v2717 = vpack.c.b16 %v2274, %v2273
    %v2718 = vpack.c.b16 %v2276, %v2275
    %v2719 = vpack.c.b16 %v2278, %v2277
    %v2720 = vpack.c.b16 %v2280, %v2279
    %v2721 = vpack.c.b16 %v2282, %v2281
    %v2722 = vpack.c.b16 %v2284, %v2283
    %v2723 = vpack.c.b16 %v2286, %v2285
    %v2724 = vpack.c.b16 %v2288, %v2287
    %v2725 = vpack.c.b16 %v2290, %v2289
    %v2726 = vpack.c.b16 %v2292, %v2291
    %v2727 = vpack.c.b16 %v2294, %v2293
    %v2728 = vpack.c.b16 %v2296, %v2295
    %v2729 = vpack.c.b16 %v2298, %v2297
    %v2730 = vpack.c.b16 %v2300, %v2299
    %v2731 = vpack.c.b16 %v2302, %v2301
    %v2732 = vpack.c.b16 %v2304, %v2303
    %v2733 = vpack.c.b16 %v2306, %v2305
    %v2734 = vpack.c.b16 %v2308, %v2307
    %v2735 = vpack.c.b16 %v2310, %v2309
    %v2736 = vpack.c.b16 %v2312, %v2311
    %v2737 = vpack.c.b16 %v2314, %v2313
    %v2738 = vpack.c.b16 %v2316, %v2315
    %v2739 = vpack.c.b16 %v2318, %v2317
    %v2740 = vpack.c.b16 %v2320, %v2319
    %v2741 = vpack.c.b16 %v2322, %v2321
    %v2742 = vpack.c.b16 %v2324, %v2323
    %v2743 = vpack.c.b16 %v2326, %v2325
    %v2744 = vpack.c.b16 %v2328, %v2327
    %v2745 = vpack.c.b16 %v2330, %v2329
    %v2746 = vpack.c.b16 %v2332, %v2331
    %v2747 = vpack.c.b16 %v2334, %v2333
    %v2748 = vpack.c.b16 %v2336, %v2335
    %v2749 = vpack.c.b16 %v2338, %v2337
    %v2750 = vpack.c.b16 %v2340, %v2339
    %v2751 = vpack.c.b16 %v2342, %v2341
    %v2752 = vpack.c.b16 %v2344, %v2343
    %v2753 = vpack.c.b16 %v2346, %v2345
    %v2754 = vpack.c.b16 %v2348, %v2347
    %v2755 = vpack.c.b16 %v2350, %v2349
    %v2756 = vpack.c.b16 %v2352, %v2351
    %v2757 = vpack.c.b16 %v2354, %v2353
    %v2758 = vpack.c.b16 %v2356, %v2355
    %v2759 = vpack.c.b16 %v2358, %v2357
    %v2760 = vpack.c.b16 %v2360, %v2359
    %v2761 = vpack.c.b16 %v2362, %v2361
    %v2762 = vpack.c.b16 %v2364, %v2363
    %v2763 = vpack.c.b16 %v2366, %v2365
    %v2764 = vpack.c.b16 %v2368, %v2367
    %v2765 = vpack.c.b16 %v2370, %v2369
    %v2766 = vpack.c.b16 %v2372, %v2371
    %v2767 = vpack.c.b16 %v2374, %v2373
    %v2768 = vpack.c.b16 %v2376, %v2375
    %v2769 = vpack.c.b16 %v2378, %v2377
    %v2770 = vpack.c.b16 %v2380, %v2379
    %v2771 = vpack.c.b16 %v2382, %v2381
    %v2772 = vpack.c.b16 %v2384, %v2383
    %v2773 = vpack.c.b16 %v2386, %v2385
    %v2774 = vpack.c.b16 %v2388, %v2387
    %v2775 = vpack.c.b16 %v2390, %v2389
    %v2776 = vpack.c.b16 %v2392, %v2391
    %v2777 = vpack.c.b16 %v2394, %v2393
    %v2778 = vpack.c.b16 %v2396, %v2395
    %v2779 = vpack.c.b16 %v2398, %v2397
    %v2780 = vpack.c.b16 %v2400, %v2399
    %v2781 = vpack.c.b16 %v2402, %v2401
    %v2782 = vpack.c.b16 %v2404, %v2403
    %v2783 = vpack.c.b16 %v2406, %v2405
    %v2784 = vpack.c.b16 %v2408, %v2407
    %v2785 = vpack.c.b16 %v2410, %v2409
    %v2786 = vpack.c.b16 %v2412, %v2411
    %v2787 = vpack.c.b16 %v2414, %v2413
    %v2788 = vpack.c.b16 %v2416, %v2415
    %v2789 = vpack.c.b16 %v2418, %v2417
    %v2790 = vpack.c.b16 %v2420, %v2419
    %v2791 = vpack.c.b16 %v2422, %v2421
    %v2792 = vpack.c.b16 %v2424, %v2423
    %v2793 = vpack.c.b16 %v2426, %v2425
    %v2794 = vpack.c.b16 %v2428, %v2427
    %v2795 = vpack.c.b16 %v2430, %v2429
    %v2796 = vpack.c.b16 %v2432, %v2431
    %v2797 = vpack.c.b16 %v2434, %v2433
    %v2798 = vpack.c.b16 %v2436, %v2435
    %v2799 = vpack.c.b16 %v2438, %v2437
    %v2800 = vpack.c.b16 %v2440, %v2439
    %v2801 = vpack.c.b16 %v2442, %v2441
    %v2802 = vpack.c.b16 %v2444, %v2443
    %v2803 = vpack.c.b16 %v2446, %v2445
    %v2804 = vpack.c.b16 %v2448, %v2447
    %v2805 = vpack.c.b16 %v2450, %v2449
    %v2806 = vpack.c.b16 %v2452, %v2451
    %v2807 = vpack.c.b16 %v2454, %v2453
    %v2808 = vpack.c.b16 %v2456, %v2455
    %v2809 = vpack.c.b16 %v2458, %v2457
    %v2810 = vpack.c.b16 %v2460, %v2459
    %v2811 = vpack.c.b16 %v2462, %v2461
    %v2812 = vpack.c.b16 %v2464, %v2463
    %vm3161 = vcmask 523264
    %v3163 = vsel %vm3161, %v1029, 0
    %3165 = vmatprep.subr.bf16.mxu0 0
    %3166 = vmatpush1.bf16.msra.mxu0 %v2465
    %3167 = vmatprep.subr.bf16.mxu0 0
    %3168 = vmatpush1.bf16.msra.mxu0 %v2466
    %3169 = vmatprep.subr.bf16.mxu0 0
    %3170 = vmatpush1.bf16.msra.mxu0 %v2467
    %3171 = vmatprep.subr.bf16.mxu0 0
    %3172 = vmatpush1.bf16.msra.mxu0 %v2468
    %3173 = vmatprep.subr.bf16.mxu0 0
    %3174 = vmatpush1.bf16.msra.mxu0 %v2469
    %3175 = vmatprep.subr.bf16.mxu0 0
    %3176 = vmatpush1.bf16.msra.mxu0 %v2470
    %3177 = vmatprep.subr.bf16.mxu0 0
    %3178 = vmatpush1.bf16.msra.mxu0 %v2471
    %3179 = vmatprep.subr.bf16.mxu0 0
    %3180 = vmatpush1.bf16.msra.mxu0 %v2472
    %3181 = vmatprep.subr.bf16.mxu0 0
    %3182 = vmatpush1.bf16.msra.mxu0 %v2473
    %3183 = vmatprep.subr.bf16.mxu0 0
    %3184 = vmatpush1.bf16.msra.mxu0 %v2474
    %3185 = vmatprep.subr.bf16.mxu0 0
    %3186 = vmatpush1.bf16.msra.mxu0 %v2475
    %3187 = vmatprep.subr.bf16.mxu0 0
    %3188 = vmatpush1.bf16.msra.mxu0 %v2476
    %3189 = vmatprep.subr.bf16.mxu0 0
    %3190 = vmatpush1.bf16.msra.mxu0 %v2477
    %3191 = vmatprep.subr.bf16.mxu0 0
    %3192 = vmatpush1.bf16.msra.mxu0 %v2478
    %3193 = vmatprep.subr.bf16.mxu0 0
    %3194 = vmatpush1.bf16.msra.mxu0 %v2479
    %3195 = vmatprep.subr.bf16.mxu0 0
    %3196 = vmatpush1.bf16.msra.mxu0 %v2480
    %3197 = vmatprep.mubr.bf16.mxu0 %v798
    %3198 = vmatmul.mubr.bf16.gmra.mrb[0].mxu0 %v784
    %v3199 = vpop.f32.mrb[0].mxu0
    %v3200 = vadd.f32 %v753, %v3199
    %v3201 = vpop.f32.mrb[0].mxu0
    %v3202 = vpop.f32.mrb[0].mxu0
    %v3203 = vpop.f32.mrb[0].mxu0
    %3204 = vdwg.mxu0
    %3205 = vmatprep.subr.bf16.mxu0 0
    %3206 = vmatpush1.bf16.msra.mxu0 %v2481
    %3207 = vmatprep.subr.bf16.mxu0 0
    %3208 = vmatpush1.bf16.msra.mxu0 %v2482
    %3209 = vmatprep.subr.bf16.mxu0 0
    %3210 = vmatpush1.bf16.msra.mxu0 %v2483
    %3211 = vmatprep.subr.bf16.mxu0 0
    %3212 = vmatpush1.bf16.msra.mxu0 %v2484
    %3213 = vmatprep.subr.bf16.mxu0 0
    %3214 = vmatpush1.bf16.msra.mxu0 %v2485
    %3215 = vmatprep.subr.bf16.mxu0 0
    %3216 = vmatpush1.bf16.msra.mxu0 %v2486
    %3217 = vmatprep.subr.bf16.mxu0 0
    %3218 = vmatpush1.bf16.msra.mxu0 %v2487
    %3219 = vmatprep.subr.bf16.mxu0 0
    %3220 = vmatpush1.bf16.msra.mxu0 %v2488
    %3221 = vmatprep.subr.bf16.mxu0 0
    %3222 = vmatpush1.bf16.msra.mxu0 %v2489
    %3223 = vmatprep.subr.bf16.mxu0 0
    %3224 = vmatpush1.bf16.msra.mxu0 %v2490
    %3225 = vmatprep.subr.bf16.mxu0 0
    %3226 = vmatpush1.bf16.msra.mxu0 %v2491
    %3227 = vmatprep.subr.bf16.mxu0 0
    %3228 = vmatpush1.bf16.msra.mxu0 %v2492
    %3229 = vmatprep.subr.bf16.mxu0 0
    %3230 = vmatpush1.bf16.msra.mxu0 %v2493
    %3231 = vmatprep.subr.bf16.mxu0 0
    %3232 = vmatpush1.bf16.msra.mxu0 %v2494
    %3233 = vmatprep.subr.bf16.mxu0 0
    %3234 = vmatpush1.bf16.msra.mxu0 %v2495
    %3235 = vmatprep.subr.bf16.mxu0 0
    %3236 = vmatpush1.bf16.msra.mxu0 %v2496
    %3237 = vmatprep.mubr.bf16.mxu0 %v808
    %3238 = vmatmul.mubr.bf16.gmra.mrb[0].mxu0 %v806
    %v3239 = vpop.f32.mrb[0].mxu0
    %v3240 = vadd.f32 %v3200, %v3239
    %v3241 = vpop.f32.mrb[0].mxu0
    %v3242 = vpop.f32.mrb[0].mxu0
    %v3243 = vpop.f32.mrb[0].mxu0
    %3244 = vdwg.mxu0
    %3245 = vmatprep.subr.bf16.mxu0 0
    %3246 = vmatpush1.bf16.msra.mxu0 %v2497
    %3247 = vmatprep.subr.bf16.mxu0 0
    %3248 = vmatpush1.bf16.msra.mxu0 %v2498
    %3249 = vmatprep.subr.bf16.mxu0 0
    %3250 = vmatpush1.bf16.msra.mxu0 %v2499
    %3251 = vmatprep.subr.bf16.mxu0 0
    %3252 = vmatpush1.bf16.msra.mxu0 %v2500
    %3253 = vmatprep.subr.bf16.mxu0 0
    %3254 = vmatpush1.bf16.msra.mxu0 %v2501
    %3255 = vmatprep.subr.bf16.mxu0 0
    %3256 = vmatpush1.bf16.msra.mxu0 %v2502
    %3257 = vmatprep.subr.bf16.mxu0 0
    %3258 = vmatpush1.bf16.msra.mxu0 %v2503
    %3259 = vmatprep.subr.bf16.mxu0 0
    %3260 = vmatpush1.bf16.msra.mxu0 %v2504
    %3261 = vmatprep.subr.bf16.mxu0 0
    %3262 = vmatpush1.bf16.msra.mxu0 %v2505
    %3263 = vmatprep.subr.bf16.mxu0 0
    %3264 = vmatpush1.bf16.msra.mxu0 %v2506
    %3265 = vmatprep.subr.bf16.mxu0 0
    %3266 = vmatpush1.bf16.msra.mxu0 %v2507
    %3267 = vmatprep.subr.bf16.mxu0 0
    %3268 = vmatpush1.bf16.msra.mxu0 %v2508
    %3269 = vmatprep.subr.bf16.mxu0 0
    %3270 = vmatpush1.bf16.msra.mxu0 %v2509
    %3271 = vmatprep.subr.bf16.mxu0 0
    %3272 = vmatpush1.bf16.msra.mxu0 %v2510
    %3273 = vmatprep.subr.bf16.mxu0 0
    %3274 = vmatpush1.bf16.msra.mxu0 %v2511
    %3275 = vmatprep.subr.bf16.mxu0 0
    %3276 = vmatpush1.bf16.msra.mxu0 %v2512
    %3277 = vmatprep.mubr.bf16.mxu0 %v805
    %3278 = vmatmul.mubr.bf16.gmra.mrb[0].mxu0 %v791
    %v3279 = vpop.f32.mrb[0].mxu0
    %v3280 = vadd.f32 %v3240, %v3279
    %v3281 = vpop.f32.mrb[0].mxu0
    %v3282 = vpop.f32.mrb[0].mxu0
    %v3283 = vpop.f32.mrb[0].mxu0
    %3284 = vdwg.mxu0
    %3285 = vmatprep.subr.bf16.mxu0 0
    %3286 = vmatpush1.bf16.msra.mxu0 %v2513
    %3287 = vmatprep.subr.bf16.mxu0 0
    %3288 = vmatpush1.bf16.msra.mxu0 %v2514
    %3289 = vmatprep.subr.bf16.mxu0 0
    %3290 = vmatpush1.bf16.msra.mxu0 %v2515
    %3291 = vmatprep.subr.bf16.mxu0 0
    %3292 = vmatpush1.bf16.msra.mxu0 %v2516
    %3293 = vmatprep.subr.bf16.mxu0 0
    %3294 = vmatpush1.bf16.msra.mxu0 %v2517
    %3295 = vmatprep.subr.bf16.mxu0 0
    %3296 = vmatpush1.bf16.msra.mxu0 %v2518
    %3297 = vmatprep.subr.bf16.mxu0 0
    %3298 = vmatpush1.bf16.msra.mxu0 %v2519
    %3299 = vmatprep.subr.bf16.mxu0 0
    %3300 = vmatpush1.bf16.msra.mxu0 %v2520
    %3301 = vmatprep.subr.bf16.mxu0 0
    %3302 = vmatpush1.bf16.msra.mxu0 %v2521
    %3303 = vmatprep.subr.bf16.mxu0 0
    %3304 = vmatpush1.bf16.msra.mxu0 %v2522
    %3305 = vmatprep.subr.bf16.mxu0 0
    %3306 = vmatpush1.bf16.msra.mxu0 %v2523
    %3307 = vmatprep.subr.bf16.mxu0 0
    %3308 = vmatpush1.bf16.msra.mxu0 %v2524
    %3309 = vmatprep.subr.bf16.mxu0 0
    %3310 = vmatpush1.bf16.msra.mxu0 %v2525
    %3311 = vmatprep.subr.bf16.mxu0 0
    %3312 = vmatpush1.bf16.msra.mxu0 %v2526
    %3313 = vmatprep.subr.bf16.mxu0 0
    %3314 = vmatpush1.bf16.msra.mxu0 %v2527
    %3315 = vmatprep.subr.bf16.mxu0 0
    %3316 = vmatpush1.bf16.msra.mxu0 %v2528
    %3317 = vmatprep.mubr.bf16.mxu0 %v809
    %3318 = vmatmul.mubr.bf16.gmra.mrb[0].mxu0 %v807
    %v3319 = vpop.f32.mrb[0].mxu0
    %v3320 = vadd.f32 %v3280, %v3319
    %v3321 = vpop.f32.mrb[0].mxu0
    %v3322 = vpop.f32.mrb[0].mxu0
    %v3323 = vpop.f32.mrb[0].mxu0
    %3324 = vdwg.mxu0
    %3325 = vmatprep.subr.bf16.mxu0 0
    %3326 = vmatpush1.bf16.msra.mxu0 %v2529
    %3327 = vmatprep.subr.bf16.mxu0 0
    %3328 = vmatpush1.bf16.msra.mxu0 %v2530
    %3329 = vmatprep.subr.bf16.mxu0 0
    %3330 = vmatpush1.bf16.msra.mxu0 %v2531
    %3331 = vmatprep.subr.bf16.mxu0 0
    %3332 = vmatpush1.bf16.msra.mxu0 %v2532
    %3333 = vmatprep.subr.bf16.mxu0 0
    %3334 = vmatpush1.bf16.msra.mxu0 %v2533
    %3335 = vmatprep.subr.bf16.mxu0 0
    %3336 = vmatpush1.bf16.msra.mxu0 %v2534
    %3337 = vmatprep.subr.bf16.mxu0 0
    %3338 = vmatpush1.bf16.msra.mxu0 %v2535
    %3339 = vmatprep.subr.bf16.mxu0 0
    %3340 = vmatpush1.bf16.msra.mxu0 %v2536
    %3341 = vmatprep.subr.bf16.mxu0 0
    %3342 = vmatpush1.bf16.msra.mxu0 %v2537
    %3343 = vmatprep.subr.bf16.mxu0 0
    %3344 = vmatpush1.bf16.msra.mxu0 %v2538
    %3345 = vmatprep.subr.bf16.mxu0 0
    %3346 = vmatpush1.bf16.msra.mxu0 %v2539
    %3347 = vmatprep.subr.bf16.mxu0 0
    %3348 = vmatpush1.bf16.msra.mxu0 %v2540
    %3349 = vmatprep.subr.bf16.mxu0 0
    %3350 = vmatpush1.bf16.msra.mxu0 %v2541
    %3351 = vmatprep.subr.bf16.mxu0 0
    %3352 = vmatpush1.bf16.msra.mxu0 %v2542
    %3353 = vmatprep.subr.bf16.mxu0 0
    %3354 = vmatpush1.bf16.msra.mxu0 %v2543
    %3355 = vmatprep.subr.bf16.mxu0 0
    %3356 = vmatpush1.bf16.msra.mxu0 %v2544
    %3357 = vmatprep.mubr.bf16.mxu0 %v847
    %3358 = vmatmul.mubr.bf16.gmra.mrb[0].mxu0 %v833
    %v3359 = vpop.f32.mrb[0].mxu0
    %v3360 = vadd.f32 %v3320, %v3359
    %v3361 = vpop.f32.mrb[0].mxu0
    %v3362 = vpop.f32.mrb[0].mxu0
    %v3363 = vpop.f32.mrb[0].mxu0
    %3364 = vdwg.mxu0
    %3365 = vmatprep.subr.bf16.mxu0 0
    %3366 = vmatpush1.bf16.msra.mxu0 %v2545
    %3367 = vmatprep.subr.bf16.mxu0 0
    %3368 = vmatpush1.bf16.msra.mxu0 %v2546
    %3369 = vmatprep.subr.bf16.mxu0 0
    %3370 = vmatpush1.bf16.msra.mxu0 %v2547
    %3371 = vmatprep.subr.bf16.mxu0 0
    %3372 = vmatpush1.bf16.msra.mxu0 %v2548
    %3373 = vmatprep.subr.bf16.mxu0 0
    %3374 = vmatpush1.bf16.msra.mxu0 %v2549
    %3375 = vmatprep.subr.bf16.mxu0 0
    %3376 = vmatpush1.bf16.msra.mxu0 %v2550
    %3377 = vmatprep.subr.bf16.mxu0 0
    %3378 = vmatpush1.bf16.msra.mxu0 %v2551
    %3379 = vmatprep.subr.bf16.mxu0 0
    %3380 = vmatpush1.bf16.msra.mxu0 %v2552
    %3381 = vmatprep.subr.bf16.mxu0 0
    %3382 = vmatpush1.bf16.msra.mxu0 %v2553
    %3383 = vmatprep.subr.bf16.mxu0 0
    %3384 = vmatpush1.bf16.msra.mxu0 %v2554
    %3385 = vmatprep.subr.bf16.mxu0 0
    %3386 = vmatpush1.bf16.msra.mxu0 %v2555
    %3387 = vmatprep.subr.bf16.mxu0 0
    %3388 = vmatpush1.bf16.msra.mxu0 %v2556
    %3389 = vmatprep.subr.bf16.mxu0 0
    %3390 = vmatpush1.bf16.msra.mxu0 %v2557
    %3391 = vmatprep.subr.bf16.mxu0 0
    %3392 = vmatpush1.bf16.msra.mxu0 %v2558
    %3393 = vmatprep.subr.bf16.mxu0 0
    %3394 = vmatpush1.bf16.msra.mxu0 %v2559
    %3395 = vmatprep.subr.bf16.mxu0 0
    %3396 = vmatpush1.bf16.msra.mxu0 %v2560
    %3397 = vmatprep.mubr.bf16.mxu0 %v857
    %3398 = vmatmul.mubr.bf16.gmra.mrb[0].mxu0 %v855
    %v3399 = vpop.f32.mrb[0].mxu0
    %v3400 = vadd.f32 %v3360, %v3399
    %v3401 = vpop.f32.mrb[0].mxu0
    %v3402 = vpop.f32.mrb[0].mxu0
    %v3403 = vpop.f32.mrb[0].mxu0
    %3404 = vdwg.mxu0
    %3405 = vmatprep.subr.bf16.mxu0 0
    %3406 = vmatpush1.bf16.msra.mxu0 %v2561
    %3407 = vmatprep.subr.bf16.mxu0 0
    %3408 = vmatpush1.bf16.msra.mxu0 %v2562
    %3409 = vmatprep.subr.bf16.mxu0 0
    %3410 = vmatpush1.bf16.msra.mxu0 %v2563
    %3411 = vmatprep.subr.bf16.mxu0 0
    %3412 = vmatpush1.bf16.msra.mxu0 %v2564
    %3413 = vmatprep.subr.bf16.mxu0 0
    %3414 = vmatpush1.bf16.msra.mxu0 %v2565
    %3415 = vmatprep.subr.bf16.mxu0 0
    %3416 = vmatpush1.bf16.msra.mxu0 %v2566
    %3417 = vmatprep.subr.bf16.mxu0 0
    %3418 = vmatpush1.bf16.msra.mxu0 %v2567
    %3419 = vmatprep.subr.bf16.mxu0 0
    %3420 = vmatpush1.bf16.msra.mxu0 %v2568
    %3421 = vmatprep.subr.bf16.mxu0 0
    %3422 = vmatpush1.bf16.msra.mxu0 %v2569
    %3423 = vmatprep.subr.bf16.mxu0 0
    %3424 = vmatpush1.bf16.msra.mxu0 %v2570
    %3425 = vmatprep.subr.bf16.mxu0 0
    %3426 = vmatpush1.bf16.msra.mxu0 %v2571
    %3427 = vmatprep.subr.bf16.mxu0 0
    %3428 = vmatpush1.bf16.msra.mxu0 %v2572
    %3429 = vmatprep.subr.bf16.mxu0 0
    %3430 = vmatpush1.bf16.msra.mxu0 %v2573
    %3431 = vmatprep.subr.bf16.mxu0 0
    %3432 = vmatpush1.bf16.msra.mxu0 %v2574
    %3433 = vmatprep.subr.bf16.mxu0 0
    %3434 = vmatpush1.bf16.msra.mxu0 %v2575
    %3435 = vmatprep.subr.bf16.mxu0 0
    %3436 = vmatpush1.bf16.msra.mxu0 %v2576
    %3437 = vmatprep.mubr.bf16.mxu0 %v854
    %3438 = vmatmul.mubr.bf16.gmra.mrb[0].mxu0 %v840
    %v3439 = vpop.f32.mrb[0].mxu0
    %v3440 = vadd.f32 %v3400, %v3439
    %v3441 = vpop.f32.mrb[0].mxu0
    %v3442 = vpop.f32.mrb[0].mxu0
    %v3443 = vpop.f32.mrb[0].mxu0
    %3444 = vdwg.mxu0
    %3445 = vmatprep.subr.bf16.mxu0 0
    %3446 = vmatpush1.bf16.msra.mxu0 %v2577
    %3447 = vmatprep.subr.bf16.mxu0 0
    %3448 = vmatpush1.bf16.msra.mxu0 %v2578
    %3449 = vmatprep.subr.bf16.mxu0 0
    %3450 = vmatpush1.bf16.msra.mxu0 %v2579
    %3451 = vmatprep.subr.bf16.mxu0 0
    %3452 = vmatpush1.bf16.msra.mxu0 %v2580
    %3453 = vmatprep.subr.bf16.mxu0 0
    %3454 = vmatpush1.bf16.msra.mxu0 %v2581
    %3455 = vmatprep.subr.bf16.mxu0 0
    %3456 = vmatpush1.bf16.msra.mxu0 %v2582
    %3457 = vmatprep.subr.bf16.mxu0 0
    %3458 = vmatpush1.bf16.msra.mxu0 %v2583
    %3459 = vmatprep.subr.bf16.mxu0 0
    %3460 = vmatpush1.bf16.msra.mxu0 %v2584
    %3461 = vmatprep.subr.bf16.mxu0 0
    %3462 = vmatpush1.bf16.msra.mxu0 %v2585
    %3463 = vmatprep.subr.bf16.mxu0 0
    %3464 = vmatpush1.bf16.msra.mxu0 %v2586
    %3465 = vmatprep.subr.bf16.mxu0 0
    %3466 = vmatpush1.bf16.msra.mxu0 %v2587
    %3467 = vmatprep.subr.bf16.mxu0 0
    %3468 = vmatpush1.bf16.msra.mxu0 %v2588
    %3469 = vmatprep.subr.bf16.mxu0 0
    %3470 = vmatpush1.bf16.msra.mxu0 %v2589
    %3471 = vmatprep.subr.bf16.mxu0 0
    %3472 = vmatpush1.bf16.msra.mxu0 %v2590
    %3473 = vmatprep.subr.bf16.mxu0 0
    %3474 = vmatpush1.bf16.msra.mxu0 %v2591
    %3475 = vmatprep.subr.bf16.mxu0 0
    %3476 = vmatpush1.bf16.msra.mxu0 %v2592
    %3477 = vmatprep.mubr.bf16.mxu0 %v858
    %3478 = vmatmul.mubr.bf16.gmra.mrb[0].mxu0 %v856
    %v3479 = vpop.f32.mrb[0].mxu0
    %v3480 = vadd.f32 %v3440, %v3479
    %v3481 = vpop.f32.mrb[0].mxu0
    %v3482 = vpop.f32.mrb[0].mxu0
    %v3483 = vpop.f32.mrb[0].mxu0
    %3484 = vdwg.mxu0
    %3485 = vmatprep.subr.bf16.mxu0 0
    %3486 = vmatpush1.bf16.msra.mxu0 %v2593
    %3487 = vmatprep.subr.bf16.mxu0 0
    %3488 = vmatpush1.bf16.msra.mxu0 %v2594
    %3489 = vmatprep.subr.bf16.mxu0 0
    %3490 = vmatpush1.bf16.msra.mxu0 %v2595
    %3491 = vmatprep.subr.bf16.mxu0 0
    %3492 = vmatpush1.bf16.msra.mxu0 %v2596
    %3493 = vmatprep.subr.bf16.mxu0 0
    %3494 = vmatpush1.bf16.msra.mxu0 %v2597
    %3495 = vmatprep.subr.bf16.mxu0 0
    %3496 = vmatpush1.bf16.msra.mxu0 %v2598
    %3497 = vmatprep.subr.bf16.mxu0 0
    %3498 = vmatpush1.bf16.msra.mxu0 %v2599
    %3499 = vmatprep.subr.bf16.mxu0 0
    %3500 = vmatpush1.bf16.msra.mxu0 %v2600
    %3501 = vmatprep.subr.bf16.mxu0 0
    %3502 = vmatpush1.bf16.msra.mxu0 %v2601
    %3503 = vmatprep.subr.bf16.mxu0 0
    %3504 = vmatpush1.bf16.msra.mxu0 %v2602
    %3505 = vmatprep.subr.bf16.mxu0 0
    %3506 = vmatpush1.bf16.msra.mxu0 %v2603
    %3507 = vmatprep.subr.bf16.mxu0 0
    %3508 = vmatpush1.bf16.msra.mxu0 %v2604
    %3509 = vmatprep.subr.bf16.mxu0 0
    %3510 = vmatpush1.bf16.msra.mxu0 %v2605
    %3511 = vmatprep.subr.bf16.mxu0 0
    %3512 = vmatpush1.bf16.msra.mxu0 %v2606
    %3513 = vmatprep.subr.bf16.mxu0 0
    %3514 = vmatpush1.bf16.msra.mxu0 %v2607
    %3515 = vmatprep.subr.bf16.mxu0 0
    %3516 = vmatpush1.bf16.msra.mxu0 %v2608
    %3517 = vmatprep.mubr.bf16.mxu0 %v896
    %3518 = vmatmul.mubr.bf16.gmra.mrb[0].mxu0 %v882
    %v3519 = vpop.f32.mrb[0].mxu0
    %v3520 = vadd.f32 %v3480, %v3519
    %v3521 = vpop.f32.mrb[0].mxu0
    %v3522 = vpop.f32.mrb[0].mxu0
    %v3523 = vpop.f32.mrb[0].mxu0
    %3524 = vdwg.mxu0
    %3525 = vmatprep.subr.bf16.mxu0 0
    %3526 = vmatpush1.bf16.msra.mxu0 %v2609
    %3527 = vmatprep.subr.bf16.mxu0 0
    %3528 = vmatpush1.bf16.msra.mxu0 %v2610
    %3529 = vmatprep.subr.bf16.mxu0 0
    %3530 = vmatpush1.bf16.msra.mxu0 %v2611
    %3531 = vmatprep.subr.bf16.mxu0 0
    %3532 = vmatpush1.bf16.msra.mxu0 %v2612
    %3533 = vmatprep.subr.bf16.mxu0 0
    %3534 = vmatpush1.bf16.msra.mxu0 %v2613
    %3535 = vmatprep.subr.bf16.mxu0 0
    %3536 = vmatpush1.bf16.msra.mxu0 %v2614
    %3537 = vmatprep.subr.bf16.mxu0 0
    %3538 = vmatpush1.bf16.msra.mxu0 %v2615
    %3539 = vmatprep.subr.bf16.mxu0 0
    %3540 = vmatpush1.bf16.msra.mxu0 %v2616
    %3541 = vmatprep.subr.bf16.mxu0 0
    %3542 = vmatpush1.bf16.msra.mxu0 %v2617
    %3543 = vmatprep.subr.bf16.mxu0 0
    %3544 = vmatpush1.bf16.msra.mxu0 %v2618
    %3545 = vmatprep.subr.bf16.mxu0 0
    %3546 = vmatpush1.bf16.msra.mxu0 %v2619
    %3547 = vmatprep.subr.bf16.mxu0 0
    %3548 = vmatpush1.bf16.msra.mxu0 %v2620
    %3549 = vmatprep.subr.bf16.mxu0 0
    %3550 = vmatpush1.bf16.msra.mxu0 %v2621
    %3551 = vmatprep.subr.bf16.mxu0 0
    %3552 = vmatpush1.bf16.msra.mxu0 %v2622
    %3553 = vmatprep.subr.bf16.mxu0 0
    %3554 = vmatpush1.bf16.msra.mxu0 %v2623
    %3555 = vmatprep.subr.bf16.mxu0 0
    %3556 = vmatpush1.bf16.msra.mxu0 %v2624
    %3557 = vmatprep.mubr.bf16.mxu0 %v906
    %3558 = vmatmul.mubr.bf16.gmra.mrb[0].mxu0 %v904
    %v3559 = vpop.f32.mrb[0].mxu0
    %v3560 = vadd.f32 %v3520, %v3559
    %v3561 = vpop.f32.mrb[0].mxu0
    %v3562 = vpop.f32.mrb[0].mxu0
    %v3563 = vpop.f32.mrb[0].mxu0
    %3564 = vdwg.mxu0
    %3565 = vmatprep.subr.bf16.mxu0 0
    %3566 = vmatpush1.bf16.msra.mxu0 %v2625
    %3567 = vmatprep.subr.bf16.mxu0 0
    %3568 = vmatpush1.bf16.msra.mxu0 %v2626
    %3569 = vmatprep.subr.bf16.mxu0 0
    %3570 = vmatpush1.bf16.msra.mxu0 %v2627
    %3571 = vmatprep.subr.bf16.mxu0 0
    %3572 = vmatpush1.bf16.msra.mxu0 %v2628
    %3573 = vmatprep.subr.bf16.mxu0 0
    %3574 = vmatpush1.bf16.msra.mxu0 %v2629
    %3575 = vmatprep.subr.bf16.mxu0 0
    %3576 = vmatpush1.bf16.msra.mxu0 %v2630
    %3577 = vmatprep.subr.bf16.mxu0 0
    %3578 = vmatpush1.bf16.msra.mxu0 %v2631
    %3579 = vmatprep.subr.bf16.mxu0 0
    %3580 = vmatpush1.bf16.msra.mxu0 %v2632
    %3581 = vmatprep.subr.bf16.mxu0 0
    %3582 = vmatpush1.bf16.msra.mxu0 %v2633
    %3583 = vmatprep.subr.bf16.mxu0 0
    %3584 = vmatpush1.bf16.msra.mxu0 %v2634
    %3585 = vmatprep.subr.bf16.mxu0 0
    %3586 = vmatpush1.bf16.msra.mxu0 %v2635
    %3587 = vmatprep.subr.bf16.mxu0 0
    %3588 = vmatpush1.bf16.msra.mxu0 %v2636
    %3589 = vmatprep.subr.bf16.mxu0 0
    %3590 = vmatpush1.bf16.msra.mxu0 %v2637
    %3591 = vmatprep.subr.bf16.mxu0 0
    %3592 = vmatpush1.bf16.msra.mxu0 %v2638
    %3593 = vmatprep.subr.bf16.mxu0 0
    %3594 = vmatpush1.bf16.msra.mxu0 %v2639
    %3595 = vmatprep.subr.bf16.mxu0 0
    %3596 = vmatpush1.bf16.msra.mxu0 %v2640
    %3597 = vmatprep.mubr.bf16.mxu0 %v903
    %3598 = vmatmul.mubr.bf16.gmra.mrb[0].mxu0 %v889
    %v3599 = vpop.f32.mrb[0].mxu0
    %v3600 = vadd.f32 %v3560, %v3599
    %v3601 = vpop.f32.mrb[0].mxu0
    %v3602 = vpop.f32.mrb[0].mxu0
    %v3603 = vpop.f32.mrb[0].mxu0
    %3604 = vdwg.mxu0
    %3605 = vmatprep.subr.bf16.mxu0 0
    %3606 = vmatpush1.bf16.msra.mxu0 %v2641
    %3607 = vmatprep.subr.bf16.mxu0 0
    %3608 = vmatpush1.bf16.msra.mxu0 %v2642
    %3609 = vmatprep.subr.bf16.mxu0 0
    %3610 = vmatpush1.bf16.msra.mxu0 %v2643
    %3611 = vmatprep.subr.bf16.mxu0 0
    %3612 = vmatpush1.bf16.msra.mxu0 %v2644
    %3613 = vmatprep.subr.bf16.mxu0 0
    %3614 = vmatpush1.bf16.msra.mxu0 %v2645
    %3615 = vmatprep.subr.bf16.mxu0 0
    %3616 = vmatpush1.bf16.msra.mxu0 %v2646
    %3617 = vmatprep.subr.bf16.mxu0 0
    %3618 = vmatpush1.bf16.msra.mxu0 %v2647
    %3619 = vmatprep.subr.bf16.mxu0 0
    %3620 = vmatpush1.bf16.msra.mxu0 %v2648
    %3621 = vmatprep.subr.bf16.mxu0 0
    %3622 = vmatpush1.bf16.msra.mxu0 %v2649
    %3623 = vmatprep.subr.bf16.mxu0 0
    %3624 = vmatpush1.bf16.msra.mxu0 %v2650
    %3625 = vmatprep.subr.bf16.mxu0 0
    %3626 = vmatpush1.bf16.msra.mxu0 %v2651
    %3627 = vmatprep.subr.bf16.mxu0 0
    %3628 = vmatpush1.bf16.msra.mxu0 %v2652
    %3629 = vmatprep.subr.bf16.mxu0 0
    %3630 = vmatpush1.bf16.msra.mxu0 %v2653
    %3631 = vmatprep.subr.bf16.mxu0 0
    %3632 = vmatpush1.bf16.msra.mxu0 %v2654
    %3633 = vmatprep.subr.bf16.mxu0 0
    %3634 = vmatpush1.bf16.msra.mxu0 %v2655
    %3635 = vmatprep.subr.bf16.mxu0 0
    %3636 = vmatpush1.bf16.msra.mxu0 %v2656
    %3637 = vmatprep.mubr.bf16.mxu0 %v907
    %3638 = vmatmul.mubr.bf16.gmra.mrb[0].mxu0 %v905
    %v3639 = vpop.f32.mrb[0].mxu0
    %v3640 = vadd.f32 %v3600, %v3639
    %v3641 = vpop.f32.mrb[0].mxu0
    %v3642 = vpop.f32.mrb[0].mxu0
    %v3643 = vpop.f32.mrb[0].mxu0
    %3644 = vdwg.mxu0
    %3645 = vmatprep.subr.bf16.mxu0 0
    %3646 = vmatpush1.bf16.msra.mxu0 %v2657
    %3647 = vmatprep.subr.bf16.mxu0 0
    %3648 = vmatpush1.bf16.msra.mxu0 %v2658
    %3649 = vmatprep.subr.bf16.mxu0 0
    %3650 = vmatpush1.bf16.msra.mxu0 %v2659
    %3651 = vmatprep.subr.bf16.mxu0 0
    %3652 = vmatpush1.bf16.msra.mxu0 %v2660
    %3653 = vmatprep.subr.bf16.mxu0 0
    %3654 = vmatpush1.bf16.msra.mxu0 %v2661
    %3655 = vmatprep.subr.bf16.mxu0 0
    %3656 = vmatpush1.bf16.msra.mxu0 %v2662
    %3657 = vmatprep.subr.bf16.mxu0 0
    %3658 = vmatpush1.bf16.msra.mxu0 %v2663
    %3659 = vmatprep.subr.bf16.mxu0 0
    %3660 = vmatpush1.bf16.msra.mxu0 %v2664
    %3661 = vmatprep.subr.bf16.mxu0 0
    %3662 = vmatpush1.bf16.msra.mxu0 %v2665
    %3663 = vmatprep.subr.bf16.mxu0 0
    %3664 = vmatpush1.bf16.msra.mxu0 %v2666
    %3665 = vmatprep.subr.bf16.mxu0 0
    %3666 = vmatpush1.bf16.msra.mxu0 %v2667
    %3667 = vmatprep.subr.bf16.mxu0 0
    %3668 = vmatpush1.bf16.msra.mxu0 %v2668
    %3669 = vmatprep.subr.bf16.mxu0 0
    %3670 = vmatpush1.bf16.msra.mxu0 %v2669
    %3671 = vmatprep.subr.bf16.mxu0 0
    %3672 = vmatpush1.bf16.msra.mxu0 %v2670
    %3673 = vmatprep.subr.bf16.mxu0 0
    %3674 = vmatpush1.bf16.msra.mxu0 %v2671
    %3675 = vmatprep.subr.bf16.mxu0 0
    %3676 = vmatpush1.bf16.msra.mxu0 %v2672
    %3677 = vmatprep.mubr.bf16.mxu0 %v945
    %3678 = vmatmul.mubr.bf16.gmra.mrb[0].mxu0 %v931
    %v3679 = vpop.f32.mrb[0].mxu0
    %v3680 = vadd.f32 %v3640, %v3679
    %v3681 = vpop.f32.mrb[0].mxu0
    %v3682 = vpop.f32.mrb[0].mxu0
    %v3683 = vpop.f32.mrb[0].mxu0
    %3684 = vdwg.mxu0
    %3685 = vmatprep.subr.bf16.mxu0 0
    %3686 = vmatpush1.bf16.msra.mxu0 %v2673
    %3687 = vmatprep.subr.bf16.mxu0 0
    %3688 = vmatpush1.bf16.msra.mxu0 %v2674
    %3689 = vmatprep.subr.bf16.mxu0 0
    %3690 = vmatpush1.bf16.msra.mxu0 %v2675
    %3691 = vmatprep.subr.bf16.mxu0 0
    %3692 = vmatpush1.bf16.msra.mxu0 %v2676
    %3693 = vmatprep.subr.bf16.mxu0 0
    %3694 = vmatpush1.bf16.msra.mxu0 %v2677
    %3695 = vmatprep.subr.bf16.mxu0 0
    %3696 = vmatpush1.bf16.msra.mxu0 %v2678
    %3697 = vmatprep.subr.bf16.mxu0 0
    %3698 = vmatpush1.bf16.msra.mxu0 %v2679
    %3699 = vmatprep.subr.bf16.mxu0 0
    %3700 = vmatpush1.bf16.msra.mxu0 %v2680
    %3701 = vmatprep.subr.bf16.mxu0 0
    %3702 = vmatpush1.bf16.msra.mxu0 %v2681
    %3703 = vmatprep.subr.bf16.mxu0 0
    %3704 = vmatpush1.bf16.msra.mxu0 %v2682
    %3705 = vmatprep.subr.bf16.mxu0 0
    %3706 = vmatpush1.bf16.msra.mxu0 %v2683
    %3707 = vmatprep.subr.bf16.mxu0 0
    %3708 = vmatpush1.bf16.msra.mxu0 %v2684
    %3709 = vmatprep.subr.bf16.mxu0 0
    %3710 = vmatpush1.bf16.msra.mxu0 %v2685
    %3711 = vmatprep.subr.bf16.mxu0 0
    %3712 = vmatpush1.bf16.msra.mxu0 %v2686
    %3713 = vmatprep.subr.bf16.mxu0 0
    %3714 = vmatpush1.bf16.msra.mxu0 %v2687
    %3715 = vmatprep.subr.bf16.mxu0 0
    %3716 = vmatpush1.bf16.msra.mxu0 %v2688
    %3717 = vmatprep.mubr.bf16.mxu0 %v955
    %3718 = vmatmul.mubr.bf16.gmra.mrb[0].mxu0 %v953
    %v3719 = vpop.f32.mrb[0].mxu0
    %v3720 = vadd.f32 %v3680, %v3719
    %v3721 = vpop.f32.mrb[0].mxu0
    %v3722 = vpop.f32.mrb[0].mxu0
    %v3723 = vpop.f32.mrb[0].mxu0
    %3724 = vdwg.mxu0
    %3725 = vmatprep.subr.bf16.mxu0 0
    %3726 = vmatpush1.bf16.msra.mxu0 %v2689
    %3727 = vmatprep.subr.bf16.mxu0 0
    %3728 = vmatpush1.bf16.msra.mxu0 %v2690
    %3729 = vmatprep.subr.bf16.mxu0 0
    %3730 = vmatpush1.bf16.msra.mxu0 %v2691
    %3731 = vmatprep.subr.bf16.mxu0 0
    %3732 = vmatpush1.bf16.msra.mxu0 %v2692
    %3733 = vmatprep.subr.bf16.mxu0 0
    %3734 = vmatpush1.bf16.msra.mxu0 %v2693
    %3735 = vmatprep.subr.bf16.mxu0 0
    %3736 = vmatpush1.bf16.msra.mxu0 %v2694
    %3737 = vmatprep.subr.bf16.mxu0 0
    %3738 = vmatpush1.bf16.msra.mxu0 %v2695
    %3739 = vmatprep.subr.bf16.mxu0 0
    %3740 = vmatpush1.bf16.msra.mxu0 %v2696
    %3741 = vmatprep.subr.bf16.mxu0 0
    %3742 = vmatpush1.bf16.msra.mxu0 %v2697
    %3743 = vmatprep.subr.bf16.mxu0 0
    %3744 = vmatpush1.bf16.msra.mxu0 %v2698
    %3745 = vmatprep.subr.bf16.mxu0 0
    %3746 = vmatpush1.bf16.msra.mxu0 %v2699
    %3747 = vmatprep.subr.bf16.mxu0 0
    %3748 = vmatpush1.bf16.msra.mxu0 %v2700
    %3749 = vmatprep.subr.bf16.mxu0 0
    %3750 = vmatpush1.bf16.msra.mxu0 %v2701
    %3751 = vmatprep.subr.bf16.mxu0 0
    %3752 = vmatpush1.bf16.msra.mxu0 %v2702
    %3753 = vmatprep.subr.bf16.mxu0 0
    %3754 = vmatpush1.bf16.msra.mxu0 %v2703
    %3755 = vmatprep.subr.bf16.mxu0 0
    %3756 = vmatpush1.bf16.msra.mxu0 %v2704
    %3757 = vmatprep.mubr.bf16.mxu0 %v952
    %3758 = vmatmul.mubr.bf16.gmra.mrb[0].mxu0 %v938
    %v3759 = vpop.f32.mrb[0].mxu0
    %v3760 = vadd.f32 %v3720, %v3759
    %v3761 = vpop.f32.mrb[0].mxu0
    %v3762 = vpop.f32.mrb[0].mxu0
    %v3763 = vpop.f32.mrb[0].mxu0
    %3764 = vdwg.mxu0
    %3765 = vmatprep.subr.bf16.mxu0 0
    %3766 = vmatpush1.bf16.msra.mxu0 %v2705
    %3767 = vmatprep.subr.bf16.mxu0 0
    %3768 = vmatpush1.bf16.msra.mxu0 %v2706
    %3769 = vmatprep.subr.bf16.mxu0 0
    %3770 = vmatpush1.bf16.msra.mxu0 %v2707
    %3771 = vmatprep.subr.bf16.mxu0 0
    %3772 = vmatpush1.bf16.msra.mxu0 %v2708
    %3773 = vmatprep.subr.bf16.mxu0 0
    %3774 = vmatpush1.bf16.msra.mxu0 %v2709
    %3775 = vmatprep.subr.bf16.mxu0 0
    %3776 = vmatpush1.bf16.msra.mxu0 %v2710
    %3777 = vmatprep.subr.bf16.mxu0 0
    %3778 = vmatpush1.bf16.msra.mxu0 %v2711
    %3779 = vmatprep.subr.bf16.mxu0 0
    %3780 = vmatpush1.bf16.msra.mxu0 %v2712
    %3781 = vmatprep.subr.bf16.mxu0 0
    %3782 = vmatpush1.bf16.msra.mxu0 %v2713
    %3783 = vmatprep.subr.bf16.mxu0 0
    %3784 = vmatpush1.bf16.msra.mxu0 %v2714
    %3785 = vmatprep.subr.bf16.mxu0 0
    %3786 = vmatpush1.bf16.msra.mxu0 %v2715
    %3787 = vmatprep.subr.bf16.mxu0 0
    %3788 = vmatpush1.bf16.msra.mxu0 %v2716
    %3789 = vmatprep.subr.bf16.mxu0 0
    %3790 = vmatpush1.bf16.msra.mxu0 %v2717
    %3791 = vmatprep.subr.bf16.mxu0 0
    %3792 = vmatpush1.bf16.msra.mxu0 %v2718
    %3793 = vmatprep.subr.bf16.mxu0 0
    %3794 = vmatpush1.bf16.msra.mxu0 %v2719
    %3795 = vmatprep.subr.bf16.mxu0 0
    %3796 = vmatpush1.bf16.msra.mxu0 %v2720
    %3797 = vmatprep.mubr.bf16.mxu0 %v956
    %3798 = vmatmul.mubr.bf16.gmra.mrb[0].mxu0 %v954
    %v3799 = vpop.f32.mrb[0].mxu0
    %v3800 = vadd.f32 %v3760, %v3799
    %v3801 = vpop.f32.mrb[0].mxu0
    %v3802 = vpop.f32.mrb[0].mxu0
    %v3803 = vpop.f32.mrb[0].mxu0
    %3804 = vdwg.mxu0
    %3805 = vmatprep.subr.bf16.mxu0 0
    %3806 = vmatpush1.bf16.msra.mxu0 %v2721
    %3807 = vmatprep.subr.bf16.mxu0 0
    %3808 = vmatpush1.bf16.msra.mxu0 %v2722
    %3809 = vmatprep.subr.bf16.mxu0 0
    %3810 = vmatpush1.bf16.msra.mxu0 %v2723
    %3811 = vmatprep.subr.bf16.mxu0 0
    %3812 = vmatpush1.bf16.msra.mxu0 %v2724
    %3813 = vmatprep.subr.bf16.mxu0 0
    %3814 = vmatpush1.bf16.msra.mxu0 %v2725
    %3815 = vmatprep.subr.bf16.mxu0 0
    %3816 = vmatpush1.bf16.msra.mxu0 %v2726
    %3817 = vmatprep.subr.bf16.mxu0 0
    %3818 = vmatpush1.bf16.msra.mxu0 %v2727
    %3819 = vmatprep.subr.bf16.mxu0 0
    %3820 = vmatpush1.bf16.msra.mxu0 %v2728
    %3821 = vmatprep.subr.bf16.mxu0 0
    %3822 = vmatpush1.bf16.msra.mxu0 %v2729
    %3823 = vmatprep.subr.bf16.mxu0 0
    %3824 = vmatpush1.bf16.msra.mxu0 %v2730
    %3825 = vmatprep.subr.bf16.mxu0 0
    %3826 = vmatpush1.bf16.msra.mxu0 %v2731
    %3827 = vmatprep.subr.bf16.mxu0 0
    %3828 = vmatpush1.bf16.msra.mxu0 %v2732
    %3829 = vmatprep.subr.bf16.mxu0 0
    %3830 = vmatpush1.bf16.msra.mxu0 %v2733
    %3831 = vmatprep.subr.bf16.mxu0 0
    %3832 = vmatpush1.bf16.msra.mxu0 %v2734
    %3833 = vmatprep.subr.bf16.mxu0 0
    %3834 = vmatpush1.bf16.msra.mxu0 %v2735
    %3835 = vmatprep.subr.bf16.mxu0 0
    %3836 = vmatpush1.bf16.msra.mxu0 %v2736
    %3837 = vmatprep.mubr.bf16.mxu0 %v994
    %3838 = vmatmul.mubr.bf16.gmra.mrb[0].mxu0 %v980
    %v3839 = vpop.f32.mrb[0].mxu0
    %v3840 = vadd.f32 %v3800, %v3839
    %v3841 = vpop.f32.mrb[0].mxu0
    %v3842 = vpop.f32.mrb[0].mxu0
    %v3843 = vpop.f32.mrb[0].mxu0
    %3844 = vdwg.mxu0
    %3845 = vmatprep.subr.bf16.mxu0 0
    %3846 = vmatpush1.bf16.msra.mxu0 %v2737
    %3847 = vmatprep.subr.bf16.mxu0 0
    %3848 = vmatpush1.bf16.msra.mxu0 %v2738
    %3849 = vmatprep.subr.bf16.mxu0 0
    %3850 = vmatpush1.bf16.msra.mxu0 %v2739
    %3851 = vmatprep.subr.bf16.mxu0 0
    %3852 = vmatpush1.bf16.msra.mxu0 %v2740
    %3853 = vmatprep.subr.bf16.mxu0 0
    %3854 = vmatpush1.bf16.msra.mxu0 %v2741
    %3855 = vmatprep.subr.bf16.mxu0 0
    %3856 = vmatpush1.bf16.msra.mxu0 %v2742
    %3857 = vmatprep.subr.bf16.mxu0 0
    %3858 = vmatpush1.bf16.msra.mxu0 %v2743
    %3859 = vmatprep.subr.bf16.mxu0 0
    %3860 = vmatpush1.bf16.msra.mxu0 %v2744
    %3861 = vmatprep.subr.bf16.mxu0 0
    %3862 = vmatpush1.bf16.msra.mxu0 %v2745
    %3863 = vmatprep.subr.bf16.mxu0 0
    %3864 = vmatpush1.bf16.msra.mxu0 %v2746
    %3865 = vmatprep.subr.bf16.mxu0 0
    %3866 = vmatpush1.bf16.msra.mxu0 %v2747
    %3867 = vmatprep.subr.bf16.mxu0 0
    %3868 = vmatpush1.bf16.msra.mxu0 %v2748
    %3869 = vmatprep.subr.bf16.mxu0 0
    %3870 = vmatpush1.bf16.msra.mxu0 %v2749
    %3871 = vmatprep.subr.bf16.mxu0 0
    %3872 = vmatpush1.bf16.msra.mxu0 %v2750
    %3873 = vmatprep.subr.bf16.mxu0 0
    %3874 = vmatpush1.bf16.msra.mxu0 %v2751
    %3875 = vmatprep.subr.bf16.mxu0 0
    %3876 = vmatpush1.bf16.msra.mxu0 %v2752
    %3877 = vmatprep.mubr.bf16.mxu0 %v1004
    %3878 = vmatmul.mubr.bf16.gmra.mrb[0].mxu0 %v1002
    %v3879 = vpop.f32.mrb[0].mxu0
    %v3880 = vadd.f32 %v3840, %v3879
    %v3881 = vpop.f32.mrb[0].mxu0
    %v3882 = vpop.f32.mrb[0].mxu0
    %v3883 = vpop.f32.mrb[0].mxu0
    %3884 = vdwg.mxu0
    %3885 = vmatprep.subr.bf16.mxu0 0
    %3886 = vmatpush1.bf16.msra.mxu0 %v2753
    %3887 = vmatprep.subr.bf16.mxu0 0
    %3888 = vmatpush1.bf16.msra.mxu0 %v2754
    %3889 = vmatprep.subr.bf16.mxu0 0
    %3890 = vmatpush1.bf16.msra.mxu0 %v2755
    %3891 = vmatprep.subr.bf16.mxu0 0
    %3892 = vmatpush1.bf16.msra.mxu0 %v2756
    %3893 = vmatprep.subr.bf16.mxu0 0
    %3894 = vmatpush1.bf16.msra.mxu0 %v2757
    %3895 = vmatprep.subr.bf16.mxu0 0
    %3896 = vmatpush1.bf16.msra.mxu0 %v2758
    %3897 = vmatprep.subr.bf16.mxu0 0
    %3898 = vmatpush1.bf16.msra.mxu0 %v2759
    %3899 = vmatprep.subr.bf16.mxu0 0
    %3900 = vmatpush1.bf16.msra.mxu0 %v2760
    %3901 = vmatprep.subr.bf16.mxu0 0
    %3902 = vmatpush1.bf16.msra.mxu0 %v2761
    %3903 = vmatprep.subr.bf16.mxu0 0
    %3904 = vmatpush1.bf16.msra.mxu0 %v2762
    %3905 = vmatprep.subr.bf16.mxu0 0
    %3906 = vmatpush1.bf16.msra.mxu0 %v2763
    %3907 = vmatprep.subr.bf16.mxu0 0
    %3908 = vmatpush1.bf16.msra.mxu0 %v2764
    %3909 = vmatprep.subr.bf16.mxu0 0
    %3910 = vmatpush1.bf16.msra.mxu0 %v2765
    %3911 = vmatprep.subr.bf16.mxu0 0
    %3912 = vmatpush1.bf16.msra.mxu0 %v2766
    %3913 = vmatprep.subr.bf16.mxu0 0
    %3914 = vmatpush1.bf16.msra.mxu0 %v2767
    %3915 = vmatprep.subr.bf16.mxu0 0
    %3916 = vmatpush1.bf16.msra.mxu0 %v2768
    %3917 = vmatprep.mubr.bf16.mxu0 %v1001
    %3918 = vmatmul.mubr.bf16.gmra.mrb[0].mxu0 %v987
    %v3919 = vpop.f32.mrb[0].mxu0
    %v3920 = vadd.f32 %v3880, %v3919
    %v3921 = vpop.f32.mrb[0].mxu0
    %v3922 = vpop.f32.mrb[0].mxu0
    %v3923 = vpop.f32.mrb[0].mxu0
    %3924 = vdwg.mxu0
    %3925 = vmatprep.subr.bf16.mxu0 0
    %3926 = vmatpush1.bf16.msra.mxu0 %v2769
    %3927 = vmatprep.subr.bf16.mxu0 0
    %3928 = vmatpush1.bf16.msra.mxu0 %v2770
    %3929 = vmatprep.subr.bf16.mxu0 0
    %3930 = vmatpush1.bf16.msra.mxu0 %v2771
    %3931 = vmatprep.subr.bf16.mxu0 0
    %3932 = vmatpush1.bf16.msra.mxu0 %v2772
    %3933 = vmatprep.subr.bf16.mxu0 0
    %3934 = vmatpush1.bf16.msra.mxu0 %v2773
    %3935 = vmatprep.subr.bf16.mxu0 0
    %3936 = vmatpush1.bf16.msra.mxu0 %v2774
    %3937 = vmatprep.subr.bf16.mxu0 0
    %3938 = vmatpush1.bf16.msra.mxu0 %v2775
    %3939 = vmatprep.subr.bf16.mxu0 0
    %3940 = vmatpush1.bf16.msra.mxu0 %v2776
    %3941 = vmatprep.subr.bf16.mxu0 0
    %3942 = vmatpush1.bf16.msra.mxu0 %v2777
    %3943 = vmatprep.subr.bf16.mxu0 0
    %3944 = vmatpush1.bf16.msra.mxu0 %v2778
    %3945 = vmatprep.subr.bf16.mxu0 0
    %3946 = vmatpush1.bf16.msra.mxu0 %v2779
    %3947 = vmatprep.subr.bf16.mxu0 0
    %3948 = vmatpush1.bf16.msra.mxu0 %v2780
    %3949 = vmatprep.subr.bf16.mxu0 0
    %3950 = vmatpush1.bf16.msra.mxu0 %v2781
    %3951 = vmatprep.subr.bf16.mxu0 0
    %3952 = vmatpush1.bf16.msra.mxu0 %v2782
    %3953 = vmatprep.subr.bf16.mxu0 0
    %3954 = vmatpush1.bf16.msra.mxu0 %v2783
    %3955 = vmatprep.subr.bf16.mxu0 0
    %3956 = vmatpush1.bf16.msra.mxu0 %v2784
    %3957 = vmatprep.mubr.bf16.mxu0 %v1005
    %3958 = vmatmul.mubr.bf16.gmra.mrb[0].mxu0 %v1003
    %v3959 = vpop.f32.mrb[0].mxu0
    %v3960 = vadd.f32 %v3920, %v3959
    %v3961 = vpop.f32.mrb[0].mxu0
    %v3962 = vpop.f32.mrb[0].mxu0
    %v3963 = vpop.f32.mrb[0].mxu0
    %3964 = vdwg.mxu0
    %3965 = vmatprep.subr.bf16.mxu0 0
    %3966 = vmatpush1.bf16.msra.mxu0 %v2785
    %3967 = vmatprep.subr.bf16.mxu0 0
    %3968 = vmatpush1.bf16.msra.mxu0 %v2786
    %3969 = vmatprep.subr.bf16.mxu0 0
    %3970 = vmatpush1.bf16.msra.mxu0 %v2787
    %3971 = vmatprep.subr.bf16.mxu0 0
    %3972 = vmatpush1.bf16.msra.mxu0 %v2788
    %3973 = vmatprep.subr.bf16.mxu0 0
    %3974 = vmatpush1.bf16.msra.mxu0 %v2789
    %3975 = vmatprep.subr.bf16.mxu0 0
    %3976 = vmatpush1.bf16.msra.mxu0 %v2790
    %3977 = vmatprep.subr.bf16.mxu0 0
    %3978 = vmatpush1.bf16.msra.mxu0 %v2791
    %3979 = vmatprep.subr.bf16.mxu0 0
    %3980 = vmatpush1.bf16.msra.mxu0 %v2792
    %3981 = vmatprep.subr.bf16.mxu0 0
    %3982 = vmatpush1.bf16.msra.mxu0 %v2793
    %3983 = vmatprep.subr.bf16.mxu0 0
    %3984 = vmatpush1.bf16.msra.mxu0 %v2794
    %3985 = vmatprep.subr.bf16.mxu0 0
    %3986 = vmatpush1.bf16.msra.mxu0 %v2795
    %3987 = vmatprep.subr.bf16.mxu0 0
    %3988 = vmatpush1.bf16.msra.mxu0 %v2796
    %3989 = vmatprep.subr.bf16.mxu0 0
    %3990 = vmatpush1.bf16.msra.mxu0 %v2797
    %3991 = vmatprep.subr.bf16.mxu0 0
    %3992 = vmatpush1.bf16.msra.mxu0 %v2798
    %3993 = vmatprep.subr.bf16.mxu0 0
    %3994 = vmatpush1.bf16.msra.mxu0 %v2799
    %3995 = vmatprep.subr.bf16.mxu0 0
    %3996 = vmatpush1.bf16.msra.mxu0 %v2800
    %3997 = vmatprep.mubr.bf16.mxu0 %v1027
    %3998 = vmatmul.mubr.bf16.gmra.mrb[0].mxu0 %v1020
    %v3999 = vpop.f32.mrb[0].mxu0
    %v4000 = vadd.f32 %v3960, %v3999
    %v4001 = vpop.f32.mrb[0].mxu0
    %v4002 = vpop.f32.mrb[0].mxu0
    %v4003 = vpop.f32.mrb[0].mxu0
    %4004 = vdwg.mxu0
    %4005 = vmatprep.subr.bf16.mxu0 0
    %4006 = vmatpush1.bf16.msra.mxu0 %v2801
    %4007 = vmatprep.subr.bf16.mxu0 0
    %4008 = vmatpush1.bf16.msra.mxu0 %v2802
    %4009 = vmatprep.subr.bf16.mxu0 0
    %4010 = vmatpush1.bf16.msra.mxu0 %v2803
    %4011 = vmatprep.subr.bf16.mxu0 0
    %4012 = vmatpush1.bf16.msra.mxu0 %v2804
    %4013 = vmatprep.subr.bf16.mxu0 0
    %4014 = vmatpush1.bf16.msra.mxu0 %v2805
    %4015 = vmatprep.subr.bf16.mxu0 0
    %4016 = vmatpush1.bf16.msra.mxu0 %v2806
    %4017 = vmatprep.subr.bf16.mxu0 0
    %4018 = vmatpush1.bf16.msra.mxu0 %v2807
    %4019 = vmatprep.subr.bf16.mxu0 0
    %4020 = vmatpush1.bf16.msra.mxu0 %v2808
    %4021 = vmatprep.subr.bf16.mxu0 0
    %4022 = vmatpush1.bf16.msra.mxu0 %v2809
    %4023 = vmatprep.subr.bf16.mxu0 0
    %4024 = vmatpush1.bf16.msra.mxu0 %v2810
    %4025 = vmatprep.subr.bf16.mxu0 0
    %4026 = vmatpush1.bf16.msra.mxu0 %v2811
    %4027 = vmatprep.subr.bf16.mxu0 0
    %4028 = vmatpush1.bf16.msra.mxu0 %v2812
    %4029 = vmatprep.subr.bf16.mxu0 0
    %4030 = vmatpush1.bf16.msra.mxu0 0
    %4031 = vmatprep.subr.bf16.mxu0 0
    %4032 = vmatpush1.bf16.msra.mxu0 0
    %4033 = vmatprep.subr.bf16.mxu0 0
    %4034 = vmatpush1.bf16.msra.mxu0 0
    %4035 = vmatprep.subr.bf16.mxu0 0
    %4036 = vmatpush1.bf16.msra.mxu0 0
    %4037 = vmatprep.mubr.bf16.mxu0 %v3163
    %4038 = vmatmul.mubr.bf16.gmra.mrb[0].mxu0 %v1028
    %v4039 = vpop.f32.mrb[0].mxu0
    %v4040 = vadd.f32 %v4000, %v4039
    %v4041 = vpop.f32.mrb[0].mxu0
    %v4042 = vpop.f32.mrb[0].mxu0
    %v4043 = vpop.f32.mrb[0].mxu0
    %4044 = vdwg.mxu0
    %v4045 = vmax.f32 %v4040, 0.0
    %v4046 = vpack.c.bf16 %v4045, %v4045
    %v4047 = vld [vmem:[%s4] sm:$0xf]
    %v4048 = vld [vmem:[%s4 + $0x4] sm:$0xf]
    %v4049 = vld [vmem:[%s4 + $0x8] sm:$0xf]
    %v4050 = vld [vmem:[%s4 + $0xc] sm:$0xf]
    %v4051 = vld [vmem:[%s4 + $0x10] sm:$0xf]
    %v4052 = vld [vmem:[%s4 + $0x14] sm:$0xf]
    %v4053 = vld [vmem:[%s4 + $0x18] sm:$0xf]
    %v4054 = vld [vmem:[%s4 + $0x1c] sm:$0xf]
    %v4055 = vld [vmem:[%s4 + $0x20] sm:$0xf]
    %v4056 = vld [vmem:[%s4 + $0x24] sm:$0xf]
    %v4057 = vld [vmem:[%s4 + $0x28] sm:$0xf]
    %v4058 = vld [vmem:[%s4 + $0x2c] sm:$0xf]
    %v4059 = vld [vmem:[%s4 + $0x30] sm:$0x3]
    %v4060 = vld [vmem:[%s5] sm:$0x1]
    %v4062 = vlaneseq
    %v4063 = vshrl.u32 %v4062, 7
    %v4064 = vsub.s32 0, %v4063
    %v4065 = vrot.slane %v4060, %v4064
    %v4080 = vunpack.c.l.b16 %v4047
    %v4081 = vunpack.c.l.b16 %v4048
    %v4082 = vunpack.c.l.b16 %v4049
    %v4083 = vunpack.c.l.b16 %v4050
    %v4084 = vunpack.c.l.b16 %v4051
    %v4085 = vunpack.c.l.b16 %v4052
    %v4086 = vunpack.c.l.b16 %v4053
    %v4087 = vunpack.c.l.b16 %v4054
    %v4088 = vunpack.c.l.b16 %v4055
    %v4089 = vunpack.c.l.b16 %v4056
    %v4090 = vunpack.c.l.b16 %v4057
    %v4091 = vunpack.c.l.b16 %v4058
    %v4092 = vunpack.c.l.b16 %v4059
    %v4093 = vpack.c.b16 %v4081, %v4080
    %v4094 = vpack.c.b16 %v4083, %v4082
    %v4095 = vpack.c.b16 %v4085, %v4084
    %v4096 = vpack.c.b16 %v4087, %v4086
    %v4097 = vpack.c.b16 %v4089, %v4088
    %v4098 = vpack.c.b16 %v4091, %v4090
    %v4099 = vpack.c.b16 %v4092, %v4092
    %vm4106 = vcmask 818176
    %v4108 = vsel %vm4106, %v4046, 0
    %vm4110 = vcmask 1041408
    %v4112 = vsel %vm4110, %v4099, 0
    %4114 = vmatprep.subr.bf16.mxu0 0
    %4115 = vmatpush1.bf16.msra.mxu0 %v4093
    %4116 = vmatprep.subr.bf16.mxu0 0
    %4117 = vmatpush1.bf16.msra.mxu0 %v4094
    %4118 = vmatprep.subr.bf16.mxu0 0
    %4119 = vmatpush1.bf16.msra.mxu0 %v4095
    %4120 = vmatprep.subr.bf16.mxu0 0
    %4121 = vmatpush1.bf16.msra.mxu0 %v4096
    %4122 = vmatprep.subr.bf16.mxu0 0
    %4123 = vmatpush1.bf16.msra.mxu0 %v4097
    %4124 = vmatprep.subr.bf16.mxu0 0
    %4125 = vmatpush1.bf16.msra.mxu0 %v4098
    %4126 = vmatprep.subr.bf16.mxu0 0
    %4127 = vmatpush1.bf16.msra.mxu0 %v4112
    %4128 = vmatprep.subr.bf16.mxu0 0
    %4129 = vmatpush1.bf16.msra.mxu0 0
    %4130 = vmatprep.subr.bf16.mxu0 0
    %4131 = vmatpush1.bf16.msra.mxu0 0
    %4132 = vmatprep.subr.bf16.mxu0 0
    %4133 = vmatpush1.bf16.msra.mxu0 0
    %4134 = vmatprep.subr.bf16.mxu0 0
    %4135 = vmatpush1.bf16.msra.mxu0 0
    %4136 = vmatprep.subr.bf16.mxu0 0
    %4137 = vmatpush1.bf16.msra.mxu0 0
    %4138 = vmatprep.subr.bf16.mxu0 0
    %4139 = vmatpush1.bf16.msra.mxu0 0
    %4140 = vmatprep.subr.bf16.mxu0 0
    %4141 = vmatpush1.bf16.msra.mxu0 0
    %4142 = vmatprep.subr.bf16.mxu0 0
    %4143 = vmatpush1.bf16.msra.mxu0 0
    %4144 = vmatprep.subr.bf16.mxu0 0
    %4145 = vmatpush1.bf16.msra.mxu0 0
    %4146 = vmatprep.mubr.bf16.mxu0 0
    %4147 = vmatmul.mubr.bf16.gmra.mrb[0].mxu0 %v4108
    %v4148 = vpop.f32.mrb[0].mxu0
    %v4149 = vadd.f32 %v4065, %v4148
    %v4150 = vpop.f32.mrb[0].mxu0
    %v4151 = vpop.f32.mrb[0].mxu0
    %v4152 = vpop.f32.mrb[0].mxu0
    %4153 = vdwg.mxu0
    %v4154 = vmax.f32 %v4149, 0.0
    %v4155 = vld [vmem:[%s1] sm:$0x3]
    %v4156 = vpack.c.bf16 %v4155, %v4155
    %v4157 = vld [vmem:[%s6] sm:$0xf]
    %v4158 = vld [vmem:[%s6 + $0x4] sm:$0xf]
    %v4159 = vld [vmem:[%s6 + $0x8] sm:$0xf]
    %v4160 = vld [vmem:[%s6 + $0xc] sm:$0xf]
    %v4161 = vld [vmem:[%s6 + $0x10] sm:$0xf]
    %v4162 = vld [vmem:[%s6 + $0x14] sm:$0xf]
    %v4163 = vld [vmem:[%s7] sm:$0x1]
    %v4165 = vlaneseq
    %v4166 = vshrl.u32 %v4165, 7
    %v4167 = vsub.s32 0, %v4166
    %v4168 = vrot.slane %v4163, %v4167
    %v4176 = vunpack.c.l.b16 %v4157
    %v4177 = vunpack.c.l.b16 %v4158
    %v4178 = vunpack.c.l.b16 %v4159
    %v4179 = vunpack.c.l.b16 %v4160
    %v4180 = vunpack.c.l.b16 %v4161
    %v4181 = vunpack.c.l.b16 %v4162
    %v4182 = vpack.c.b16 %v4177, %v4176
    %v4183 = vpack.c.b16 %v4179, %v4178
    %v4184 = vpack.c.b16 %v4181, %v4180
    %vm4188 = vcmask 392192
    %v4190 = vsel %vm4188, %v4156, 0
    %4192 = vmatprep.subr.bf16.mxu0 0
    %4193 = vmatpush1.bf16.msra.mxu0 %v4182
    %4194 = vmatprep.subr.bf16.mxu0 0
    %4195 = vmatpush1.bf16.msra.mxu0 %v4183
    %4196 = vmatprep.subr.bf16.mxu0 0
    %4197 = vmatpush1.bf16.msra.mxu0 %v4184
    %4198 = vmatprep.subr.bf16.mxu0 0
    %4199 = vmatpush1.bf16.msra.mxu0 0
    %4200 = vmatprep.subr.bf16.mxu0 0
    %4201 = vmatpush1.bf16.msra.mxu0 0
    %4202 = vmatprep.subr.bf16.mxu0 0
    %4203 = vmatpush1.bf16.msra.mxu0 0
    %4204 = vmatprep.subr.bf16.mxu0 0
    %4205 = vmatpush1.bf16.msra.mxu0 0
    %4206 = vmatprep.subr.bf16.mxu0 0
    %4207 = vmatpush1.bf16.msra.mxu0 0
    %4208 = vmatprep.subr.bf16.mxu0 0
    %4209 = vmatpush1.bf16.msra.mxu0 0
    %4210 = vmatprep.subr.bf16.mxu0 0
    %4211 = vmatpush1.bf16.msra.mxu0 0
    %4212 = vmatprep.subr.bf16.mxu0 0
    %4213 = vmatpush1.bf16.msra.mxu0 0
    %4214 = vmatprep.subr.bf16.mxu0 0
    %4215 = vmatpush1.bf16.msra.mxu0 0
    %4216 = vmatprep.subr.bf16.mxu0 0
    %4217 = vmatpush1.bf16.msra.mxu0 0
    %4218 = vmatprep.subr.bf16.mxu0 0
    %4219 = vmatpush1.bf16.msra.mxu0 0
    %4220 = vmatprep.subr.bf16.mxu0 0
    %4221 = vmatpush1.bf16.msra.mxu0 0
    %4222 = vmatprep.subr.bf16.mxu0 0
    %4223 = vmatpush1.bf16.msra.mxu0 0
    %4224 = vmatprep.mubr.bf16.mxu0 0
    %4225 = vmatmul.mubr.bf16.gmra.mrb[0].mxu0 %v4190
    %v4226 = vpop.f32.mrb[0].mxu0
    %v4227 = vadd.f32 %v4168, %v4226
    %v4228 = vpop.f32.mrb[0].mxu0
    %v4229 = vpop.f32.mrb[0].mxu0
    %v4230 = vpop.f32.mrb[0].mxu0
    %4231 = vdwg.mxu0
    %v4232 = vmax.f32 %v4227, 0.0
    %v4233 = vpack.c.bf16 %v4232, %v4232
    %v4234 = vld [vmem:[%s8] sm:$0xf]
    %v4235 = vld [vmem:[%s8 + $0x4] sm:$0xf]
    %v4236 = vld [vmem:[%s8 + $0x8] sm:$0xf]
    %v4237 = vld [vmem:[%s9] sm:$0x1]
    %v4239 = vlaneseq
    %v4240 = vshrl.u32 %v4239, 7
    %v4241 = vsub.s32 0, %v4240
    %v4242 = vrot.slane %v4237, %v4241
    %v4247 = vunpack.c.l.b16 %v4234
    %v4248 = vunpack.c.l.b16 %v4235
    %v4249 = vunpack.c.l.b16 %v4236
    %v4250 = vpack.c.b16 %v4248, %v4247
    %v4251 = vpack.c.b16 %v4249, %v4249
    %vm4253 = vcmask 195584
    %v4255 = vsel %vm4253, %v4233, 0
    %vm4257 = vcmask 1043456
    %v4259 = vsel %vm4257, %v4251, 0
    %4261 = vmatprep.subr.bf16.mxu0 0
    %4262 = vmatpush1.bf16.msra.mxu0 %v4250
    %4263 = vmatprep.subr.bf16.mxu0 0
    %4264 = vmatpush1.bf16.msra.mxu0 %v4259
    %4265 = vmatprep.subr.bf16.mxu0 0
    %4266 = vmatpush1.bf16.msra.mxu0 0
    %4267 = vmatprep.subr.bf16.mxu0 0
    %4268 = vmatpush1.bf16.msra.mxu0 0
    %4269 = vmatprep.subr.bf16.mxu0 0
    %4270 = vmatpush1.bf16.msra.mxu0 0
    %4271 = vmatprep.subr.bf16.mxu0 0
    %4272 = vmatpush1.bf16.msra.mxu0 0
    %4273 = vmatprep.subr.bf16.mxu0 0
    %4274 = vmatpush1.bf16.msra.mxu0 0
    %4275 = vmatprep.subr.bf16.mxu0 0
    %4276 = vmatpush1.bf16.msra.mxu0 0
    %4277 = vmatprep.subr.bf16.mxu0 0
    %4278 = vmatpush1.bf16.msra.mxu0 0
    %4279 = vmatprep.subr.bf16.mxu0 0
    %4280 = vmatpush1.bf16.msra.mxu0 0
    %4281 = vmatprep.subr.bf16.mxu0 0
    %4282 = vmatpush1.bf16.msra.mxu0 0
    %4283 = vmatprep.subr.bf16.mxu0 0
    %4284 = vmatpush1.bf16.msra.mxu0 0
    %4285 = vmatprep.subr.bf16.mxu0 0
    %4286 = vmatpush1.bf16.msra.mxu0 0
    %4287 = vmatprep.subr.bf16.mxu0 0
    %4288 = vmatpush1.bf16.msra.mxu0 0
    %4289 = vmatprep.subr.bf16.mxu0 0
    %4290 = vmatpush1.bf16.msra.mxu0 0
    %4291 = vmatprep.subr.bf16.mxu0 0
    %4292 = vmatpush1.bf16.msra.mxu0 0
    %4293 = vmatprep.mubr.bf16.mxu0 0
    %4294 = vmatmul.mubr.bf16.gmra.mrb[0].mxu0 %v4255
    %v4295 = vpop.f32.mrb[0].mxu0
    %v4296 = vadd.f32 %v4242, %v4295
    %v4297 = vpop.f32.mrb[0].mxu0
    %v4298 = vpop.f32.mrb[0].mxu0
    %v4299 = vpop.f32.mrb[0].mxu0
    %4300 = vdwg.mxu0
    %v4301 = vmax.f32 %v4296, 0.0
    %v4302 = vpack.c.bf16 %v4154, %v4154
    %v4303 = vld [vmem:[%s10] sm:$0xf]
    %v4304 = vld [vmem:[%s10 + $0x4] sm:$0xf]
    %v4305 = vld [vmem:[%s10 + $0x8] sm:$0xf]
    %v4306 = vld [vmem:[%s10 + $0xc] sm:$0x1]
    %v4307 = vpack.c.bf16 %v4301, %v4301
    %v4308 = vld [vmem:[%s11] sm:$0xf]
    %v4309 = vld [vmem:[%s11 + $0x4] sm:$0x1]
    %v4312 = vunpack.c.l.b16 %v4308
    %v4313 = vunpack.c.l.b16 %v4309
    %v4314 = vpack.c.b16 %v4313, %v4312
    %vm4315 = vcmask 80896
    %v4317 = vsel %vm4315, %v4307, 0
    %vm4319 = vcmask 1044480
    %v4321 = vsel %vm4319, %v4314, 0
    %4323 = vmatprep.subr.bf16.mxu0 0
    %4324 = vmatpush1.bf16.msra.mxu0 %v4321
    %4325 = vmatprep.subr.bf16.mxu0 0
    %4326 = vmatpush1.bf16.msra.mxu0 0
    %4327 = vmatprep.subr.bf16.mxu0 0
    %4328 = vmatpush1.bf16.msra.mxu0 0
    %4329 = vmatprep.subr.bf16.mxu0 0
    %4330 = vmatpush1.bf16.msra.mxu0 0
    %4331 = vmatprep.subr.bf16.mxu0 0
    %4332 = vmatpush1.bf16.msra.mxu0 0
    %4333 = vmatprep.subr.bf16.mxu0 0
    %4334 = vmatpush1.bf16.msra.mxu0 0
    %4335 = vmatprep.subr.bf16.mxu0 0
    %4336 = vmatpush1.bf16.msra.mxu0 0
    %4337 = vmatprep.subr.bf16.mxu0 0
    %4338 = vmatpush1.bf16.msra.mxu0 0
    %4339 = vmatprep.subr.bf16.mxu0 0
    %4340 = vmatpush1.bf16.msra.mxu0 0
    %4341 = vmatprep.subr.bf16.mxu0 0
    %4342 = vmatpush1.bf16.msra.mxu0 0
    %4343 = vmatprep.subr.bf16.mxu0 0
    %4344 = vmatpush1.bf16.msra.mxu0 0
    %4345 = vmatprep.subr.bf16.mxu0 0
    %4346 = vmatpush1.bf16.msra.mxu0 0
    %4347 = vmatprep.subr.bf16.mxu0 0
    %4348 = vmatpush1.bf16.msra.mxu0 0
    %4349 = vmatprep.subr.bf16.mxu0 0
    %4350 = vmatpush1.bf16.msra.mxu0 0
    %4351 = vmatprep.subr.bf16.mxu0 0
    %4352 = vmatpush1.bf16.msra.mxu0 0
    %4353 = vmatprep.subr.bf16.mxu0 0
    %4354 = vmatpush1.bf16.msra.mxu0 0
    %4355 = vmatprep.mubr.bf16.mxu0 0
    %4356 = vmatmul.mubr.bf16.gmra.mrb[0].mxu0 %v4317
    %v4357 = vpop.f32.mrb[0].mxu0
    %v4358 = vadd.f32 0.0, %v4357
    %v4359 = vpop.f32.mrb[0].mxu0
    %v4360 = vpop.f32.mrb[0].mxu0
    %v4361 = vpop.f32.mrb[0].mxu0
    %4362 = vdwg.mxu0
    %v4367 = vunpack.c.l.b16 %v4303
    %v4368 = vunpack.c.l.b16 %v4304
    %v4369 = vunpack.c.l.b16 %v4305
    %v4370 = vunpack.c.l.b16 %v4306
    %v4371 = vpack.c.b16 %v4368, %v4367
    %v4372 = vpack.c.b16 %v4370, %v4369
    %vm4374 = vcmask 203776
    %v4376 = vsel %vm4374, %v4302, 0
    %v4378 = vsel %vm4257, 4294967295, 65535
    %v4379 = vsel %vm4319, %v4378, 0
    %v4381 = vand.u32 %v4372, %v4379
    %4383 = vmatprep.subr.bf16.mxu0 0
    %4384 = vmatpush1.bf16.msra.mxu0 %v4371
    %4385 = vmatprep.subr.bf16.mxu0 0
    %4386 = vmatpush1.bf16.msra.mxu0 %v4381
    %4387 = vmatprep.subr.bf16.mxu0 0
    %4388 = vmatpush1.bf16.msra.mxu0 0
    %4389 = vmatprep.subr.bf16.mxu0 0
    %4390 = vmatpush1.bf16.msra.mxu0 0
    %4391 = vmatprep.subr.bf16.mxu0 0
    %4392 = vmatpush1.bf16.msra.mxu0 0
    %4393 = vmatprep.subr.bf16.mxu0 0
    %4394 = vmatpush1.bf16.msra.mxu0 0
    %4395 = vmatprep.subr.bf16.mxu0 0
    %4396 = vmatpush1.bf16.msra.mxu0 0
    %4397 = vmatprep.subr.bf16.mxu0 0
    %4398 = vmatpush1.bf16.msra.mxu0 0
    %4399 = vmatprep.subr.bf16.mxu0 0
    %4400 = vmatpush1.bf16.msra.mxu0 0
    %4401 = vmatprep.subr.bf16.mxu0 0
    %4402 = vmatpush1.bf16.msra.mxu0 0
    %4403 = vmatprep.subr.bf16.mxu0 0
    %4404 = vmatpush1.bf16.msra.mxu0 0
    %4405 = vmatprep.subr.bf16.mxu0 0
    %4406 = vmatpush1.bf16.msra.mxu0 0
    %4407 = vmatprep.subr.bf16.mxu0 0
    %4408 = vmatpush1.bf16.msra.mxu0 0
    %4409 = vmatprep.subr.bf16.mxu0 0
    %4410 = vmatpush1.bf16.msra.mxu0 0
    %4411 = vmatprep.subr.bf16.mxu0 0
    %4412 = vmatpush1.bf16.msra.mxu0 0
    %4413 = vmatprep.subr.bf16.mxu0 0
    %4414 = vmatpush1.bf16.msra.mxu0 0
    %4415 = vmatprep.mubr.bf16.mxu0 0
    %4416 = vmatmul.mubr.bf16.gmra.mrb[0].mxu0 %v4376
    %v4417 = vpop.f32.mrb[0].mxu0
    %v4418 = vadd.f32 %v4358, %v4417
    %v4419 = vpop.f32.mrb[0].mxu0
    %v4420 = vpop.f32.mrb[0].mxu0
    %v4421 = vpop.f32.mrb[0].mxu0
    %4422 = vdwg.mxu0
    %v4423 = vld [vmem:[%s12] sm:$0x1]
    %v4425 = vlaneseq
    %v4426 = vshrl.u32 %v4425, 7
    %v4427 = vsub.s32 0, %v4426
    %v4428 = vrot.slane %v4423, %v4427
    %v4430 = vadd.f32 %v4418, %v4428
    %v4431 = vmul.f32 %v4430, 0.5
    %v4432 = vtanh.pop %v4431
    %v4433 = vmul.f32 %v4432, 0.5
    %v4434 = vadd.f32 %v4433, 0.5
    %vm4435 = vcmask 33792
    %4436 = vst.msk [vmem:[#allocation2] sm:$0x3] %vm4435, %v4434
    // Predicated region
    $region54: #{forward.3} parent=1 // pred_check
      _
    $region55: #{forward.3} parent=1 // pred_check_branch
      %4438 = sbr.rel (0) target = $region57
    $region56: #{forward.3} parent=1 // pred_region
      %s4440 = ssub.s32 32, 32
      %4441 = vsyncadd [#allocation3], %s4440
      %s4443 = sshll.u32 [#allocation2], 4
      %s4444 = int_to_ptr.vmem [resolvable:$true] %s4443
      %4446 = dma.vmem_to_hbm [thread:$0]  %s4444, 32, %s13, [#allocation3]
    $region57: #{forward.3} parent=1 // pred_fallthru
      _
    // Predicated region
    $region58: #{forward.3} parent=1 // pred_check
      _
    $region59: #{forward.3} parent=1 // pred_check_branch
      %4448 = sbr.rel (0) target = $region61
    $region60: #{forward.3} parent=1 // pred_region
      %4449 = dma.done [#allocation3], 32
    $region61: #{forward.3} parent=1 // pred_fallthru
      _
    %4450 = vsyncpa [#allocation3], 1

</llo_original>
